<compile_context>
chip_gen: v7x
topology: tpu7x:2x2x1
jax: 0.10.0
libtpu: 0.0.40
codegen_flags: <defaults>
</compile_context>

<pallas_src>
import functools

import jax
import jax.numpy as jnp
import numpy as np
from jax.experimental import pallas as pl
from jax.experimental.pallas import tpu as pltpu

BN_EPS = 1e-5  # nn.BatchNorm2d default eps
_HIGH = jax.lax.Precision.HIGHEST
_LANE = 128
_X_BLOCK_BUDGET_BYTES = 1 << 20  # ~1 MiB per-step x block keeps VMEM/vreg pressure low


def _round_up(a, b):
    return (a + b - 1) // b * b


@functools.lru_cache(maxsize=None)
def _coord_const_matrices(h, w):
    """Exact pooling / broadcast matrices, lane-padded per branch (cached per shape)."""
    hw = h * w
    hwp = _round_up(hw, _LANE)
    lh = _round_up(h, _LANE)
    lw = _round_up(w, _LANE)
    rows = np.arange(hw)
    m_pool = np.zeros((hwp, lh + lw), np.float32)
    m_pool[rows, rows // w] = 1.0 / w          # h-branch: mean over w
    m_pool[rows, lh + (rows % w)] = 1.0 / h    # w-branch: mean over h
    m_bcast = np.zeros((lh + lw, hwp), np.float32)
    m_bcast[rows // w, rows] = 1.0             # broadcast a_h back over w
    m_bcast[lh + (rows % w), rows] = 1.0       # broadcast a_w back over h
    return m_pool, m_bcast, hwp, lh, lw


def _pick_nb(n, per_batch_bytes):
    """Largest divisor of n under the VMEM budget, keeping >=2 grid steps (v7x)."""
    cap = max(1, min(n, _X_BLOCK_BUDGET_BYTES // max(per_batch_bytes, 1)))
    if n >= 2:
        cap = min(cap, n // 2)
    nb = 1
    for d in range(1, cap + 1):
        if n % d == 0:
            nb = d
    return nb


def _coord_att_kernel(x_ref, mpool_ref, mbcast_ref, w1_ref, b1_ref,
                      whw_ref, bhw_ref, o_ref, *, nb, c, lh, lw):
    # x_ref: (nb, c, hwp) -- nb batch elements, fully resident in VMEM.
    x = x_ref[...]
    hwp = x.shape[-1]

    # --- coordinate pooling for the whole block, fused H/W branches, one dot ---
    x_flat = x.reshape(nb * c, hwp)
    pooled = jnp.dot(x_flat, mpool_ref[...],
                     preferred_element_type=jnp.float32,
                     precision=_HIGH)                               # (nb*c, lh+lw)

    # Constant / weight views (static, sublane/lane-aligned slices; loaded once).
    m_bh = mbcast_ref[:lh, :]                                       # (lh, hwp)
    m_bw = mbcast_ref[lh:, :]                                       # (lw, hwp)
    w1 = w1_ref[...]                                                # (mip, c)  BN folded
    b1 = b1_ref[...]                                                # (mip, 1)
    wh = whw_ref[:c, :]                                             # (c, mip)
    ww = whw_ref[c:, :]                                             # (c, mip)
    bh = bhw_ref[:c, :]                                             # (c, 1)
    bw = bhw_ref[c:, :]                                             # (c, 1)

    # --- per-batch tiny convs (statically unrolled; nb is small) ---
    for b in range(nb):
        pb = pooled[b * c:(b + 1) * c]                              # (c, lh+lw)
        # shared 1x1 conv (+ folded eval-mode BN) + h_swish on both branches at once
        y = jnp.dot(w1, pb, preferred_element_type=jnp.float32,
                    precision=_HIGH) + b1                           # (mip, lh+lw)
        y = y * (jnp.clip(y + 3.0, 0.0, 6.0) * (1.0 / 6.0))         # h_swish
        y_h = y[:, :lh]                                             # (mip, lh)  free slice
        y_w = y[:, lh:]                                             # (mip, lw)

        # per-branch 1x1 conv + sigmoid gates
        a_h = jax.nn.sigmoid(
            jnp.dot(wh, y_h, preferred_element_type=jnp.float32,
                    precision=_HIGH) + bh)                          # (c, lh)
        a_w = jax.nn.sigmoid(
            jnp.dot(ww, y_w, preferred_element_type=jnp.float32,
                    precision=_HIGH) + bw)                          # (c, lw)

        # broadcast gates back to (c, hwp) with exact 0/1 matrices (zero rows in the
        # lane padding kill any padding-lane garbage) and fuse identity multiply.
        ah_full = jnp.dot(a_h, m_bh, preferred_element_type=jnp.float32,
                          precision=_HIGH)                          # (c, hwp)
        aw_full = jnp.dot(a_w, m_bw, preferred_element_type=jnp.float32,
                          precision=_HIGH)                          # (c, hwp)
        o_ref[b] = (x[b] * ah_full * aw_full).astype(o_ref.dtype)


@jax.jit
def coord_att(x, conv1_w, conv1_b, bn_gamma, bn_beta, bn_mean, bn_var,
              convh_w, convh_b, convw_w, convw_b, eps=BN_EPS):
    """x: (n, c, h, w) f32. conv1_w: (mip, c); convh_w/convw_w: (c, mip)."""
    n, c, h, w = x.shape
    mip = conv1_w.shape[0]
    hw = h * w

    # Fold eval-mode BatchNorm into conv1 (a 1x1 conv is just a matmul).
    scale = bn_gamma / jnp.sqrt(bn_var + eps)                        # (mip,)
    w1 = (conv1_w * scale[:, None]).astype(jnp.float32)              # (mip, c)
    b1 = ((conv1_b - bn_mean) * scale + bn_beta).reshape(mip, 1)     # (mip, 1)

    # Pack the two per-branch convs into single inputs (sliced in-kernel).
    w_hw = jnp.concatenate([convh_w, convw_w], axis=0).astype(jnp.float32)   # (2c, mip)
    b_hw = jnp.concatenate([convh_b, convw_b], axis=0).reshape(2 * c, 1)     # (2c, 1)

    # Constant pooling / broadcast matrices (cached per (h, w); constants under jit).
    m_pool, m_bcast, hwp, lh, lw = _coord_const_matrices(h, w)

    # Flatten spatial dims to a lane-dense slab; pad hw to a multiple of 128 so
    # all loads/stores stay unmasked.
    x_f = x.reshape(n, c, hw)
    if hwp != hw:
        x_f = jnp.pad(x_f, ((0, 0), (0, 0), (0, hwp - hw)))

    nb = _pick_nb(n, c * hwp * 4)
    grid = (n // nb,)
    const2 = lambda i: (0, 0)
    kernel = functools.partial(_coord_att_kernel, nb=nb, c=c, lh=lh, lw=lw)

    out_f = pl.pallas_call(
        kernel,
        out_shape=jax.ShapeDtypeStruct((n, c, hwp), x.dtype),
        grid=grid,
        in_specs=[
            pl.BlockSpec((nb, c, hwp), lambda i: (i, 0, 0)),
            pl.BlockSpec((hwp, lh + lw), const2),
            pl.BlockSpec((lh + lw, hwp), const2),
            pl.BlockSpec((mip, c), const2),
            pl.BlockSpec((mip, 1), const2),
            pl.BlockSpec((2 * c, mip), const2),
            pl.BlockSpec((2 * c, 1), const2),
        ],
        out_specs=pl.BlockSpec((nb, c, hwp), lambda i: (i, 0, 0)),
        compiler_params=pltpu.CompilerParams(dimension_semantics=("parallel",)),
    )(x_f, jnp.asarray(m_pool), jnp.asarray(m_bcast), w1, b1, w_hw, b_hw)

    if hwp != hw:
        out_f = out_f[..., :hw]
    return out_f.reshape(n, c, h, w)


def reference(x, conv1_w, conv1_b, bn_gamma, bn_beta, bn_mean, bn_var,
              convh_w, convh_b, convw_w, convw_b, eps=BN_EPS):
    """Pure-JAX mirror of the PyTorch CoordAtt forward (eval-mode BN)."""
    n, c, h, w = x.shape
    x_h = jnp.mean(x, axis=3, keepdims=True)                              # (n,c,h,1)
    x_w = jnp.mean(x, axis=2, keepdims=True).transpose(0, 1, 3, 2)        # (n,c,w,1)
    y = jnp.concatenate([x_h, x_w], axis=2)                               # (n,c,h+w,1)
    y = jnp.einsum('oc,nchw->nohw', conv1_w, y, precision=_HIGH) \
        + conv1_b.reshape(1, -1, 1, 1)
    y = (y - bn_mean.reshape(1, -1, 1, 1)) \
        / jnp.sqrt(bn_var.reshape(1, -1, 1, 1) + eps) \
        * bn_gamma.reshape(1, -1, 1, 1) + bn_beta.reshape(1, -1, 1, 1)
    y = y * jnp.clip(y + 3.0, 0.0, 6.0) / 6.0                             # h_swish
    y_h, y_w = y[:, :, :h, :], y[:, :, h:, :]
    y_w = y_w.transpose(0, 1, 3, 2)                                       # (n,mip,1,w)
    a_h = jax.nn.sigmoid(jnp.einsum('co,nohw->nchw', convh_w, y_h, precision=_HIGH)
                         + convh_b.reshape(1, -1, 1, 1))                  # (n,c,h,1)
    a_w = jax.nn.sigmoid(jnp.einsum('co,nohw->nchw', convw_w, y_w, precision=_HIGH)
                         + convw_b.reshape(1, -1, 1, 1))                  # (n,c,1,w)
    return x * a_w * a_h


if __name__ == "__main__":
    # Shapes consistent with CoordAtt(inp=32, reduction=32) -> mip = max(8, 1) = 8.
    B, C, H, W = 2, 32, 16, 16
    REDUCTION = 32
    MIP = max(8, C // REDUCTION)

    key = jax.random.PRNGKey(0)
    ks = jax.random.split(key, 11)
    x = jax.random.normal(ks[0], (B, C, H, W), dtype=jnp.float32)

    conv1_w = jax.random.normal(ks[1], (MIP, C), dtype=jnp.float32) * 0.3
    conv1_b = jax.random.normal(ks[2], (MIP,), dtype=jnp.float32) * 0.1
    bn_gamma = 1.0 + 0.1 * jax.random.normal(ks[3], (MIP,), dtype=jnp.float32)
    bn_beta = 0.1 * jax.random.normal(ks[4], (MIP,), dtype=jnp.float32)
    bn_mean = 0.1 * jax.random.normal(ks[5], (MIP,), dtype=jnp.float32)
    bn_var = jax.random.uniform(ks[6], (MIP,), dtype=jnp.float32,
                                minval=0.5, maxval=1.5)
    convh_w = jax.random.normal(ks[7], (C, MIP), dtype=jnp.float32) * 0.3
    convh_b = 0.1 * jax.random.normal(ks[8], (C,), dtype=jnp.float32)
    convw_w = jax.random.normal(ks[9], (C, MIP), dtype=jnp.float32) * 0.3
    convw_b = 0.1 * jax.random.normal(ks[10], (C,), dtype=jnp.float32)

    out = coord_att(x, conv1_w, conv1_b, bn_gamma, bn_beta, bn_mean, bn_var,
                    convh_w, convh_b, convw_w, convw_b)
    jax.block_until_ready(out)

    ref = reference(x, conv1_w, conv1_b, bn_gamma, bn_beta, bn_mean, bn_var,
                    convh_w, convh_b, convw_w, convw_b)
    np.testing.assert_allclose(np.asarray(out), np.asarray(ref),
                               rtol=1e-4, atol=1e-4)

    print("KERNEL_OK")
</pallas_src>

<mosaic_0001>
module attributes {stable_mosaic.version = 11 : i64} {
  func.func @_coord_att_kernel(%arg0: i32, %arg1: memref<1x32x256xf32, #tpu.memory_space<vmem>>, %arg2: memref<256x256xf32, #tpu.memory_space<vmem>>, %arg3: memref<256x256xf32, #tpu.memory_space<vmem>>, %arg4: memref<8x32xf32, #tpu.memory_space<vmem>>, %arg5: memref<8x1xf32, #tpu.memory_space<vmem>>, %arg6: memref<64x8xf32, #tpu.memory_space<vmem>>, %arg7: memref<64x1xf32, #tpu.memory_space<vmem>>, %arg8: memref<1x32x256xf32, #tpu.memory_space<vmem>>) attributes {dimension_semantics = [#tpu.dimension_semantics<parallel>], iteration_bounds = array<i64: 2>, scalar_prefetch = 0 : i64, scratch_operands = 0 : i64, tpu.core_type = #tpu.core_type<tc>, window_params = [{transform_indices = @transform_0, window_bounds = array<i64: 1, 32, 256>}, {pipeline_mode = #tpu.pipeline_mode<synchronous>, transform_indices = @transform_1, window_bounds = array<i64: 256, 256>}, {pipeline_mode = #tpu.pipeline_mode<synchronous>, transform_indices = @transform_2, window_bounds = array<i64: 256, 256>}, {pipeline_mode = #tpu.pipeline_mode<synchronous>, transform_indices = @transform_3, window_bounds = array<i64: 8, 32>}, {pipeline_mode = #tpu.pipeline_mode<synchronous>, transform_indices = @transform_4, window_bounds = array<i64: 8, 1>}, {pipeline_mode = #tpu.pipeline_mode<synchronous>, transform_indices = @transform_5, window_bounds = array<i64: 64, 8>}, {pipeline_mode = #tpu.pipeline_mode<synchronous>, transform_indices = @transform_6, window_bounds = array<i64: 64, 1>}, {transform_indices = @transform_7, window_bounds = array<i64: 1, 32, 256>}]} {
    %c0 = arith.constant 0 : index
    %c0_0 = arith.constant 0 : index
    %c0_1 = arith.constant 0 : index
    %0 = vector.load %arg1[%c0, %c0_0, %c0_1] : memref<1x32x256xf32, #tpu.memory_space<vmem>>, vector<1x32x256xf32>
    %1 = vector.shape_cast %0 : vector<1x32x256xf32> to vector<32x256xf32>
    %c0_2 = arith.constant 0 : index
    %c0_3 = arith.constant 0 : index
    %2 = vector.load %arg2[%c0_2, %c0_3] : memref<256x256xf32, #tpu.memory_space<vmem>>, vector<256x256xf32>
    %cst = arith.constant dense<0.000000e+00> : vector<32x256xf32>
    %3 = tpu.matmul %1, %2, %cst {dimension_numbers = #tpu.dot_dimension_numbers<[1], [0], [0], [1], [0, 0, 1, 1], [], []>, precision = #tpu.contract_precision<fp32>} : vector<32x256xf32>, vector<256x256xf32>, vector<32x256xf32> -> vector<32x256xf32>
    %c0_4 = arith.constant 0 : index
    %c0_5 = arith.constant 0 : index
    %4 = vector.load %arg3[%c0_4, %c0_5] : memref<256x256xf32, #tpu.memory_space<vmem>>, vector<128x256xf32>
    %c128 = arith.constant 128 : index
    %c0_6 = arith.constant 0 : index
    %5 = vector.load %arg3[%c128, %c0_6] : memref<256x256xf32, #tpu.memory_space<vmem>>, vector<128x256xf32>
    %c0_7 = arith.constant 0 : index
    %c0_8 = arith.constant 0 : index
    %6 = vector.load %arg4[%c0_7, %c0_8] : memref<8x32xf32, #tpu.memory_space<vmem>>, vector<8x32xf32>
    %c0_9 = arith.constant 0 : index
    %c0_10 = arith.constant 0 : index
    %7 = vector.load %arg5[%c0_9, %c0_10] : memref<8x1xf32, #tpu.memory_space<vmem>>, vector<8x1xf32>
    %c0_11 = arith.constant 0 : index
    %c0_12 = arith.constant 0 : index
    %8 = vector.load %arg6[%c0_11, %c0_12] : memref<64x8xf32, #tpu.memory_space<vmem>>, vector<32x8xf32>
    %c32 = arith.constant 32 : index
    %c0_13 = arith.constant 0 : index
    %9 = vector.load %arg6[%c32, %c0_13] : memref<64x8xf32, #tpu.memory_space<vmem>>, vector<32x8xf32>
    %c0_14 = arith.constant 0 : index
    %c0_15 = arith.constant 0 : index
    %10 = vector.load %arg7[%c0_14, %c0_15] : memref<64x1xf32, #tpu.memory_space<vmem>>, vector<32x1xf32>
    %c32_16 = arith.constant 32 : index
    %c0_17 = arith.constant 0 : index
    %11 = vector.load %arg7[%c32_16, %c0_17] : memref<64x1xf32, #tpu.memory_space<vmem>>, vector<32x1xf32>
    %cst_18 = arith.constant dense<0.000000e+00> : vector<8x256xf32>
    %12 = tpu.matmul %6, %3, %cst_18 {dimension_numbers = #tpu.dot_dimension_numbers<[1], [0], [0], [1], [0, 0, 1, 1], [], []>, precision = #tpu.contract_precision<fp32>} : vector<8x32xf32>, vector<32x256xf32>, vector<8x256xf32> -> vector<8x256xf32>
    %13 = vector.broadcast %7 : vector<8x1xf32> to vector<8x256xf32>
    %14 = arith.addf %12, %13 : vector<8x256xf32>
    %cst_19 = arith.constant 3.000000e+00 : f32
    %15 = vector.broadcast %cst_19 : f32 to vector<8x256xf32>
    %16 = arith.addf %14, %15 : vector<8x256xf32>
    %cst_20 = arith.constant 0.000000e+00 : f32
    %cst_21 = arith.constant 6.000000e+00 : f32
    %17 = vector.broadcast %cst_20 : f32 to vector<8x256xf32>
    %18 = arith.maximumf %17, %16 : vector<8x256xf32>
    %19 = vector.broadcast %cst_21 : f32 to vector<8x256xf32>
    %20 = arith.minimumf %19, %18 : vector<8x256xf32>
    %cst_22 = arith.constant 0.166666672 : f32
    %21 = vector.broadcast %cst_22 : f32 to vector<8x256xf32>
    %22 = arith.mulf %20, %21 : vector<8x256xf32>
    %23 = arith.mulf %14, %22 : vector<8x256xf32>
    %24 = vector.extract_strided_slice %23 {offsets = [0, 0], sizes = [8, 128], strides = [1, 1]} : vector<8x256xf32> to vector<8x128xf32>
    %25 = vector.extract_strided_slice %23 {offsets = [0, 128], sizes = [8, 128], strides = [1, 1]} : vector<8x256xf32> to vector<8x128xf32>
    %cst_23 = arith.constant dense<0.000000e+00> : vector<32x128xf32>
    %26 = tpu.matmul %8, %24, %cst_23 {dimension_numbers = #tpu.dot_dimension_numbers<[1], [0], [0], [1], [0, 0, 1, 1], [], []>, precision = #tpu.contract_precision<fp32>} : vector<32x8xf32>, vector<8x128xf32>, vector<32x128xf32> -> vector<32x128xf32>
    %27 = vector.broadcast %10 : vector<32x1xf32> to vector<32x128xf32>
    %28 = arith.addf %26, %27 : vector<32x128xf32>
    %29 = arith.negf %28 : vector<32x128xf32>
    %30 = math.exp %29 : vector<32x128xf32>
    %cst_24 = arith.constant 1.000000e+00 : f32
    %31 = vector.broadcast %cst_24 : f32 to vector<32x128xf32>
    %32 = arith.addf %31, %30 : vector<32x128xf32>
    %33 = arith.divf %31, %32 : vector<32x128xf32>
    %cst_25 = arith.constant dense<0.000000e+00> : vector<32x128xf32>
    %34 = tpu.matmul %9, %25, %cst_25 {dimension_numbers = #tpu.dot_dimension_numbers<[1], [0], [0], [1], [0, 0, 1, 1], [], []>, precision = #tpu.contract_precision<fp32>} : vector<32x8xf32>, vector<8x128xf32>, vector<32x128xf32> -> vector<32x128xf32>
    %35 = vector.broadcast %11 : vector<32x1xf32> to vector<32x128xf32>
    %36 = arith.addf %34, %35 : vector<32x128xf32>
    %37 = arith.negf %36 : vector<32x128xf32>
    %38 = math.exp %37 : vector<32x128xf32>
    %cst_26 = arith.constant 1.000000e+00 : f32
    %39 = vector.broadcast %cst_26 : f32 to vector<32x128xf32>
    %40 = arith.addf %39, %38 : vector<32x128xf32>
    %41 = arith.divf %39, %40 : vector<32x128xf32>
    %cst_27 = arith.constant dense<0.000000e+00> : vector<32x256xf32>
    %42 = tpu.matmul %33, %4, %cst_27 {dimension_numbers = #tpu.dot_dimension_numbers<[1], [0], [0], [1], [0, 0, 1, 1], [], []>, precision = #tpu.contract_precision<fp32>} : vector<32x128xf32>, vector<128x256xf32>, vector<32x256xf32> -> vector<32x256xf32>
    %cst_28 = arith.constant dense<0.000000e+00> : vector<32x256xf32>
    %43 = tpu.matmul %41, %5, %cst_28 {dimension_numbers = #tpu.dot_dimension_numbers<[1], [0], [0], [1], [0, 0, 1, 1], [], []>, precision = #tpu.contract_precision<fp32>} : vector<32x128xf32>, vector<128x256xf32>, vector<32x256xf32> -> vector<32x256xf32>
    %44 = vector.shape_cast %0 : vector<1x32x256xf32> to vector<32x256xf32>
    %45 = arith.mulf %44, %42 : vector<32x256xf32>
    %46 = arith.mulf %45, %43 : vector<32x256xf32>
    %c0_29 = arith.constant 0 : index
    %c0_30 = arith.constant 0 : index
    %c0_31 = arith.constant 0 : index
    %47 = vector.load %arg8[%c0_29, %c0_30, %c0_31] : memref<1x32x256xf32, #tpu.memory_space<vmem>>, vector<1x32x256xf32>
    %48 = vector.shape_cast %47 : vector<1x32x256xf32> to vector<32x256xf32>
    %49 = vector.shape_cast %46 : vector<32x256xf32> to vector<1x32x256xf32>
    tpu.vector_store %arg8[%c0_29, %c0_30, %c0_31], %49 {strides = array<i32>} : memref<1x32x256xf32, #tpu.memory_space<vmem>>, vector<1x32x256xf32>,
    return
  }
  func.func @transform_0(%arg0: i32) -> (i32, i32, i32) {
    %c0_i32 = arith.constant 0 : i32
    %c0_i32_0 = arith.constant 0 : i32
    %c0_i32_1 = arith.constant 0 : i32
    return %arg0, %c0_i32, %c0_i32_0 : i32, i32, i32
  }
  func.func @transform_1(%arg0: i32) -> (i32, i32) {
    %c0_i32 = arith.constant 0 : i32
    %c0_i32_0 = arith.constant 0 : i32
    %c0_i32_1 = arith.constant 0 : i32
    return %c0_i32, %c0_i32_0 : i32, i32
  }
  func.func @transform_2(%arg0: i32) -> (i32, i32) {
    %c0_i32 = arith.constant 0 : i32
    %c0_i32_0 = arith.constant 0 : i32
    %c0_i32_1 = arith.constant 0 : i32
    return %c0_i32, %c0_i32_0 : i32, i32
  }
  func.func @transform_3(%arg0: i32) -> (i32, i32) {
    %c0_i32 = arith.constant 0 : i32
    %c0_i32_0 = arith.constant 0 : i32
    %c0_i32_1 = arith.constant 0 : i32
    return %c0_i32, %c0_i32_0 : i32, i32
  }
  func.func @transform_4(%arg0: i32) -> (i32, i32) {
    %c0_i32 = arith.constant 0 : i32
    %c0_i32_0 = arith.constant 0 : i32
    %c0_i32_1 = arith.constant 0 : i32
    return %c0_i32, %c0_i32_0 : i32, i32
  }
  func.func @transform_5(%arg0: i32) -> (i32, i32) {
    %c0_i32 = arith.constant 0 : i32
    %c0_i32_0 = arith.constant 0 : i32
    %c0_i32_1 = arith.constant 0 : i32
    return %c0_i32, %c0_i32_0 : i32, i32
  }
  func.func @transform_6(%arg0: i32) -> (i32, i32) {
    %c0_i32 = arith.constant 0 : i32
    %c0_i32_0 = arith.constant 0 : i32
    %c0_i32_1 = arith.constant 0 : i32
    return %c0_i32, %c0_i32_0 : i32, i32
  }
  func.func @transform_7(%arg0: i32) -> (i32, i32, i32) {
    %c0_i32 = arith.constant 0 : i32
    %c0_i32_0 = arith.constant 0 : i32
    %c0_i32_1 = arith.constant 0 : i32
    return %arg0, %c0_i32, %c0_i32_0 : i32, i32, i32
  }
}

</mosaic_0001>

<llo_original>
// kernel: coord_att.1
$region0: #{coord_att.1}
  #allocation0 [shape = 'u32[]', space=smem, size = 0x4, offset = 0x4, fixed_abs, tag = 'smem constant byte address 0x4 - core index']
  #allocation1 [shape = 'u32[144,128]{1,0:T(1,128)}', space=vmem, size = 0x12000, scoped, tag = 'internal scratch']
  %s0 = inlined_call_operand.vmem [shape: f32[2,32,256], index: 0, kind: input, shape index: {}]
  %s1 = inlined_call_operand.hbm [shape: f32[256,256], index: 1, kind: input, shape index: {}]
  %s2 = inlined_call_operand.vmem [shape: f32[256,256], index: 2, kind: input, shape index: {}]
  %s3 = inlined_call_operand.vmem [shape: f32[8,32], index: 3, kind: input, shape index: {}]
  %s4 = inlined_call_operand.vmem [shape: f32[8,1], index: 4, kind: input, shape index: {}]
  %s5 = inlined_call_operand.vmem [shape: f32[64,8], index: 5, kind: input, shape index: {}]
  %s6 = inlined_call_operand.vmem [shape: f32[64,1], index: 6, kind: input, shape index: {}]
  %s7 = inlined_call_operand.vmem [shape: f32[2,32,256], index: 7, kind: output, shape index: {}]
  %s8 = sld [smem:[#allocation0]]
  $region65: #{coord_att.1} parent=0
    _
  %s10 = ssub.s32 1, %s8
  %s11 = scalar_select 0, %s10, %s8
  $region1: #{coord_att.1} parent=0
    #allocation2 [shape = 'u8[262144]{0}', space=vmem, size = 0x40000, scoped, tag = 'input window, operand 1, single buffered']
    #allocation3 [shape = 's32[2]{0}', space=sflag, size = 0x8, scoped, tag = 'scoped memory for coord_att.1']
    %12 = vsyncpa [#allocation3], 0
    loop: start=0, step=1, limit=4
    $region2: #{coord_att.1} parent=1 // loop_pre_header
      _
    $region3: #{coord_att.1} parent=1 // loop_header
      %s14 = sphi 0, %s18
      %p15 = scmp.ge.s32.totalorder %s14, 4
      %s24 = sphi 0, %s26
      %s27 = sphi 0, %s24
      %s28 = sphi 0, %s27
      %s44 = sphi 0, %s28
      %s48 = sphi 0, %s48
      %s50 = sphi 0, %s48
      %s51 = sphi 0, %s50
      %s65 = sphi 0, %s51
      %s69 = sphi 0, %s69
      %s71 = sphi 0, %s69
      %s72 = sphi 0, %s71
      %s86 = sphi 0, %s72
      %s90 = sphi 0, %s90
      %s92 = sphi 0, %s90
      %s93 = sphi 0, %s92
      %s107 = sphi 0, %s93
      %s111 = sphi 0, %s111
      %s113 = sphi 0, %s111
      %s114 = sphi 0, %s113
      %s128 = sphi 0, %s114
      %s132 = sphi 0, %s132
      %s134 = sphi 0, %s132
      %s135 = sphi 0, %s134
      %s149 = sphi 0, %s135
      %s153 = sphi 0, %s153
      %s155 = sphi 0, %s153
      %s156 = sphi 0, %s155
      %s170 = sphi 0, %s156
      %s176 = sphi 0, %s178
      %s179 = sphi 0, %s176
      %s180 = sphi 0, %s179
      %s196 = sphi 0, %s180
    $region4: #{coord_att.1} parent=1 // loop_header_branch
      %17 = sbr.rel (%p15) target = $region8
    $region5: #{coord_att.1} parent=1 // loop_body
      %s19 = ssub.s32 %s14, 1
      %s20 = ssub.s32 %s14, 2
      %s21 = sadd.s32 %s14, 1
      %s22 = ssub.s32 %s14, %s21
      %p23 = scmp.eq.s32.totalorder %s22, 0
      %s25 = sadd.s32 %s24, 1
      %s26 = scalar_select %p23, %s24, %s25
      %p29 = pneg %p23
      %p30 = scmp.eq.s32.totalorder %s14, 1
      %p31 = por %p29, %p30
      %p32 = scmp.ne.s32.totalorder %s24, %s27
      %p33 = scmp.eq.s32.totalorder %s14, 0
      %p34 = por %p32, %p33
      %p35 = scmp.ne.s32.totalorder %s24, %s27
      %p36 = scmp.eq.s32.totalorder %s19, 1
      %p37 = por %p35, %p36
      %p38 = scmp.ne.s32.totalorder %s27, %s28
      %p39 = scmp.eq.s32.totalorder %s19, 0
      %p40 = por %p38, %p39
      %p41 = scmp.ne.s32.totalorder %s27, %s28
      %p42 = scmp.eq.s32.totalorder %s20, 1
      %p43 = por %p41, %p42
      %p45 = scmp.ne.s32.totalorder %s28, %s44
      %p46 = scmp.eq.s32.totalorder %s20, 0
      %p47 = por %p45, %p46
      %s49 = sadd.s32 %s48, 1
      %p52 = scmp.eq.s32.totalorder %s14, 1
      %p53 = scmp.ne.s32.totalorder %s48, %s50
      %p54 = scmp.eq.s32.totalorder %s14, 0
      %p55 = por %p53, %p54
      %p56 = scmp.ne.s32.totalorder %s48, %s50
      %p57 = scmp.eq.s32.totalorder %s19, 1
      %p58 = por %p56, %p57
      %p59 = scmp.ne.s32.totalorder %s50, %s51
      %p60 = scmp.eq.s32.totalorder %s19, 0
      %p61 = por %p59, %p60
      %p62 = scmp.ne.s32.totalorder %s50, %s51
      %p63 = scmp.eq.s32.totalorder %s20, 1
      %p64 = por %p62, %p63
      %p66 = scmp.ne.s32.totalorder %s51, %s65
      %p67 = scmp.eq.s32.totalorder %s20, 0
      %p68 = por %p66, %p67
      %s70 = sadd.s32 %s69, 1
      %p73 = scmp.eq.s32.totalorder %s14, 1
      %p74 = scmp.ne.s32.totalorder %s69, %s71
      %p75 = scmp.eq.s32.totalorder %s14, 0
      %p76 = por %p74, %p75
      %p77 = scmp.ne.s32.totalorder %s69, %s71
      %p78 = scmp.eq.s32.totalorder %s19, 1
      %p79 = por %p77, %p78
      %p80 = scmp.ne.s32.totalorder %s71, %s72
      %p81 = scmp.eq.s32.totalorder %s19, 0
      %p82 = por %p80, %p81
      %p83 = scmp.ne.s32.totalorder %s71, %s72
      %p84 = scmp.eq.s32.totalorder %s20, 1
      %p85 = por %p83, %p84
      %p87 = scmp.ne.s32.totalorder %s72, %s86
      %p88 = scmp.eq.s32.totalorder %s20, 0
      %p89 = por %p87, %p88
      %s91 = sadd.s32 %s90, 1
      %p94 = scmp.eq.s32.totalorder %s14, 1
      %p95 = scmp.ne.s32.totalorder %s90, %s92
      %p96 = scmp.eq.s32.totalorder %s14, 0
      %p97 = por %p95, %p96
      %p98 = scmp.ne.s32.totalorder %s90, %s92
      %p99 = scmp.eq.s32.totalorder %s19, 1
      %p100 = por %p98, %p99
      %p101 = scmp.ne.s32.totalorder %s92, %s93
      %p102 = scmp.eq.s32.totalorder %s19, 0
      %p103 = por %p101, %p102
      %p104 = scmp.ne.s32.totalorder %s92, %s93
      %p105 = scmp.eq.s32.totalorder %s20, 1
      %p106 = por %p104, %p105
      %p108 = scmp.ne.s32.totalorder %s93, %s107
      %p109 = scmp.eq.s32.totalorder %s20, 0
      %p110 = por %p108, %p109
      %s112 = sadd.s32 %s111, 1
      %p115 = scmp.eq.s32.totalorder %s14, 1
      %p116 = scmp.ne.s32.totalorder %s111, %s113
      %p117 = scmp.eq.s32.totalorder %s14, 0
      %p118 = por %p116, %p117
      %p119 = scmp.ne.s32.totalorder %s111, %s113
      %p120 = scmp.eq.s32.totalorder %s19, 1
      %p121 = por %p119, %p120
      %p122 = scmp.ne.s32.totalorder %s113, %s114
      %p123 = scmp.eq.s32.totalorder %s19, 0
      %p124 = por %p122, %p123
      %p125 = scmp.ne.s32.totalorder %s113, %s114
      %p126 = scmp.eq.s32.totalorder %s20, 1
      %p127 = por %p125, %p126
      %p129 = scmp.ne.s32.totalorder %s114, %s128
      %p130 = scmp.eq.s32.totalorder %s20, 0
      %p131 = por %p129, %p130
      %s133 = sadd.s32 %s132, 1
      %p136 = scmp.eq.s32.totalorder %s14, 1
      %p137 = scmp.ne.s32.totalorder %s132, %s134
      %p138 = scmp.eq.s32.totalorder %s14, 0
      %p139 = por %p137, %p138
      %p140 = scmp.ne.s32.totalorder %s132, %s134
      %p141 = scmp.eq.s32.totalorder %s19, 1
      %p142 = por %p140, %p141
      %p143 = scmp.ne.s32.totalorder %s134, %s135
      %p144 = scmp.eq.s32.totalorder %s19, 0
      %p145 = por %p143, %p144
      %p146 = scmp.ne.s32.totalorder %s134, %s135
      %p147 = scmp.eq.s32.totalorder %s20, 1
      %p148 = por %p146, %p147
      %p150 = scmp.ne.s32.totalorder %s135, %s149
      %p151 = scmp.eq.s32.totalorder %s20, 0
      %p152 = por %p150, %p151
      %s154 = sadd.s32 %s153, 1
      %p157 = scmp.eq.s32.totalorder %s14, 1
      %p158 = scmp.ne.s32.totalorder %s153, %s155
      %p159 = scmp.eq.s32.totalorder %s14, 0
      %p160 = por %p158, %p159
      %p161 = scmp.ne.s32.totalorder %s153, %s155
      %p162 = scmp.eq.s32.totalorder %s19, 1
      %p163 = por %p161, %p162
      %p164 = scmp.ne.s32.totalorder %s155, %s156
      %p165 = scmp.eq.s32.totalorder %s19, 0
      %p166 = por %p164, %p165
      %p167 = scmp.ne.s32.totalorder %s155, %s156
      %p168 = scmp.eq.s32.totalorder %s20, 1
      %p169 = por %p167, %p168
      %p171 = scmp.ne.s32.totalorder %s156, %s170
      %p172 = scmp.eq.s32.totalorder %s20, 0
      %p173 = por %p171, %p172
      %s174 = ssub.s32 %s14, %s21
      %p175 = scmp.eq.s32.totalorder %s174, 0
      %s177 = sadd.s32 %s176, 1
      %s178 = scalar_select %p175, %s176, %s177
      %p181 = pneg %p175
      %p182 = scmp.eq.s32.totalorder %s14, 1
      %p183 = por %p181, %p182
      %p184 = scmp.ne.s32.totalorder %s176, %s179
      %p185 = scmp.eq.s32.totalorder %s14, 0
      %p186 = por %p184, %p185
      %p187 = scmp.ne.s32.totalorder %s176, %s179
      %p188 = scmp.eq.s32.totalorder %s19, 1
      %p189 = por %p187, %p188
      %p190 = scmp.ne.s32.totalorder %s179, %s180
      %p191 = scmp.eq.s32.totalorder %s19, 0
      %p192 = por %p190, %p191
      %p193 = scmp.ne.s32.totalorder %s179, %s180
      %p194 = scmp.eq.s32.totalorder %s20, 1
      %p195 = por %p193, %p194
      %p197 = scmp.ne.s32.totalorder %s180, %s196
      %p198 = scmp.eq.s32.totalorder %s20, 0
      %p199 = por %p197, %p198
      %p200 = scmp.le.s32.totalorder 1, %s14
      %p201 = scmp.lt.s32.totalorder %s14, 3
      %p202 = pnand %p200, %p201
      %p203 = pneg %p202
      // Predicated region
      $region9: #{coord_att.1} parent=5 // pred_check
        _
      $region10: #{coord_att.1} parent=5 // pred_check_branch
        %205 = sbr.rel (%p202) target = $region12
      $region11: #{coord_att.1} parent=5 // pred_region
        %s206 = ssub.s32 %s14, 1
        // Predicated region
        $region13: #{coord_att.1} parent=11 // pred_check
          %p207 = pneg %p61
        $region14: #{coord_att.1} parent=11 // pred_check_branch
          %209 = sbr.rel (%p207) target = $region16
        $region15: #{coord_att.1} parent=11 // pred_region
          %s211 = ssub.s32 8192, 8192
          %212 = vsyncadd [#allocation3], %s211
          %s213 = sshll.u32 [#allocation2], 4
          %s214 = int_to_ptr.vmem [resolvable:$true] %s213
          %219 = dma.hbm_to_vmem [thread:$0]  %s1, 8192, %s214, [#allocation3], 256, 256, 16
        $region16: #{coord_att.1} parent=11 // pred_fallthru
          _
        // Predicated region
        $region17: #{coord_att.1} parent=11 // pred_check
          %p220 = pneg %p82
        $region18: #{coord_att.1} parent=11 // pred_check_branch
          %222 = sbr.rel (%p220) target = $region20
        $region19: #{coord_att.1} parent=11 // pred_region
          _
        $region20: #{coord_att.1} parent=11 // pred_fallthru
          _
        // Predicated region
        $region21: #{coord_att.1} parent=11 // pred_check
          %p223 = pneg %p103
        $region22: #{coord_att.1} parent=11 // pred_check_branch
          %225 = sbr.rel (%p223) target = $region24
        $region23: #{coord_att.1} parent=11 // pred_region
          _
        $region24: #{coord_att.1} parent=11 // pred_fallthru
          _
        // Predicated region
        $region25: #{coord_att.1} parent=11 // pred_check
          %p226 = pneg %p124
        $region26: #{coord_att.1} parent=11 // pred_check_branch
          %228 = sbr.rel (%p226) target = $region28
        $region27: #{coord_att.1} parent=11 // pred_region
          _
        $region28: #{coord_att.1} parent=11 // pred_fallthru
          _
        // Predicated region
        $region29: #{coord_att.1} parent=11 // pred_check
          %p229 = pneg %p145
        $region30: #{coord_att.1} parent=11 // pred_check_branch
          %231 = sbr.rel (%p229) target = $region32
        $region31: #{coord_att.1} parent=11 // pred_region
          _
        $region32: #{coord_att.1} parent=11 // pred_fallthru
          _
        // Predicated region
        $region33: #{coord_att.1} parent=11 // pred_check
          %p232 = pneg %p166
        $region34: #{coord_att.1} parent=11 // pred_check_branch
          %234 = sbr.rel (%p232) target = $region36
        $region35: #{coord_att.1} parent=11 // pred_region
          _
        $region36: #{coord_att.1} parent=11 // pred_fallthru
          _
      $region12: #{coord_att.1} parent=5 // pred_fallthru
        _
      %p235 = scmp.lt.s32.totalorder %s14, 2
      // Predicated region
      $region37: #{coord_att.1} parent=5 // pred_check
        %p236 = pneg %p235
      $region38: #{coord_att.1} parent=5 // pred_check_branch
        %238 = sbr.rel (%p236) target = $region40
      $region39: #{coord_att.1} parent=5 // pred_region
        // Predicated region
        $region41: #{coord_att.1} parent=39 // pred_check
          %p239 = pneg %p34
        $region42: #{coord_att.1} parent=39 // pred_check_branch
          %241 = sbr.rel (%p239) target = $region44
        $region43: #{coord_att.1} parent=39 // pred_region
          %p242 = scmp.lt.s32.totalorder %s14, 1
          %s243 = scalar_select %p242, %s14, 1
          %s244 = smul.addr %s243, 8
          %s245 = smul.addr %s244, 8
          %s246 = scalar_lea.vmem %s0, %s245
        $region44: #{coord_att.1} parent=39 // pred_fallthru
          _
      $region40: #{coord_att.1} parent=5 // pred_fallthru
        _
      %p247 = scmp.le.s32.totalorder 1, %s14
      %p248 = scmp.lt.s32.totalorder %s14, 3
      %p249 = pnand %p247, %p248
      %p250 = pneg %p249
      // Predicated region
      $region45: #{coord_att.1} parent=5 // pred_check
        _
      $region46: #{coord_att.1} parent=5 // pred_check_branch
        %252 = sbr.rel (%p249) target = $region48
      $region47: #{coord_att.1} parent=5 // pred_region
        %s253 = ssub.s32 %s14, 1
        // Predicated region
        $region49: #{coord_att.1} parent=47 // pred_check
          %p254 = pneg %p61
        $region50: #{coord_att.1} parent=47 // pred_check_branch
          %256 = sbr.rel (%p254) target = $region52
        $region51: #{coord_att.1} parent=47 // pred_region
          %257 = dma.done [#allocation3], 8192
        $region52: #{coord_att.1} parent=47 // pred_fallthru
          _
        %p258 = scmp.lt.s32.totalorder %s19, 1
        %s259 = scalar_select %p258, %s19, 1
        %s260 = smul.addr %s259, 8
        %s261 = smul.addr %s260, 8
        %s262 = scalar_lea.vmem %s0, %s261
        %p263 = pneg %p40
        %p264 = pneg %p37
        %p265 = pneg %p61
        %p266 = pneg %p58
        %p267 = pneg %p82
        %p268 = pneg %p79
        %p269 = pneg %p103
        %p270 = pneg %p100
        %p271 = pneg %p124
        %p272 = pneg %p121
        %p273 = pneg %p145
        %p274 = pneg %p142
        %p275 = pneg %p166
        %p276 = pneg %p163
        %p277 = pneg %p192
        %p278 = pneg %p189
        %p279 = scmp.lt.s32.totalorder %s19, 1
        %s280 = scalar_select %p279, %s19, 1
        %s281 = smul.addr %s280, 8
        %s282 = smul.addr %s281, 8
        %s283 = scalar_lea.vmem %s7, %s282
        %p284 = scmp.lt.s32.totalorder %s19, 1
        %s285 = scalar_select %p284, %s19, 1
        %s286 = smul.addr %s285, 8
        %s287 = smul.addr %s286, 8
        %s288 = scalar_lea.vmem %s0, %s287
        %p289 = scmp.lt.s32.totalorder %s19, 1
        %s290 = scalar_select %p289, %s19, 1
        %s291 = smul.addr %s290, 8
        %s292 = smul.addr %s291, 8
        %s293 = scalar_lea.vmem %s7, %s292
        %v294 = vld [vmem:[%s288] sm:$0xff]
        %v295 = vld [vmem:[%s288 + $0x8] sm:$0xff]
        %v296 = vld [vmem:[%s288 + $0x10] sm:$0xff]
        %v297 = vld [vmem:[%s288 + $0x18] sm:$0xff]
        %v298 = vld [vmem:[%s288 + $0x20] sm:$0xff]
        %v299 = vld [vmem:[%s288 + $0x28] sm:$0xff]
        %v300 = vld [vmem:[%s288 + $0x30] sm:$0xff]
        %v301 = vld [vmem:[%s288 + $0x38] sm:$0xff]
        %v302 = vld [vmem:[#allocation2] sm:$0xff]
        %v303 = vld [vmem:[#allocation2 + $0x8] sm:$0xff]
        %v304 = vld [vmem:[#allocation2 + $0x10] sm:$0xff]
        %v305 = vld [vmem:[#allocation2 + $0x18] sm:$0xff]
        %v306 = vld [vmem:[#allocation2 + $0x20] sm:$0xff]
        %v307 = vld [vmem:[#allocation2 + $0x28] sm:$0xff]
        %v308 = vld [vmem:[#allocation2 + $0x30] sm:$0xff]
        %v309 = vld [vmem:[#allocation2 + $0x38] sm:$0xff]
        %v310 = vld [vmem:[#allocation2 + $0x40] sm:$0xff]
        %v311 = vld [vmem:[#allocation2 + $0x48] sm:$0xff]
        %v312 = vld [vmem:[#allocation2 + $0x50] sm:$0xff]
        %v313 = vld [vmem:[#allocation2 + $0x58] sm:$0xff]
        %v314 = vld [vmem:[#allocation2 + $0x60] sm:$0xff]
        %v315 = vld [vmem:[#allocation2 + $0x68] sm:$0xff]
        %v316 = vld [vmem:[#allocation2 + $0x70] sm:$0xff]
        %v317 = vld [vmem:[#allocation2 + $0x78] sm:$0xff]
        %v318 = vld [vmem:[#allocation2 + $0x80] sm:$0xff]
        %v319 = vld [vmem:[#allocation2 + $0x88] sm:$0xff]
        %v320 = vld [vmem:[#allocation2 + $0x90] sm:$0xff]
        %v321 = vld [vmem:[#allocation2 + $0x98] sm:$0xff]
        %v322 = vld [vmem:[#allocation2 + $0xa0] sm:$0xff]
        %v323 = vld [vmem:[#allocation2 + $0xa8] sm:$0xff]
        %v324 = vld [vmem:[#allocation2 + $0xb0] sm:$0xff]
        %v325 = vld [vmem:[#allocation2 + $0xb8] sm:$0xff]
        %v326 = vld [vmem:[#allocation2 + $0xc0] sm:$0xff]
        %v327 = vld [vmem:[#allocation2 + $0xc8] sm:$0xff]
        %v328 = vld [vmem:[#allocation2 + $0xd0] sm:$0xff]
        %v329 = vld [vmem:[#allocation2 + $0xd8] sm:$0xff]
        %v330 = vld [vmem:[#allocation2 + $0xe0] sm:$0xff]
        %v331 = vld [vmem:[#allocation2 + $0xe8] sm:$0xff]
        %v332 = vld [vmem:[#allocation2 + $0xf0] sm:$0xff]
        %v333 = vld [vmem:[#allocation2 + $0xf8] sm:$0xff]
        %v334 = vld [vmem:[#allocation2 + $0x100] sm:$0xff]
        %v335 = vld [vmem:[#allocation2 + $0x108] sm:$0xff]
        %v336 = vld [vmem:[#allocation2 + $0x110] sm:$0xff]
        %v337 = vld [vmem:[#allocation2 + $0x118] sm:$0xff]
        %v338 = vld [vmem:[#allocation2 + $0x120] sm:$0xff]
        %v339 = vld [vmem:[#allocation2 + $0x128] sm:$0xff]
        %v340 = vld [vmem:[#allocation2 + $0x130] sm:$0xff]
        %v341 = vld [vmem:[#allocation2 + $0x138] sm:$0xff]
        %v342 = vld [vmem:[#allocation2 + $0x140] sm:$0xff]
        %v343 = vld [vmem:[#allocation2 + $0x148] sm:$0xff]
        %v344 = vld [vmem:[#allocation2 + $0x150] sm:$0xff]
        %v345 = vld [vmem:[#allocation2 + $0x158] sm:$0xff]
        %v346 = vld [vmem:[#allocation2 + $0x160] sm:$0xff]
        %v347 = vld [vmem:[#allocation2 + $0x168] sm:$0xff]
        %v348 = vld [vmem:[#allocation2 + $0x170] sm:$0xff]
        %v349 = vld [vmem:[#allocation2 + $0x178] sm:$0xff]
        %v350 = vld [vmem:[#allocation2 + $0x180] sm:$0xff]
        %v351 = vld [vmem:[#allocation2 + $0x188] sm:$0xff]
        %v352 = vld [vmem:[#allocation2 + $0x190] sm:$0xff]
        %v353 = vld [vmem:[#allocation2 + $0x198] sm:$0xff]
        %v354 = vld [vmem:[#allocation2 + $0x1a0] sm:$0xff]
        %v355 = vld [vmem:[#allocation2 + $0x1a8] sm:$0xff]
        %v356 = vld [vmem:[#allocation2 + $0x1b0] sm:$0xff]
        %v357 = vld [vmem:[#allocation2 + $0x1b8] sm:$0xff]
        %v358 = vld [vmem:[#allocation2 + $0x1c0] sm:$0xff]
        %v359 = vld [vmem:[#allocation2 + $0x1c8] sm:$0xff]
        %v360 = vld [vmem:[#allocation2 + $0x1d0] sm:$0xff]
        %v361 = vld [vmem:[#allocation2 + $0x1d8] sm:$0xff]
        %v362 = vld [vmem:[#allocation2 + $0x1e0] sm:$0xff]
        %v363 = vld [vmem:[#allocation2 + $0x1e8] sm:$0xff]
        %v364 = vld [vmem:[#allocation2 + $0x1f0] sm:$0xff]
        %v365 = vld [vmem:[#allocation2 + $0x1f8] sm:$0xff]
        %v366 = vand.u32 %v303, 4294901760
        %367 = vmatprep.subr.mxu0 %v366
        %v368 = vand.u32 %v302, 4294901760
        %369 = vmatpush1.msra.mxu0 %v368
        %v370 = vand.u32 %v305, 4294901760
        %371 = vmatprep.subr.mxu0 %v370
        %v372 = vand.u32 %v304, 4294901760
        %373 = vmatpush1.msra.mxu0 %v372
        %v374 = vand.u32 %v307, 4294901760
        %375 = vmatprep.subr.mxu0 %v374
        %v376 = vand.u32 %v306, 4294901760
        %377 = vmatpush1.msra.mxu0 %v376
        %v378 = vand.u32 %v309, 4294901760
        %379 = vmatprep.subr.mxu0 %v378
        %v380 = vand.u32 %v308, 4294901760
        %381 = vmatpush1.msra.mxu0 %v380
        %v382 = vand.u32 %v311, 4294901760
        %383 = vmatprep.subr.mxu0 %v382
        %v384 = vand.u32 %v310, 4294901760
        %385 = vmatpush1.msra.mxu0 %v384
        %v386 = vand.u32 %v313, 4294901760
        %387 = vmatprep.subr.mxu0 %v386
        %v388 = vand.u32 %v312, 4294901760
        %389 = vmatpush1.msra.mxu0 %v388
        %v390 = vand.u32 %v315, 4294901760
        %391 = vmatprep.subr.mxu0 %v390
        %v392 = vand.u32 %v314, 4294901760
        %393 = vmatpush1.msra.mxu0 %v392
        %v394 = vand.u32 %v317, 4294901760
        %395 = vmatprep.subr.mxu0 %v394
        %v396 = vand.u32 %v316, 4294901760
        %397 = vmatpush1.msra.mxu0 %v396
        %v398 = vand.u32 %v319, 4294901760
        %399 = vmatprep.subr.mxu0 %v398
        %v400 = vand.u32 %v318, 4294901760
        %401 = vmatpush1.msra.mxu0 %v400
        %v402 = vand.u32 %v321, 4294901760
        %403 = vmatprep.subr.mxu0 %v402
        %v404 = vand.u32 %v320, 4294901760
        %405 = vmatpush1.msra.mxu0 %v404
        %v406 = vand.u32 %v323, 4294901760
        %407 = vmatprep.subr.mxu0 %v406
        %v408 = vand.u32 %v322, 4294901760
        %409 = vmatpush1.msra.mxu0 %v408
        %v410 = vand.u32 %v325, 4294901760
        %411 = vmatprep.subr.mxu0 %v410
        %v412 = vand.u32 %v324, 4294901760
        %413 = vmatpush1.msra.mxu0 %v412
        %v414 = vand.u32 %v327, 4294901760
        %415 = vmatprep.subr.mxu0 %v414
        %v416 = vand.u32 %v326, 4294901760
        %417 = vmatpush1.msra.mxu0 %v416
        %v418 = vand.u32 %v329, 4294901760
        %419 = vmatprep.subr.mxu0 %v418
        %v420 = vand.u32 %v328, 4294901760
        %421 = vmatpush1.msra.mxu0 %v420
        %v422 = vand.u32 %v331, 4294901760
        %423 = vmatprep.subr.mxu0 %v422
        %v424 = vand.u32 %v330, 4294901760
        %425 = vmatpush1.msra.mxu0 %v424
        %v426 = vand.u32 %v333, 4294901760
        %427 = vmatprep.subr.mxu0 %v426
        %v428 = vand.u32 %v332, 4294901760
        %429 = vmatpush1.msra.mxu0 %v428
        %v430 = vand.u32 %v335, 4294901760
        %431 = vmatprep.subr.mxu0 %v430
        %v432 = vand.u32 %v334, 4294901760
        %433 = vmatpush1.msra.mxu0 %v432
        %v434 = vand.u32 %v337, 4294901760
        %435 = vmatprep.subr.mxu0 %v434
        %v436 = vand.u32 %v336, 4294901760
        %437 = vmatpush1.msra.mxu0 %v436
        %v438 = vand.u32 %v339, 4294901760
        %439 = vmatprep.subr.mxu0 %v438
        %v440 = vand.u32 %v338, 4294901760
        %441 = vmatpush1.msra.mxu0 %v440
        %v442 = vand.u32 %v341, 4294901760
        %443 = vmatprep.subr.mxu0 %v442
        %v444 = vand.u32 %v340, 4294901760
        %445 = vmatpush1.msra.mxu0 %v444
        %v446 = vand.u32 %v343, 4294901760
        %447 = vmatprep.subr.mxu0 %v446
        %v448 = vand.u32 %v342, 4294901760
        %449 = vmatpush1.msra.mxu0 %v448
        %v450 = vand.u32 %v345, 4294901760
        %451 = vmatprep.subr.mxu0 %v450
        %v452 = vand.u32 %v344, 4294901760
        %453 = vmatpush1.msra.mxu0 %v452
        %v454 = vand.u32 %v347, 4294901760
        %455 = vmatprep.subr.mxu0 %v454
        %v456 = vand.u32 %v346, 4294901760
        %457 = vmatpush1.msra.mxu0 %v456
        %v458 = vand.u32 %v349, 4294901760
        %459 = vmatprep.subr.mxu0 %v458
        %v460 = vand.u32 %v348, 4294901760
        %461 = vmatpush1.msra.mxu0 %v460
        %v462 = vand.u32 %v351, 4294901760
        %463 = vmatprep.subr.mxu0 %v462
        %v464 = vand.u32 %v350, 4294901760
        %465 = vmatpush1.msra.mxu0 %v464
        %v466 = vand.u32 %v353, 4294901760
        %467 = vmatprep.subr.mxu0 %v466
        %v468 = vand.u32 %v352, 4294901760
        %469 = vmatpush1.msra.mxu0 %v468
        %v470 = vand.u32 %v355, 4294901760
        %471 = vmatprep.subr.mxu0 %v470
        %v472 = vand.u32 %v354, 4294901760
        %473 = vmatpush1.msra.mxu0 %v472
        %v474 = vand.u32 %v357, 4294901760
        %475 = vmatprep.subr.mxu0 %v474
        %v476 = vand.u32 %v356, 4294901760
        %477 = vmatpush1.msra.mxu0 %v476
        %v478 = vand.u32 %v359, 4294901760
        %479 = vmatprep.subr.mxu0 %v478
        %v480 = vand.u32 %v358, 4294901760
        %481 = vmatpush1.msra.mxu0 %v480
        %v482 = vand.u32 %v361, 4294901760
        %483 = vmatprep.subr.mxu0 %v482
        %v484 = vand.u32 %v360, 4294901760
        %485 = vmatpush1.msra.mxu0 %v484
        %v486 = vand.u32 %v363, 4294901760
        %487 = vmatprep.subr.mxu0 %v486
        %v488 = vand.u32 %v362, 4294901760
        %489 = vmatpush1.msra.mxu0 %v488
        %v490 = vand.u32 %v365, 4294901760
        %491 = vmatprep.subr.mxu0 %v490
        %v492 = vand.u32 %v364, 4294901760
        %493 = vmatpush1.msra.mxu0 %v492
        %v494 = vand.u32 %v295, 4294901760
        %v495 = vsub.f32 %v295, %v494
        %v496 = vand.u32 %v495, 4294901760
        %v497 = vsub.f32 %v495, %v496
        %v498 = vand.u32 %v497, 4294901760
        %499 = vmatprep.mubr.f32.mxu0 %v498
        %v500 = vand.u32 %v294, 4294901760
        %v501 = vsub.f32 %v294, %v500
        %v502 = vand.u32 %v501, 4294901760
        %v503 = vsub.f32 %v501, %v502
        %v504 = vand.u32 %v503, 4294901760
        %505 = vmatmul.mubr.f32.gmra.mrb[0].mxu0 %v504
        %v506 = vpop.f32.mrb[0].mxu0
        %v507 = vadd.f32 0.0, %v506
        %v508 = vpop.f32.mrb[0].mxu0
        %v509 = vadd.f32 0.0, %v508
        %v510 = vand.u32 %v297, 4294901760
        %v511 = vsub.f32 %v297, %v510
        %v512 = vand.u32 %v511, 4294901760
        %v513 = vsub.f32 %v511, %v512
        %v514 = vand.u32 %v513, 4294901760
        %515 = vmatprep.mubr.f32.mxu0 %v514
        %v516 = vand.u32 %v296, 4294901760
        %v517 = vsub.f32 %v296, %v516
        %v518 = vand.u32 %v517, 4294901760
        %v519 = vsub.f32 %v517, %v518
        %v520 = vand.u32 %v519, 4294901760
        %521 = vmatmul.mubr.f32.gmra.mrb[0].mxu0 %v520
        %v522 = vpop.f32.mrb[0].mxu0
        %v523 = vadd.f32 0.0, %v522
        %v524 = vpop.f32.mrb[0].mxu0
        %v525 = vadd.f32 0.0, %v524
        %v526 = vand.u32 %v299, 4294901760
        %v527 = vsub.f32 %v299, %v526
        %v528 = vand.u32 %v527, 4294901760
        %v529 = vsub.f32 %v527, %v528
        %v530 = vand.u32 %v529, 4294901760
        %531 = vmatprep.mubr.f32.mxu0 %v530
        %v532 = vand.u32 %v298, 4294901760
        %v533 = vsub.f32 %v298, %v532
        %v534 = vand.u32 %v533, 4294901760
        %v535 = vsub.f32 %v533, %v534
        %v536 = vand.u32 %v535, 4294901760
        %537 = vmatmul.mubr.f32.gmra.mrb[0].mxu0 %v536
        %v538 = vpop.f32.mrb[0].mxu0
        %v539 = vadd.f32 0.0, %v538
        %v540 = vpop.f32.mrb[0].mxu0
        %v541 = vadd.f32 0.0, %v540
        %v542 = vand.u32 %v301, 4294901760
        %v543 = vsub.f32 %v301, %v542
        %v544 = vand.u32 %v543, 4294901760
        %v545 = vsub.f32 %v543, %v544
        %v546 = vand.u32 %v545, 4294901760
        %547 = vmatprep.mubr.f32.mxu0 %v546
        %v548 = vand.u32 %v300, 4294901760
        %v549 = vsub.f32 %v300, %v548
        %v550 = vand.u32 %v549, 4294901760
        %v551 = vsub.f32 %v549, %v550
        %v552 = vand.u32 %v551, 4294901760
        %553 = vmatmul.mubr.f32.gmra.mrb[0].mxu0 %v552
        %v554 = vpop.f32.mrb[0].mxu0
        %v555 = vadd.f32 0.0, %v554
        %v556 = vpop.f32.mrb[0].mxu0
        %v557 = vadd.f32 0.0, %v556
        %558 = vdwg.mxu0
        %v559 = vand.u32 %v303, 4294901760
        %v560 = vsub.f32 %v303, %v559
        %v561 = vand.u32 %v560, 4294901760
        %v562 = vsub.f32 %v560, %v561
        %v563 = vand.u32 %v562, 4294901760
        %564 = vmatprep.subr.mxu0 %v563
        %v565 = vand.u32 %v302, 4294901760
        %v566 = vsub.f32 %v302, %v565
        %v567 = vand.u32 %v566, 4294901760
        %v568 = vsub.f32 %v566, %v567
        %v569 = vand.u32 %v568, 4294901760
        %570 = vmatpush1.msra.mxu0 %v569
        %v571 = vand.u32 %v305, 4294901760
        %v572 = vsub.f32 %v305, %v571
        %v573 = vand.u32 %v572, 4294901760
        %v574 = vsub.f32 %v572, %v573
        %v575 = vand.u32 %v574, 4294901760
        %576 = vmatprep.subr.mxu0 %v575
        %v577 = vand.u32 %v304, 4294901760
        %v578 = vsub.f32 %v304, %v577
        %v579 = vand.u32 %v578, 4294901760
        %v580 = vsub.f32 %v578, %v579
        %v581 = vand.u32 %v580, 4294901760
        %582 = vmatpush1.msra.mxu0 %v581
        %v583 = vand.u32 %v307, 4294901760
        %v584 = vsub.f32 %v307, %v583
        %v585 = vand.u32 %v584, 4294901760
        %v586 = vsub.f32 %v584, %v585
        %v587 = vand.u32 %v586, 4294901760
        %588 = vmatprep.subr.mxu0 %v587
        %v589 = vand.u32 %v306, 4294901760
        %v590 = vsub.f32 %v306, %v589
        %v591 = vand.u32 %v590, 4294901760
        %v592 = vsub.f32 %v590, %v591
        %v593 = vand.u32 %v592, 4294901760
        %594 = vmatpush1.msra.mxu0 %v593
        %v595 = vand.u32 %v309, 4294901760
        %v596 = vsub.f32 %v309, %v595
        %v597 = vand.u32 %v596, 4294901760
        %v598 = vsub.f32 %v596, %v597
        %v599 = vand.u32 %v598, 4294901760
        %600 = vmatprep.subr.mxu0 %v599
        %v601 = vand.u32 %v308, 4294901760
        %v602 = vsub.f32 %v308, %v601
        %v603 = vand.u32 %v602, 4294901760
        %v604 = vsub.f32 %v602, %v603
        %v605 = vand.u32 %v604, 4294901760
        %606 = vmatpush1.msra.mxu0 %v605
        %v607 = vand.u32 %v311, 4294901760
        %v608 = vsub.f32 %v311, %v607
        %v609 = vand.u32 %v608, 4294901760
        %v610 = vsub.f32 %v608, %v609
        %v611 = vand.u32 %v610, 4294901760
        %612 = vmatprep.subr.mxu0 %v611
        %v613 = vand.u32 %v310, 4294901760
        %v614 = vsub.f32 %v310, %v613
        %v615 = vand.u32 %v614, 4294901760
        %v616 = vsub.f32 %v614, %v615
        %v617 = vand.u32 %v616, 4294901760
        %618 = vmatpush1.msra.mxu0 %v617
        %v619 = vand.u32 %v313, 4294901760
        %v620 = vsub.f32 %v313, %v619
        %v621 = vand.u32 %v620, 4294901760
        %v622 = vsub.f32 %v620, %v621
        %v623 = vand.u32 %v622, 4294901760
        %624 = vmatprep.subr.mxu0 %v623
        %v625 = vand.u32 %v312, 4294901760
        %v626 = vsub.f32 %v312, %v625
        %v627 = vand.u32 %v626, 4294901760
        %v628 = vsub.f32 %v626, %v627
        %v629 = vand.u32 %v628, 4294901760
        %630 = vmatpush1.msra.mxu0 %v629
        %v631 = vand.u32 %v315, 4294901760
        %v632 = vsub.f32 %v315, %v631
        %v633 = vand.u32 %v632, 4294901760
        %v634 = vsub.f32 %v632, %v633
        %v635 = vand.u32 %v634, 4294901760
        %636 = vmatprep.subr.mxu0 %v635
        %v637 = vand.u32 %v314, 4294901760
        %v638 = vsub.f32 %v314, %v637
        %v639 = vand.u32 %v638, 4294901760
        %v640 = vsub.f32 %v638, %v639
        %v641 = vand.u32 %v640, 4294901760
        %642 = vmatpush1.msra.mxu0 %v641
        %v643 = vand.u32 %v317, 4294901760
        %v644 = vsub.f32 %v317, %v643
        %v645 = vand.u32 %v644, 4294901760
        %v646 = vsub.f32 %v644, %v645
        %v647 = vand.u32 %v646, 4294901760
        %648 = vmatprep.subr.mxu0 %v647
        %v649 = vand.u32 %v316, 4294901760
        %v650 = vsub.f32 %v316, %v649
        %v651 = vand.u32 %v650, 4294901760
        %v652 = vsub.f32 %v650, %v651
        %v653 = vand.u32 %v652, 4294901760
        %654 = vmatpush1.msra.mxu0 %v653
        %v655 = vand.u32 %v319, 4294901760
        %v656 = vsub.f32 %v319, %v655
        %v657 = vand.u32 %v656, 4294901760
        %v658 = vsub.f32 %v656, %v657
        %v659 = vand.u32 %v658, 4294901760
        %660 = vmatprep.subr.mxu0 %v659
        %v661 = vand.u32 %v318, 4294901760
        %v662 = vsub.f32 %v318, %v661
        %v663 = vand.u32 %v662, 4294901760
        %v664 = vsub.f32 %v662, %v663
        %v665 = vand.u32 %v664, 4294901760
        %666 = vmatpush1.msra.mxu0 %v665
        %v667 = vand.u32 %v321, 4294901760
        %v668 = vsub.f32 %v321, %v667
        %v669 = vand.u32 %v668, 4294901760
        %v670 = vsub.f32 %v668, %v669
        %v671 = vand.u32 %v670, 4294901760
        %672 = vmatprep.subr.mxu0 %v671
        %v673 = vand.u32 %v320, 4294901760
        %v674 = vsub.f32 %v320, %v673
        %v675 = vand.u32 %v674, 4294901760
        %v676 = vsub.f32 %v674, %v675
        %v677 = vand.u32 %v676, 4294901760
        %678 = vmatpush1.msra.mxu0 %v677
        %v679 = vand.u32 %v323, 4294901760
        %v680 = vsub.f32 %v323, %v679
        %v681 = vand.u32 %v680, 4294901760
        %v682 = vsub.f32 %v680, %v681
        %v683 = vand.u32 %v682, 4294901760
        %684 = vmatprep.subr.mxu0 %v683
        %v685 = vand.u32 %v322, 4294901760
        %v686 = vsub.f32 %v322, %v685
        %v687 = vand.u32 %v686, 4294901760
        %v688 = vsub.f32 %v686, %v687
        %v689 = vand.u32 %v688, 4294901760
        %690 = vmatpush1.msra.mxu0 %v689
        %v691 = vand.u32 %v325, 4294901760
        %v692 = vsub.f32 %v325, %v691
        %v693 = vand.u32 %v692, 4294901760
        %v694 = vsub.f32 %v692, %v693
        %v695 = vand.u32 %v694, 4294901760
        %696 = vmatprep.subr.mxu0 %v695
        %v697 = vand.u32 %v324, 4294901760
        %v698 = vsub.f32 %v324, %v697
        %v699 = vand.u32 %v698, 4294901760
        %v700 = vsub.f32 %v698, %v699
        %v701 = vand.u32 %v700, 4294901760
        %702 = vmatpush1.msra.mxu0 %v701
        %v703 = vand.u32 %v327, 4294901760
        %v704 = vsub.f32 %v327, %v703
        %v705 = vand.u32 %v704, 4294901760
        %v706 = vsub.f32 %v704, %v705
        %v707 = vand.u32 %v706, 4294901760
        %708 = vmatprep.subr.mxu0 %v707
        %v709 = vand.u32 %v326, 4294901760
        %v710 = vsub.f32 %v326, %v709
        %v711 = vand.u32 %v710, 4294901760
        %v712 = vsub.f32 %v710, %v711
        %v713 = vand.u32 %v712, 4294901760
        %714 = vmatpush1.msra.mxu0 %v713
        %v715 = vand.u32 %v329, 4294901760
        %v716 = vsub.f32 %v329, %v715
        %v717 = vand.u32 %v716, 4294901760
        %v718 = vsub.f32 %v716, %v717
        %v719 = vand.u32 %v718, 4294901760
        %720 = vmatprep.subr.mxu0 %v719
        %v721 = vand.u32 %v328, 4294901760
        %v722 = vsub.f32 %v328, %v721
        %v723 = vand.u32 %v722, 4294901760
        %v724 = vsub.f32 %v722, %v723
        %v725 = vand.u32 %v724, 4294901760
        %726 = vmatpush1.msra.mxu0 %v725
        %v727 = vand.u32 %v331, 4294901760
        %v728 = vsub.f32 %v331, %v727
        %v729 = vand.u32 %v728, 4294901760
        %v730 = vsub.f32 %v728, %v729
        %v731 = vand.u32 %v730, 4294901760
        %732 = vmatprep.subr.mxu0 %v731
        %v733 = vand.u32 %v330, 4294901760
        %v734 = vsub.f32 %v330, %v733
        %v735 = vand.u32 %v734, 4294901760
        %v736 = vsub.f32 %v734, %v735
        %v737 = vand.u32 %v736, 4294901760
        %738 = vmatpush1.msra.mxu0 %v737
        %v739 = vand.u32 %v333, 4294901760
        %v740 = vsub.f32 %v333, %v739
        %v741 = vand.u32 %v740, 4294901760
        %v742 = vsub.f32 %v740, %v741
        %v743 = vand.u32 %v742, 4294901760
        %744 = vmatprep.subr.mxu0 %v743
        %v745 = vand.u32 %v332, 4294901760
        %v746 = vsub.f32 %v332, %v745
        %v747 = vand.u32 %v746, 4294901760
        %v748 = vsub.f32 %v746, %v747
        %v749 = vand.u32 %v748, 4294901760
        %750 = vmatpush1.msra.mxu0 %v749
        %v751 = vand.u32 %v335, 4294901760
        %v752 = vsub.f32 %v335, %v751
        %v753 = vand.u32 %v752, 4294901760
        %v754 = vsub.f32 %v752, %v753
        %v755 = vand.u32 %v754, 4294901760
        %756 = vmatprep.subr.mxu0 %v755
        %v757 = vand.u32 %v334, 4294901760
        %v758 = vsub.f32 %v334, %v757
        %v759 = vand.u32 %v758, 4294901760
        %v760 = vsub.f32 %v758, %v759
        %v761 = vand.u32 %v760, 4294901760
        %762 = vmatpush1.msra.mxu0 %v761
        %v763 = vand.u32 %v337, 4294901760
        %v764 = vsub.f32 %v337, %v763
        %v765 = vand.u32 %v764, 4294901760
        %v766 = vsub.f32 %v764, %v765
        %v767 = vand.u32 %v766, 4294901760
        %768 = vmatprep.subr.mxu0 %v767
        %v769 = vand.u32 %v336, 4294901760
        %v770 = vsub.f32 %v336, %v769
        %v771 = vand.u32 %v770, 4294901760
        %v772 = vsub.f32 %v770, %v771
        %v773 = vand.u32 %v772, 4294901760
        %774 = vmatpush1.msra.mxu0 %v773
        %v775 = vand.u32 %v339, 4294901760
        %v776 = vsub.f32 %v339, %v775
        %v777 = vand.u32 %v776, 4294901760
        %v778 = vsub.f32 %v776, %v777
        %v779 = vand.u32 %v778, 4294901760
        %780 = vmatprep.subr.mxu0 %v779
        %v781 = vand.u32 %v338, 4294901760
        %v782 = vsub.f32 %v338, %v781
        %v783 = vand.u32 %v782, 4294901760
        %v784 = vsub.f32 %v782, %v783
        %v785 = vand.u32 %v784, 4294901760
        %786 = vmatpush1.msra.mxu0 %v785
        %v787 = vand.u32 %v341, 4294901760
        %v788 = vsub.f32 %v341, %v787
        %v789 = vand.u32 %v788, 4294901760
        %v790 = vsub.f32 %v788, %v789
        %v791 = vand.u32 %v790, 4294901760
        %792 = vmatprep.subr.mxu0 %v791
        %v793 = vand.u32 %v340, 4294901760
        %v794 = vsub.f32 %v340, %v793
        %v795 = vand.u32 %v794, 4294901760
        %v796 = vsub.f32 %v794, %v795
        %v797 = vand.u32 %v796, 4294901760
        %798 = vmatpush1.msra.mxu0 %v797
        %v799 = vand.u32 %v343, 4294901760
        %v800 = vsub.f32 %v343, %v799
        %v801 = vand.u32 %v800, 4294901760
        %v802 = vsub.f32 %v800, %v801
        %v803 = vand.u32 %v802, 4294901760
        %804 = vmatprep.subr.mxu0 %v803
        %v805 = vand.u32 %v342, 4294901760
        %v806 = vsub.f32 %v342, %v805
        %v807 = vand.u32 %v806, 4294901760
        %v808 = vsub.f32 %v806, %v807
        %v809 = vand.u32 %v808, 4294901760
        %810 = vmatpush1.msra.mxu0 %v809
        %v811 = vand.u32 %v345, 4294901760
        %v812 = vsub.f32 %v345, %v811
        %v813 = vand.u32 %v812, 4294901760
        %v814 = vsub.f32 %v812, %v813
        %v815 = vand.u32 %v814, 4294901760
        %816 = vmatprep.subr.mxu0 %v815
        %v817 = vand.u32 %v344, 4294901760
        %v818 = vsub.f32 %v344, %v817
        %v819 = vand.u32 %v818, 4294901760
        %v820 = vsub.f32 %v818, %v819
        %v821 = vand.u32 %v820, 4294901760
        %822 = vmatpush1.msra.mxu0 %v821
        %v823 = vand.u32 %v347, 4294901760
        %v824 = vsub.f32 %v347, %v823
        %v825 = vand.u32 %v824, 4294901760
        %v826 = vsub.f32 %v824, %v825
        %v827 = vand.u32 %v826, 4294901760
        %828 = vmatprep.subr.mxu0 %v827
        %v829 = vand.u32 %v346, 4294901760
        %v830 = vsub.f32 %v346, %v829
        %v831 = vand.u32 %v830, 4294901760
        %v832 = vsub.f32 %v830, %v831
        %v833 = vand.u32 %v832, 4294901760
        %834 = vmatpush1.msra.mxu0 %v833
        %v835 = vand.u32 %v349, 4294901760
        %v836 = vsub.f32 %v349, %v835
        %v837 = vand.u32 %v836, 4294901760
        %v838 = vsub.f32 %v836, %v837
        %v839 = vand.u32 %v838, 4294901760
        %840 = vmatprep.subr.mxu0 %v839
        %v841 = vand.u32 %v348, 4294901760
        %v842 = vsub.f32 %v348, %v841
        %v843 = vand.u32 %v842, 4294901760
        %v844 = vsub.f32 %v842, %v843
        %v845 = vand.u32 %v844, 4294901760
        %846 = vmatpush1.msra.mxu0 %v845
        %v847 = vand.u32 %v351, 4294901760
        %v848 = vsub.f32 %v351, %v847
        %v849 = vand.u32 %v848, 4294901760
        %v850 = vsub.f32 %v848, %v849
        %v851 = vand.u32 %v850, 4294901760
        %852 = vmatprep.subr.mxu0 %v851
        %v853 = vand.u32 %v350, 4294901760
        %v854 = vsub.f32 %v350, %v853
        %v855 = vand.u32 %v854, 4294901760
        %v856 = vsub.f32 %v854, %v855
        %v857 = vand.u32 %v856, 4294901760
        %858 = vmatpush1.msra.mxu0 %v857
        %v859 = vand.u32 %v353, 4294901760
        %v860 = vsub.f32 %v353, %v859
        %v861 = vand.u32 %v860, 4294901760
        %v862 = vsub.f32 %v860, %v861
        %v863 = vand.u32 %v862, 4294901760
        %864 = vmatprep.subr.mxu0 %v863
        %v865 = vand.u32 %v352, 4294901760
        %v866 = vsub.f32 %v352, %v865
        %v867 = vand.u32 %v866, 4294901760
        %v868 = vsub.f32 %v866, %v867
        %v869 = vand.u32 %v868, 4294901760
        %870 = vmatpush1.msra.mxu0 %v869
        %v871 = vand.u32 %v355, 4294901760
        %v872 = vsub.f32 %v355, %v871
        %v873 = vand.u32 %v872, 4294901760
        %v874 = vsub.f32 %v872, %v873
        %v875 = vand.u32 %v874, 4294901760
        %876 = vmatprep.subr.mxu0 %v875
        %v877 = vand.u32 %v354, 4294901760
        %v878 = vsub.f32 %v354, %v877
        %v879 = vand.u32 %v878, 4294901760
        %v880 = vsub.f32 %v878, %v879
        %v881 = vand.u32 %v880, 4294901760
        %882 = vmatpush1.msra.mxu0 %v881
        %v883 = vand.u32 %v357, 4294901760
        %v884 = vsub.f32 %v357, %v883
        %v885 = vand.u32 %v884, 4294901760
        %v886 = vsub.f32 %v884, %v885
        %v887 = vand.u32 %v886, 4294901760
        %888 = vmatprep.subr.mxu0 %v887
        %v889 = vand.u32 %v356, 4294901760
        %v890 = vsub.f32 %v356, %v889
        %v891 = vand.u32 %v890, 4294901760
        %v892 = vsub.f32 %v890, %v891
        %v893 = vand.u32 %v892, 4294901760
        %894 = vmatpush1.msra.mxu0 %v893
        %v895 = vand.u32 %v359, 4294901760
        %v896 = vsub.f32 %v359, %v895
        %v897 = vand.u32 %v896, 4294901760
        %v898 = vsub.f32 %v896, %v897
        %v899 = vand.u32 %v898, 4294901760
        %900 = vmatprep.subr.mxu0 %v899
        %v901 = vand.u32 %v358, 4294901760
        %v902 = vsub.f32 %v358, %v901
        %v903 = vand.u32 %v902, 4294901760
        %v904 = vsub.f32 %v902, %v903
        %v905 = vand.u32 %v904, 4294901760
        %906 = vmatpush1.msra.mxu0 %v905
        %v907 = vand.u32 %v361, 4294901760
        %v908 = vsub.f32 %v361, %v907
        %v909 = vand.u32 %v908, 4294901760
        %v910 = vsub.f32 %v908, %v909
        %v911 = vand.u32 %v910, 4294901760
        %912 = vmatprep.subr.mxu0 %v911
        %v913 = vand.u32 %v360, 4294901760
        %v914 = vsub.f32 %v360, %v913
        %v915 = vand.u32 %v914, 4294901760
        %v916 = vsub.f32 %v914, %v915
        %v917 = vand.u32 %v916, 4294901760
        %918 = vmatpush1.msra.mxu0 %v917
        %v919 = vand.u32 %v363, 4294901760
        %v920 = vsub.f32 %v363, %v919
        %v921 = vand.u32 %v920, 4294901760
        %v922 = vsub.f32 %v920, %v921
        %v923 = vand.u32 %v922, 4294901760
        %924 = vmatprep.subr.mxu0 %v923
        %v925 = vand.u32 %v362, 4294901760
        %v926 = vsub.f32 %v362, %v925
        %v927 = vand.u32 %v926, 4294901760
        %v928 = vsub.f32 %v926, %v927
        %v929 = vand.u32 %v928, 4294901760
        %930 = vmatpush1.msra.mxu0 %v929
        %v931 = vand.u32 %v365, 4294901760
        %v932 = vsub.f32 %v365, %v931
        %v933 = vand.u32 %v932, 4294901760
        %v934 = vsub.f32 %v932, %v933
        %v935 = vand.u32 %v934, 4294901760
        %936 = vmatprep.subr.mxu0 %v935
        %v937 = vand.u32 %v364, 4294901760
        %v938 = vsub.f32 %v364, %v937
        %v939 = vand.u32 %v938, 4294901760
        %v940 = vsub.f32 %v938, %v939
        %v941 = vand.u32 %v940, 4294901760
        %942 = vmatpush1.msra.mxu0 %v941
        %v943 = vand.u32 %v295, 4294901760
        %944 = vmatprep.mubr.f32.mxu0 %v943
        %v945 = vand.u32 %v294, 4294901760
        %946 = vmatmul.mubr.f32.gmra.mrb[0].mxu0 %v945
        %v947 = vpop.f32.mrb[0].mxu0
        %v948 = vadd.f32 %v507, %v947
        %v949 = vpop.f32.mrb[0].mxu0
        %v950 = vadd.f32 %v509, %v949
        %v951 = vand.u32 %v297, 4294901760
        %952 = vmatprep.mubr.f32.mxu0 %v951
        %v953 = vand.u32 %v296, 4294901760
        %954 = vmatmul.mubr.f32.gmra.mrb[0].mxu0 %v953
        %v955 = vpop.f32.mrb[0].mxu0
        %v956 = vadd.f32 %v523, %v955
        %v957 = vpop.f32.mrb[0].mxu0
        %v958 = vadd.f32 %v525, %v957
        %v959 = vand.u32 %v299, 4294901760
        %960 = vmatprep.mubr.f32.mxu0 %v959
        %v961 = vand.u32 %v298, 4294901760
        %962 = vmatmul.mubr.f32.gmra.mrb[0].mxu0 %v961
        %v963 = vpop.f32.mrb[0].mxu0
        %v964 = vadd.f32 %v539, %v963
        %v965 = vpop.f32.mrb[0].mxu0
        %v966 = vadd.f32 %v541, %v965
        %v967 = vand.u32 %v301, 4294901760
        %968 = vmatprep.mubr.f32.mxu0 %v967
        %v969 = vand.u32 %v300, 4294901760
        %970 = vmatmul.mubr.f32.gmra.mrb[0].mxu0 %v969
        %v971 = vpop.f32.mrb[0].mxu0
        %v972 = vadd.f32 %v555, %v971
        %v973 = vpop.f32.mrb[0].mxu0
        %v974 = vadd.f32 %v557, %v973
        %975 = vdwg.mxu0
        %v976 = vand.u32 %v303, 4294901760
        %v977 = vsub.f32 %v303, %v976
        %978 = vmatprep.subr.mxu0 %v977
        %v979 = vand.u32 %v302, 4294901760
        %v980 = vsub.f32 %v302, %v979
        %981 = vmatpush1.msra.mxu0 %v980
        %v982 = vand.u32 %v305, 4294901760
        %v983 = vsub.f32 %v305, %v982
        %984 = vmatprep.subr.mxu0 %v983
        %v985 = vand.u32 %v304, 4294901760
        %v986 = vsub.f32 %v304, %v985
        %987 = vmatpush1.msra.mxu0 %v986
        %v988 = vand.u32 %v307, 4294901760
        %v989 = vsub.f32 %v307, %v988
        %990 = vmatprep.subr.mxu0 %v989
        %v991 = vand.u32 %v306, 4294901760
        %v992 = vsub.f32 %v306, %v991
        %993 = vmatpush1.msra.mxu0 %v992
        %v994 = vand.u32 %v309, 4294901760
        %v995 = vsub.f32 %v309, %v994
        %996 = vmatprep.subr.mxu0 %v995
        %v997 = vand.u32 %v308, 4294901760
        %v998 = vsub.f32 %v308, %v997
        %999 = vmatpush1.msra.mxu0 %v998
        %v1000 = vand.u32 %v311, 4294901760
        %v1001 = vsub.f32 %v311, %v1000
        %1002 = vmatprep.subr.mxu0 %v1001
        %v1003 = vand.u32 %v310, 4294901760
        %v1004 = vsub.f32 %v310, %v1003
        %1005 = vmatpush1.msra.mxu0 %v1004
        %v1006 = vand.u32 %v313, 4294901760
        %v1007 = vsub.f32 %v313, %v1006
        %1008 = vmatprep.subr.mxu0 %v1007
        %v1009 = vand.u32 %v312, 4294901760
        %v1010 = vsub.f32 %v312, %v1009
        %1011 = vmatpush1.msra.mxu0 %v1010
        %v1012 = vand.u32 %v315, 4294901760
        %v1013 = vsub.f32 %v315, %v1012
        %1014 = vmatprep.subr.mxu0 %v1013
        %v1015 = vand.u32 %v314, 4294901760
        %v1016 = vsub.f32 %v314, %v1015
        %1017 = vmatpush1.msra.mxu0 %v1016
        %v1018 = vand.u32 %v317, 4294901760
        %v1019 = vsub.f32 %v317, %v1018
        %1020 = vmatprep.subr.mxu0 %v1019
        %v1021 = vand.u32 %v316, 4294901760
        %v1022 = vsub.f32 %v316, %v1021
        %1023 = vmatpush1.msra.mxu0 %v1022
        %v1024 = vand.u32 %v319, 4294901760
        %v1025 = vsub.f32 %v319, %v1024
        %1026 = vmatprep.subr.mxu0 %v1025
        %v1027 = vand.u32 %v318, 4294901760
        %v1028 = vsub.f32 %v318, %v1027
        %1029 = vmatpush1.msra.mxu0 %v1028
        %v1030 = vand.u32 %v321, 4294901760
        %v1031 = vsub.f32 %v321, %v1030
        %1032 = vmatprep.subr.mxu0 %v1031
        %v1033 = vand.u32 %v320, 4294901760
        %v1034 = vsub.f32 %v320, %v1033
        %1035 = vmatpush1.msra.mxu0 %v1034
        %v1036 = vand.u32 %v323, 4294901760
        %v1037 = vsub.f32 %v323, %v1036
        %1038 = vmatprep.subr.mxu0 %v1037
        %v1039 = vand.u32 %v322, 4294901760
        %v1040 = vsub.f32 %v322, %v1039
        %1041 = vmatpush1.msra.mxu0 %v1040
        %v1042 = vand.u32 %v325, 4294901760
        %v1043 = vsub.f32 %v325, %v1042
        %1044 = vmatprep.subr.mxu0 %v1043
        %v1045 = vand.u32 %v324, 4294901760
        %v1046 = vsub.f32 %v324, %v1045
        %1047 = vmatpush1.msra.mxu0 %v1046
        %v1048 = vand.u32 %v327, 4294901760
        %v1049 = vsub.f32 %v327, %v1048
        %1050 = vmatprep.subr.mxu0 %v1049
        %v1051 = vand.u32 %v326, 4294901760
        %v1052 = vsub.f32 %v326, %v1051
        %1053 = vmatpush1.msra.mxu0 %v1052
        %v1054 = vand.u32 %v329, 4294901760
        %v1055 = vsub.f32 %v329, %v1054
        %1056 = vmatprep.subr.mxu0 %v1055
        %v1057 = vand.u32 %v328, 4294901760
        %v1058 = vsub.f32 %v328, %v1057
        %1059 = vmatpush1.msra.mxu0 %v1058
        %v1060 = vand.u32 %v331, 4294901760
        %v1061 = vsub.f32 %v331, %v1060
        %1062 = vmatprep.subr.mxu0 %v1061
        %v1063 = vand.u32 %v330, 4294901760
        %v1064 = vsub.f32 %v330, %v1063
        %1065 = vmatpush1.msra.mxu0 %v1064
        %v1066 = vand.u32 %v333, 4294901760
        %v1067 = vsub.f32 %v333, %v1066
        %1068 = vmatprep.subr.mxu0 %v1067
        %v1069 = vand.u32 %v332, 4294901760
        %v1070 = vsub.f32 %v332, %v1069
        %1071 = vmatpush1.msra.mxu0 %v1070
        %v1072 = vand.u32 %v335, 4294901760
        %v1073 = vsub.f32 %v335, %v1072
        %1074 = vmatprep.subr.mxu0 %v1073
        %v1075 = vand.u32 %v334, 4294901760
        %v1076 = vsub.f32 %v334, %v1075
        %1077 = vmatpush1.msra.mxu0 %v1076
        %v1078 = vand.u32 %v337, 4294901760
        %v1079 = vsub.f32 %v337, %v1078
        %1080 = vmatprep.subr.mxu0 %v1079
        %v1081 = vand.u32 %v336, 4294901760
        %v1082 = vsub.f32 %v336, %v1081
        %1083 = vmatpush1.msra.mxu0 %v1082
        %v1084 = vand.u32 %v339, 4294901760
        %v1085 = vsub.f32 %v339, %v1084
        %1086 = vmatprep.subr.mxu0 %v1085
        %v1087 = vand.u32 %v338, 4294901760
        %v1088 = vsub.f32 %v338, %v1087
        %1089 = vmatpush1.msra.mxu0 %v1088
        %v1090 = vand.u32 %v341, 4294901760
        %v1091 = vsub.f32 %v341, %v1090
        %1092 = vmatprep.subr.mxu0 %v1091
        %v1093 = vand.u32 %v340, 4294901760
        %v1094 = vsub.f32 %v340, %v1093
        %1095 = vmatpush1.msra.mxu0 %v1094
        %v1096 = vand.u32 %v343, 4294901760
        %v1097 = vsub.f32 %v343, %v1096
        %1098 = vmatprep.subr.mxu0 %v1097
        %v1099 = vand.u32 %v342, 4294901760
        %v1100 = vsub.f32 %v342, %v1099
        %1101 = vmatpush1.msra.mxu0 %v1100
        %v1102 = vand.u32 %v345, 4294901760
        %v1103 = vsub.f32 %v345, %v1102
        %1104 = vmatprep.subr.mxu0 %v1103
        %v1105 = vand.u32 %v344, 4294901760
        %v1106 = vsub.f32 %v344, %v1105
        %1107 = vmatpush1.msra.mxu0 %v1106
        %v1108 = vand.u32 %v347, 4294901760
        %v1109 = vsub.f32 %v347, %v1108
        %1110 = vmatprep.subr.mxu0 %v1109
        %v1111 = vand.u32 %v346, 4294901760
        %v1112 = vsub.f32 %v346, %v1111
        %1113 = vmatpush1.msra.mxu0 %v1112
        %v1114 = vand.u32 %v349, 4294901760
        %v1115 = vsub.f32 %v349, %v1114
        %1116 = vmatprep.subr.mxu0 %v1115
        %v1117 = vand.u32 %v348, 4294901760
        %v1118 = vsub.f32 %v348, %v1117
        %1119 = vmatpush1.msra.mxu0 %v1118
        %v1120 = vand.u32 %v351, 4294901760
        %v1121 = vsub.f32 %v351, %v1120
        %1122 = vmatprep.subr.mxu0 %v1121
        %v1123 = vand.u32 %v350, 4294901760
        %v1124 = vsub.f32 %v350, %v1123
        %1125 = vmatpush1.msra.mxu0 %v1124
        %v1126 = vand.u32 %v353, 4294901760
        %v1127 = vsub.f32 %v353, %v1126
        %1128 = vmatprep.subr.mxu0 %v1127
        %v1129 = vand.u32 %v352, 4294901760
        %v1130 = vsub.f32 %v352, %v1129
        %1131 = vmatpush1.msra.mxu0 %v1130
        %v1132 = vand.u32 %v355, 4294901760
        %v1133 = vsub.f32 %v355, %v1132
        %1134 = vmatprep.subr.mxu0 %v1133
        %v1135 = vand.u32 %v354, 4294901760
        %v1136 = vsub.f32 %v354, %v1135
        %1137 = vmatpush1.msra.mxu0 %v1136
        %v1138 = vand.u32 %v357, 4294901760
        %v1139 = vsub.f32 %v357, %v1138
        %1140 = vmatprep.subr.mxu0 %v1139
        %v1141 = vand.u32 %v356, 4294901760
        %v1142 = vsub.f32 %v356, %v1141
        %1143 = vmatpush1.msra.mxu0 %v1142
        %v1144 = vand.u32 %v359, 4294901760
        %v1145 = vsub.f32 %v359, %v1144
        %1146 = vmatprep.subr.mxu0 %v1145
        %v1147 = vand.u32 %v358, 4294901760
        %v1148 = vsub.f32 %v358, %v1147
        %1149 = vmatpush1.msra.mxu0 %v1148
        %v1150 = vand.u32 %v361, 4294901760
        %v1151 = vsub.f32 %v361, %v1150
        %1152 = vmatprep.subr.mxu0 %v1151
        %v1153 = vand.u32 %v360, 4294901760
        %v1154 = vsub.f32 %v360, %v1153
        %1155 = vmatpush1.msra.mxu0 %v1154
        %v1156 = vand.u32 %v363, 4294901760
        %v1157 = vsub.f32 %v363, %v1156
        %1158 = vmatprep.subr.mxu0 %v1157
        %v1159 = vand.u32 %v362, 4294901760
        %v1160 = vsub.f32 %v362, %v1159
        %1161 = vmatpush1.msra.mxu0 %v1160
        %v1162 = vand.u32 %v365, 4294901760
        %v1163 = vsub.f32 %v365, %v1162
        %1164 = vmatprep.subr.mxu0 %v1163
        %v1165 = vand.u32 %v364, 4294901760
        %v1166 = vsub.f32 %v364, %v1165
        %1167 = vmatpush1.msra.mxu0 %v1166
        %v1168 = vand.u32 %v295, 4294901760
        %v1169 = vsub.f32 %v295, %v1168
        %1170 = vmatprep.mubr.f32.mxu0 %v1169
        %v1171 = vand.u32 %v294, 4294901760
        %v1172 = vsub.f32 %v294, %v1171
        %1173 = vmatmul.mubr.f32.gmra.mrb[0].mxu0 %v1172
        %v1174 = vpop.f32.mrb[0].mxu0
        %v1175 = vadd.f32 %v948, %v1174
        %v1176 = vpop.f32.mrb[0].mxu0
        %v1177 = vadd.f32 %v950, %v1176
        %v1178 = vand.u32 %v297, 4294901760
        %v1179 = vsub.f32 %v297, %v1178
        %1180 = vmatprep.mubr.f32.mxu0 %v1179
        %v1181 = vand.u32 %v296, 4294901760
        %v1182 = vsub.f32 %v296, %v1181
        %1183 = vmatmul.mubr.f32.gmra.mrb[0].mxu0 %v1182
        %v1184 = vpop.f32.mrb[0].mxu0
        %v1185 = vadd.f32 %v956, %v1184
        %v1186 = vpop.f32.mrb[0].mxu0
        %v1187 = vadd.f32 %v958, %v1186
        %v1188 = vand.u32 %v299, 4294901760
        %v1189 = vsub.f32 %v299, %v1188
        %1190 = vmatprep.mubr.f32.mxu0 %v1189
        %v1191 = vand.u32 %v298, 4294901760
        %v1192 = vsub.f32 %v298, %v1191
        %1193 = vmatmul.mubr.f32.gmra.mrb[0].mxu0 %v1192
        %v1194 = vpop.f32.mrb[0].mxu0
        %v1195 = vadd.f32 %v964, %v1194
        %v1196 = vpop.f32.mrb[0].mxu0
        %v1197 = vadd.f32 %v966, %v1196
        %v1198 = vand.u32 %v301, 4294901760
        %v1199 = vsub.f32 %v301, %v1198
        %1200 = vmatprep.mubr.f32.mxu0 %v1199
        %v1201 = vand.u32 %v300, 4294901760
        %v1202 = vsub.f32 %v300, %v1201
        %1203 = vmatmul.mubr.f32.gmra.mrb[0].mxu0 %v1202
        %v1204 = vpop.f32.mrb[0].mxu0
        %v1205 = vadd.f32 %v972, %v1204
        %v1206 = vpop.f32.mrb[0].mxu0
        %v1207 = vadd.f32 %v974, %v1206
        %1208 = vdwg.mxu0
        %v1209 = vand.u32 %v303, 4294901760
        %1210 = vmatprep.subr.mxu0 %v1209
        %v1211 = vand.u32 %v302, 4294901760
        %1212 = vmatpush1.msra.mxu0 %v1211
        %v1213 = vand.u32 %v305, 4294901760
        %1214 = vmatprep.subr.mxu0 %v1213
        %v1215 = vand.u32 %v304, 4294901760
        %1216 = vmatpush1.msra.mxu0 %v1215
        %v1217 = vand.u32 %v307, 4294901760
        %1218 = vmatprep.subr.mxu0 %v1217
        %v1219 = vand.u32 %v306, 4294901760
        %1220 = vmatpush1.msra.mxu0 %v1219
        %v1221 = vand.u32 %v309, 4294901760
        %1222 = vmatprep.subr.mxu0 %v1221
        %v1223 = vand.u32 %v308, 4294901760
        %1224 = vmatpush1.msra.mxu0 %v1223
        %v1225 = vand.u32 %v311, 4294901760
        %1226 = vmatprep.subr.mxu0 %v1225
        %v1227 = vand.u32 %v310, 4294901760
        %1228 = vmatpush1.msra.mxu0 %v1227
        %v1229 = vand.u32 %v313, 4294901760
        %1230 = vmatprep.subr.mxu0 %v1229
        %v1231 = vand.u32 %v312, 4294901760
        %1232 = vmatpush1.msra.mxu0 %v1231
        %v1233 = vand.u32 %v315, 4294901760
        %1234 = vmatprep.subr.mxu0 %v1233
        %v1235 = vand.u32 %v314, 4294901760
        %1236 = vmatpush1.msra.mxu0 %v1235
        %v1237 = vand.u32 %v317, 4294901760
        %1238 = vmatprep.subr.mxu0 %v1237
        %v1239 = vand.u32 %v316, 4294901760
        %1240 = vmatpush1.msra.mxu0 %v1239
        %v1241 = vand.u32 %v319, 4294901760
        %1242 = vmatprep.subr.mxu0 %v1241
        %v1243 = vand.u32 %v318, 4294901760
        %1244 = vmatpush1.msra.mxu0 %v1243
        %v1245 = vand.u32 %v321, 4294901760
        %1246 = vmatprep.subr.mxu0 %v1245
        %v1247 = vand.u32 %v320, 4294901760
        %1248 = vmatpush1.msra.mxu0 %v1247
        %v1249 = vand.u32 %v323, 4294901760
        %1250 = vmatprep.subr.mxu0 %v1249
        %v1251 = vand.u32 %v322, 4294901760
        %1252 = vmatpush1.msra.mxu0 %v1251
        %v1253 = vand.u32 %v325, 4294901760
        %1254 = vmatprep.subr.mxu0 %v1253
        %v1255 = vand.u32 %v324, 4294901760
        %1256 = vmatpush1.msra.mxu0 %v1255
        %v1257 = vand.u32 %v327, 4294901760
        %1258 = vmatprep.subr.mxu0 %v1257
        %v1259 = vand.u32 %v326, 4294901760
        %1260 = vmatpush1.msra.mxu0 %v1259
        %v1261 = vand.u32 %v329, 4294901760
        %1262 = vmatprep.subr.mxu0 %v1261
        %v1263 = vand.u32 %v328, 4294901760
        %1264 = vmatpush1.msra.mxu0 %v1263
        %v1265 = vand.u32 %v331, 4294901760
        %1266 = vmatprep.subr.mxu0 %v1265
        %v1267 = vand.u32 %v330, 4294901760
        %1268 = vmatpush1.msra.mxu0 %v1267
        %v1269 = vand.u32 %v333, 4294901760
        %1270 = vmatprep.subr.mxu0 %v1269
        %v1271 = vand.u32 %v332, 4294901760
        %1272 = vmatpush1.msra.mxu0 %v1271
        %v1273 = vand.u32 %v335, 4294901760
        %1274 = vmatprep.subr.mxu0 %v1273
        %v1275 = vand.u32 %v334, 4294901760
        %1276 = vmatpush1.msra.mxu0 %v1275
        %v1277 = vand.u32 %v337, 4294901760
        %1278 = vmatprep.subr.mxu0 %v1277
        %v1279 = vand.u32 %v336, 4294901760
        %1280 = vmatpush1.msra.mxu0 %v1279
        %v1281 = vand.u32 %v339, 4294901760
        %1282 = vmatprep.subr.mxu0 %v1281
        %v1283 = vand.u32 %v338, 4294901760
        %1284 = vmatpush1.msra.mxu0 %v1283
        %v1285 = vand.u32 %v341, 4294901760
        %1286 = vmatprep.subr.mxu0 %v1285
        %v1287 = vand.u32 %v340, 4294901760
        %1288 = vmatpush1.msra.mxu0 %v1287
        %v1289 = vand.u32 %v343, 4294901760
        %1290 = vmatprep.subr.mxu0 %v1289
        %v1291 = vand.u32 %v342, 4294901760
        %1292 = vmatpush1.msra.mxu0 %v1291
        %v1293 = vand.u32 %v345, 4294901760
        %1294 = vmatprep.subr.mxu0 %v1293
        %v1295 = vand.u32 %v344, 4294901760
        %1296 = vmatpush1.msra.mxu0 %v1295
        %v1297 = vand.u32 %v347, 4294901760
        %1298 = vmatprep.subr.mxu0 %v1297
        %v1299 = vand.u32 %v346, 4294901760
        %1300 = vmatpush1.msra.mxu0 %v1299
        %v1301 = vand.u32 %v349, 4294901760
        %1302 = vmatprep.subr.mxu0 %v1301
        %v1303 = vand.u32 %v348, 4294901760
        %1304 = vmatpush1.msra.mxu0 %v1303
        %v1305 = vand.u32 %v351, 4294901760
        %1306 = vmatprep.subr.mxu0 %v1305
        %v1307 = vand.u32 %v350, 4294901760
        %1308 = vmatpush1.msra.mxu0 %v1307
        %v1309 = vand.u32 %v353, 4294901760
        %1310 = vmatprep.subr.mxu0 %v1309
        %v1311 = vand.u32 %v352, 4294901760
        %1312 = vmatpush1.msra.mxu0 %v1311
        %v1313 = vand.u32 %v355, 4294901760
        %1314 = vmatprep.subr.mxu0 %v1313
        %v1315 = vand.u32 %v354, 4294901760
        %1316 = vmatpush1.msra.mxu0 %v1315
        %v1317 = vand.u32 %v357, 4294901760
        %1318 = vmatprep.subr.mxu0 %v1317
        %v1319 = vand.u32 %v356, 4294901760
        %1320 = vmatpush1.msra.mxu0 %v1319
        %v1321 = vand.u32 %v359, 4294901760
        %1322 = vmatprep.subr.mxu0 %v1321
        %v1323 = vand.u32 %v358, 4294901760
        %1324 = vmatpush1.msra.mxu0 %v1323
        %v1325 = vand.u32 %v361, 4294901760
        %1326 = vmatprep.subr.mxu0 %v1325
        %v1327 = vand.u32 %v360, 4294901760
        %1328 = vmatpush1.msra.mxu0 %v1327
        %v1329 = vand.u32 %v363, 4294901760
        %1330 = vmatprep.subr.mxu0 %v1329
        %v1331 = vand.u32 %v362, 4294901760
        %1332 = vmatpush1.msra.mxu0 %v1331
        %v1333 = vand.u32 %v365, 4294901760
        %1334 = vmatprep.subr.mxu0 %v1333
        %v1335 = vand.u32 %v364, 4294901760
        %1336 = vmatpush1.msra.mxu0 %v1335
        %v1337 = vand.u32 %v295, 4294901760
        %v1338 = vsub.f32 %v295, %v1337
        %v1339 = vand.u32 %v1338, 4294901760
        %1340 = vmatprep.mubr.f32.mxu0 %v1339
        %v1341 = vand.u32 %v294, 4294901760
        %v1342 = vsub.f32 %v294, %v1341
        %v1343 = vand.u32 %v1342, 4294901760
        %1344 = vmatmul.mubr.f32.gmra.mrb[0].mxu0 %v1343
        %v1345 = vpop.f32.mrb[0].mxu0
        %v1346 = vadd.f32 %v1175, %v1345
        %v1347 = vpop.f32.mrb[0].mxu0
        %v1348 = vadd.f32 %v1177, %v1347
        %v1349 = vand.u32 %v297, 4294901760
        %v1350 = vsub.f32 %v297, %v1349
        %v1351 = vand.u32 %v1350, 4294901760
        %1352 = vmatprep.mubr.f32.mxu0 %v1351
        %v1353 = vand.u32 %v296, 4294901760
        %v1354 = vsub.f32 %v296, %v1353
        %v1355 = vand.u32 %v1354, 4294901760
        %1356 = vmatmul.mubr.f32.gmra.mrb[0].mxu0 %v1355
        %v1357 = vpop.f32.mrb[0].mxu0
        %v1358 = vadd.f32 %v1185, %v1357
        %v1359 = vpop.f32.mrb[0].mxu0
        %v1360 = vadd.f32 %v1187, %v1359
        %v1361 = vand.u32 %v299, 4294901760
        %v1362 = vsub.f32 %v299, %v1361
        %v1363 = vand.u32 %v1362, 4294901760
        %1364 = vmatprep.mubr.f32.mxu0 %v1363
        %v1365 = vand.u32 %v298, 4294901760
        %v1366 = vsub.f32 %v298, %v1365
        %v1367 = vand.u32 %v1366, 4294901760
        %1368 = vmatmul.mubr.f32.gmra.mrb[0].mxu0 %v1367
        %v1369 = vpop.f32.mrb[0].mxu0
        %v1370 = vadd.f32 %v1195, %v1369
        %v1371 = vpop.f32.mrb[0].mxu0
        %v1372 = vadd.f32 %v1197, %v1371
        %v1373 = vand.u32 %v301, 4294901760
        %v1374 = vsub.f32 %v301, %v1373
        %v1375 = vand.u32 %v1374, 4294901760
        %1376 = vmatprep.mubr.f32.mxu0 %v1375
        %v1377 = vand.u32 %v300, 4294901760
        %v1378 = vsub.f32 %v300, %v1377
        %v1379 = vand.u32 %v1378, 4294901760
        %1380 = vmatmul.mubr.f32.gmra.mrb[0].mxu0 %v1379
        %v1381 = vpop.f32.mrb[0].mxu0
        %v1382 = vadd.f32 %v1205, %v1381
        %v1383 = vpop.f32.mrb[0].mxu0
        %v1384 = vadd.f32 %v1207, %v1383
        %1385 = vdwg.mxu0
        %v1386 = vand.u32 %v303, 4294901760
        %v1387 = vsub.f32 %v303, %v1386
        %v1388 = vand.u32 %v1387, 4294901760
        %1389 = vmatprep.subr.mxu0 %v1388
        %v1390 = vand.u32 %v302, 4294901760
        %v1391 = vsub.f32 %v302, %v1390
        %v1392 = vand.u32 %v1391, 4294901760
        %1393 = vmatpush1.msra.mxu0 %v1392
        %v1394 = vand.u32 %v305, 4294901760
        %v1395 = vsub.f32 %v305, %v1394
        %v1396 = vand.u32 %v1395, 4294901760
        %1397 = vmatprep.subr.mxu0 %v1396
        %v1398 = vand.u32 %v304, 4294901760
        %v1399 = vsub.f32 %v304, %v1398
        %v1400 = vand.u32 %v1399, 4294901760
        %1401 = vmatpush1.msra.mxu0 %v1400
        %v1402 = vand.u32 %v307, 4294901760
        %v1403 = vsub.f32 %v307, %v1402
        %v1404 = vand.u32 %v1403, 4294901760
        %1405 = vmatprep.subr.mxu0 %v1404
        %v1406 = vand.u32 %v306, 4294901760
        %v1407 = vsub.f32 %v306, %v1406
        %v1408 = vand.u32 %v1407, 4294901760
        %1409 = vmatpush1.msra.mxu0 %v1408
        %v1410 = vand.u32 %v309, 4294901760
        %v1411 = vsub.f32 %v309, %v1410
        %v1412 = vand.u32 %v1411, 4294901760
        %1413 = vmatprep.subr.mxu0 %v1412
        %v1414 = vand.u32 %v308, 4294901760
        %v1415 = vsub.f32 %v308, %v1414
        %v1416 = vand.u32 %v1415, 4294901760
        %1417 = vmatpush1.msra.mxu0 %v1416
        %v1418 = vand.u32 %v311, 4294901760
        %v1419 = vsub.f32 %v311, %v1418
        %v1420 = vand.u32 %v1419, 4294901760
        %1421 = vmatprep.subr.mxu0 %v1420
        %v1422 = vand.u32 %v310, 4294901760
        %v1423 = vsub.f32 %v310, %v1422
        %v1424 = vand.u32 %v1423, 4294901760
        %1425 = vmatpush1.msra.mxu0 %v1424
        %v1426 = vand.u32 %v313, 4294901760
        %v1427 = vsub.f32 %v313, %v1426
        %v1428 = vand.u32 %v1427, 4294901760
        %1429 = vmatprep.subr.mxu0 %v1428
        %v1430 = vand.u32 %v312, 4294901760
        %v1431 = vsub.f32 %v312, %v1430
        %v1432 = vand.u32 %v1431, 4294901760
        %1433 = vmatpush1.msra.mxu0 %v1432
        %v1434 = vand.u32 %v315, 4294901760
        %v1435 = vsub.f32 %v315, %v1434
        %v1436 = vand.u32 %v1435, 4294901760
        %1437 = vmatprep.subr.mxu0 %v1436
        %v1438 = vand.u32 %v314, 4294901760
        %v1439 = vsub.f32 %v314, %v1438
        %v1440 = vand.u32 %v1439, 4294901760
        %1441 = vmatpush1.msra.mxu0 %v1440
        %v1442 = vand.u32 %v317, 4294901760
        %v1443 = vsub.f32 %v317, %v1442
        %v1444 = vand.u32 %v1443, 4294901760
        %1445 = vmatprep.subr.mxu0 %v1444
        %v1446 = vand.u32 %v316, 4294901760
        %v1447 = vsub.f32 %v316, %v1446
        %v1448 = vand.u32 %v1447, 4294901760
        %1449 = vmatpush1.msra.mxu0 %v1448
        %v1450 = vand.u32 %v319, 4294901760
        %v1451 = vsub.f32 %v319, %v1450
        %v1452 = vand.u32 %v1451, 4294901760
        %1453 = vmatprep.subr.mxu0 %v1452
        %v1454 = vand.u32 %v318, 4294901760
        %v1455 = vsub.f32 %v318, %v1454
        %v1456 = vand.u32 %v1455, 4294901760
        %1457 = vmatpush1.msra.mxu0 %v1456
        %v1458 = vand.u32 %v321, 4294901760
        %v1459 = vsub.f32 %v321, %v1458
        %v1460 = vand.u32 %v1459, 4294901760
        %1461 = vmatprep.subr.mxu0 %v1460
        %v1462 = vand.u32 %v320, 4294901760
        %v1463 = vsub.f32 %v320, %v1462
        %v1464 = vand.u32 %v1463, 4294901760
        %1465 = vmatpush1.msra.mxu0 %v1464
        %v1466 = vand.u32 %v323, 4294901760
        %v1467 = vsub.f32 %v323, %v1466
        %v1468 = vand.u32 %v1467, 4294901760
        %1469 = vmatprep.subr.mxu0 %v1468
        %v1470 = vand.u32 %v322, 4294901760
        %v1471 = vsub.f32 %v322, %v1470
        %v1472 = vand.u32 %v1471, 4294901760
        %1473 = vmatpush1.msra.mxu0 %v1472
        %v1474 = vand.u32 %v325, 4294901760
        %v1475 = vsub.f32 %v325, %v1474
        %v1476 = vand.u32 %v1475, 4294901760
        %1477 = vmatprep.subr.mxu0 %v1476
        %v1478 = vand.u32 %v324, 4294901760
        %v1479 = vsub.f32 %v324, %v1478
        %v1480 = vand.u32 %v1479, 4294901760
        %1481 = vmatpush1.msra.mxu0 %v1480
        %v1482 = vand.u32 %v327, 4294901760
        %v1483 = vsub.f32 %v327, %v1482
        %v1484 = vand.u32 %v1483, 4294901760
        %1485 = vmatprep.subr.mxu0 %v1484
        %v1486 = vand.u32 %v326, 4294901760
        %v1487 = vsub.f32 %v326, %v1486
        %v1488 = vand.u32 %v1487, 4294901760
        %1489 = vmatpush1.msra.mxu0 %v1488
        %v1490 = vand.u32 %v329, 4294901760
        %v1491 = vsub.f32 %v329, %v1490
        %v1492 = vand.u32 %v1491, 4294901760
        %1493 = vmatprep.subr.mxu0 %v1492
        %v1494 = vand.u32 %v328, 4294901760
        %v1495 = vsub.f32 %v328, %v1494
        %v1496 = vand.u32 %v1495, 4294901760
        %1497 = vmatpush1.msra.mxu0 %v1496
        %v1498 = vand.u32 %v331, 4294901760
        %v1499 = vsub.f32 %v331, %v1498
        %v1500 = vand.u32 %v1499, 4294901760
        %1501 = vmatprep.subr.mxu0 %v1500
        %v1502 = vand.u32 %v330, 4294901760
        %v1503 = vsub.f32 %v330, %v1502
        %v1504 = vand.u32 %v1503, 4294901760
        %1505 = vmatpush1.msra.mxu0 %v1504
        %v1506 = vand.u32 %v333, 4294901760
        %v1507 = vsub.f32 %v333, %v1506
        %v1508 = vand.u32 %v1507, 4294901760
        %1509 = vmatprep.subr.mxu0 %v1508
        %v1510 = vand.u32 %v332, 4294901760
        %v1511 = vsub.f32 %v332, %v1510
        %v1512 = vand.u32 %v1511, 4294901760
        %1513 = vmatpush1.msra.mxu0 %v1512
        %v1514 = vand.u32 %v335, 4294901760
        %v1515 = vsub.f32 %v335, %v1514
        %v1516 = vand.u32 %v1515, 4294901760
        %1517 = vmatprep.subr.mxu0 %v1516
        %v1518 = vand.u32 %v334, 4294901760
        %v1519 = vsub.f32 %v334, %v1518
        %v1520 = vand.u32 %v1519, 4294901760
        %1521 = vmatpush1.msra.mxu0 %v1520
        %v1522 = vand.u32 %v337, 4294901760
        %v1523 = vsub.f32 %v337, %v1522
        %v1524 = vand.u32 %v1523, 4294901760
        %1525 = vmatprep.subr.mxu0 %v1524
        %v1526 = vand.u32 %v336, 4294901760
        %v1527 = vsub.f32 %v336, %v1526
        %v1528 = vand.u32 %v1527, 4294901760
        %1529 = vmatpush1.msra.mxu0 %v1528
        %v1530 = vand.u32 %v339, 4294901760
        %v1531 = vsub.f32 %v339, %v1530
        %v1532 = vand.u32 %v1531, 4294901760
        %1533 = vmatprep.subr.mxu0 %v1532
        %v1534 = vand.u32 %v338, 4294901760
        %v1535 = vsub.f32 %v338, %v1534
        %v1536 = vand.u32 %v1535, 4294901760
        %1537 = vmatpush1.msra.mxu0 %v1536
        %v1538 = vand.u32 %v341, 4294901760
        %v1539 = vsub.f32 %v341, %v1538
        %v1540 = vand.u32 %v1539, 4294901760
        %1541 = vmatprep.subr.mxu0 %v1540
        %v1542 = vand.u32 %v340, 4294901760
        %v1543 = vsub.f32 %v340, %v1542
        %v1544 = vand.u32 %v1543, 4294901760
        %1545 = vmatpush1.msra.mxu0 %v1544
        %v1546 = vand.u32 %v343, 4294901760
        %v1547 = vsub.f32 %v343, %v1546
        %v1548 = vand.u32 %v1547, 4294901760
        %1549 = vmatprep.subr.mxu0 %v1548
        %v1550 = vand.u32 %v342, 4294901760
        %v1551 = vsub.f32 %v342, %v1550
        %v1552 = vand.u32 %v1551, 4294901760
        %1553 = vmatpush1.msra.mxu0 %v1552
        %v1554 = vand.u32 %v345, 4294901760
        %v1555 = vsub.f32 %v345, %v1554
        %v1556 = vand.u32 %v1555, 4294901760
        %1557 = vmatprep.subr.mxu0 %v1556
        %v1558 = vand.u32 %v344, 4294901760
        %v1559 = vsub.f32 %v344, %v1558
        %v1560 = vand.u32 %v1559, 4294901760
        %1561 = vmatpush1.msra.mxu0 %v1560
        %v1562 = vand.u32 %v347, 4294901760
        %v1563 = vsub.f32 %v347, %v1562
        %v1564 = vand.u32 %v1563, 4294901760
        %1565 = vmatprep.subr.mxu0 %v1564
        %v1566 = vand.u32 %v346, 4294901760
        %v1567 = vsub.f32 %v346, %v1566
        %v1568 = vand.u32 %v1567, 4294901760
        %1569 = vmatpush1.msra.mxu0 %v1568
        %v1570 = vand.u32 %v349, 4294901760
        %v1571 = vsub.f32 %v349, %v1570
        %v1572 = vand.u32 %v1571, 4294901760
        %1573 = vmatprep.subr.mxu0 %v1572
        %v1574 = vand.u32 %v348, 4294901760
        %v1575 = vsub.f32 %v348, %v1574
        %v1576 = vand.u32 %v1575, 4294901760
        %1577 = vmatpush1.msra.mxu0 %v1576
        %v1578 = vand.u32 %v351, 4294901760
        %v1579 = vsub.f32 %v351, %v1578
        %v1580 = vand.u32 %v1579, 4294901760
        %1581 = vmatprep.subr.mxu0 %v1580
        %v1582 = vand.u32 %v350, 4294901760
        %v1583 = vsub.f32 %v350, %v1582
        %v1584 = vand.u32 %v1583, 4294901760
        %1585 = vmatpush1.msra.mxu0 %v1584
        %v1586 = vand.u32 %v353, 4294901760
        %v1587 = vsub.f32 %v353, %v1586
        %v1588 = vand.u32 %v1587, 4294901760
        %1589 = vmatprep.subr.mxu0 %v1588
        %v1590 = vand.u32 %v352, 4294901760
        %v1591 = vsub.f32 %v352, %v1590
        %v1592 = vand.u32 %v1591, 4294901760
        %1593 = vmatpush1.msra.mxu0 %v1592
        %v1594 = vand.u32 %v355, 4294901760
        %v1595 = vsub.f32 %v355, %v1594
        %v1596 = vand.u32 %v1595, 4294901760
        %1597 = vmatprep.subr.mxu0 %v1596
        %v1598 = vand.u32 %v354, 4294901760
        %v1599 = vsub.f32 %v354, %v1598
        %v1600 = vand.u32 %v1599, 4294901760
        %1601 = vmatpush1.msra.mxu0 %v1600
        %v1602 = vand.u32 %v357, 4294901760
        %v1603 = vsub.f32 %v357, %v1602
        %v1604 = vand.u32 %v1603, 4294901760
        %1605 = vmatprep.subr.mxu0 %v1604
        %v1606 = vand.u32 %v356, 4294901760
        %v1607 = vsub.f32 %v356, %v1606
        %v1608 = vand.u32 %v1607, 4294901760
        %1609 = vmatpush1.msra.mxu0 %v1608
        %v1610 = vand.u32 %v359, 4294901760
        %v1611 = vsub.f32 %v359, %v1610
        %v1612 = vand.u32 %v1611, 4294901760
        %1613 = vmatprep.subr.mxu0 %v1612
        %v1614 = vand.u32 %v358, 4294901760
        %v1615 = vsub.f32 %v358, %v1614
        %v1616 = vand.u32 %v1615, 4294901760
        %1617 = vmatpush1.msra.mxu0 %v1616
        %v1618 = vand.u32 %v361, 4294901760
        %v1619 = vsub.f32 %v361, %v1618
        %v1620 = vand.u32 %v1619, 4294901760
        %1621 = vmatprep.subr.mxu0 %v1620
        %v1622 = vand.u32 %v360, 4294901760
        %v1623 = vsub.f32 %v360, %v1622
        %v1624 = vand.u32 %v1623, 4294901760
        %1625 = vmatpush1.msra.mxu0 %v1624
        %v1626 = vand.u32 %v363, 4294901760
        %v1627 = vsub.f32 %v363, %v1626
        %v1628 = vand.u32 %v1627, 4294901760
        %1629 = vmatprep.subr.mxu0 %v1628
        %v1630 = vand.u32 %v362, 4294901760
        %v1631 = vsub.f32 %v362, %v1630
        %v1632 = vand.u32 %v1631, 4294901760
        %1633 = vmatpush1.msra.mxu0 %v1632
        %v1634 = vand.u32 %v365, 4294901760
        %v1635 = vsub.f32 %v365, %v1634
        %v1636 = vand.u32 %v1635, 4294901760
        %1637 = vmatprep.subr.mxu0 %v1636
        %v1638 = vand.u32 %v364, 4294901760
        %v1639 = vsub.f32 %v364, %v1638
        %v1640 = vand.u32 %v1639, 4294901760
        %1641 = vmatpush1.msra.mxu0 %v1640
        %v1642 = vand.u32 %v295, 4294901760
        %1643 = vmatprep.mubr.f32.mxu0 %v1642
        %v1644 = vand.u32 %v294, 4294901760
        %1645 = vmatmul.mubr.f32.gmra.mrb[0].mxu0 %v1644
        %v1646 = vpop.f32.mrb[0].mxu0
        %v1647 = vadd.f32 %v1346, %v1646
        %v1648 = vpop.f32.mrb[0].mxu0
        %v1649 = vadd.f32 %v1348, %v1648
        %v1650 = vand.u32 %v297, 4294901760
        %1651 = vmatprep.mubr.f32.mxu0 %v1650
        %v1652 = vand.u32 %v296, 4294901760
        %1653 = vmatmul.mubr.f32.gmra.mrb[0].mxu0 %v1652
        %v1654 = vpop.f32.mrb[0].mxu0
        %v1655 = vadd.f32 %v1358, %v1654
        %v1656 = vpop.f32.mrb[0].mxu0
        %v1657 = vadd.f32 %v1360, %v1656
        %v1658 = vand.u32 %v299, 4294901760
        %1659 = vmatprep.mubr.f32.mxu0 %v1658
        %v1660 = vand.u32 %v298, 4294901760
        %1661 = vmatmul.mubr.f32.gmra.mrb[0].mxu0 %v1660
        %v1662 = vpop.f32.mrb[0].mxu0
        %v1663 = vadd.f32 %v1370, %v1662
        %v1664 = vpop.f32.mrb[0].mxu0
        %v1665 = vadd.f32 %v1372, %v1664
        %v1666 = vand.u32 %v301, 4294901760
        %1667 = vmatprep.mubr.f32.mxu0 %v1666
        %v1668 = vand.u32 %v300, 4294901760
        %1669 = vmatmul.mubr.f32.gmra.mrb[0].mxu0 %v1668
        %v1670 = vpop.f32.mrb[0].mxu0
        %v1671 = vadd.f32 %v1382, %v1670
        %v1672 = vpop.f32.mrb[0].mxu0
        %v1673 = vadd.f32 %v1384, %v1672
        %1674 = vdwg.mxu0
        %v1675 = vand.u32 %v303, 4294901760
        %1676 = vmatprep.subr.mxu0 %v1675
        %v1677 = vand.u32 %v302, 4294901760
        %1678 = vmatpush1.msra.mxu0 %v1677
        %v1679 = vand.u32 %v305, 4294901760
        %1680 = vmatprep.subr.mxu0 %v1679
        %v1681 = vand.u32 %v304, 4294901760
        %1682 = vmatpush1.msra.mxu0 %v1681
        %v1683 = vand.u32 %v307, 4294901760
        %1684 = vmatprep.subr.mxu0 %v1683
        %v1685 = vand.u32 %v306, 4294901760
        %1686 = vmatpush1.msra.mxu0 %v1685
        %v1687 = vand.u32 %v309, 4294901760
        %1688 = vmatprep.subr.mxu0 %v1687
        %v1689 = vand.u32 %v308, 4294901760
        %1690 = vmatpush1.msra.mxu0 %v1689
        %v1691 = vand.u32 %v311, 4294901760
        %1692 = vmatprep.subr.mxu0 %v1691
        %v1693 = vand.u32 %v310, 4294901760
        %1694 = vmatpush1.msra.mxu0 %v1693
        %v1695 = vand.u32 %v313, 4294901760
        %1696 = vmatprep.subr.mxu0 %v1695
        %v1697 = vand.u32 %v312, 4294901760
        %1698 = vmatpush1.msra.mxu0 %v1697
        %v1699 = vand.u32 %v315, 4294901760
        %1700 = vmatprep.subr.mxu0 %v1699
        %v1701 = vand.u32 %v314, 4294901760
        %1702 = vmatpush1.msra.mxu0 %v1701
        %v1703 = vand.u32 %v317, 4294901760
        %1704 = vmatprep.subr.mxu0 %v1703
        %v1705 = vand.u32 %v316, 4294901760
        %1706 = vmatpush1.msra.mxu0 %v1705
        %v1707 = vand.u32 %v319, 4294901760
        %1708 = vmatprep.subr.mxu0 %v1707
        %v1709 = vand.u32 %v318, 4294901760
        %1710 = vmatpush1.msra.mxu0 %v1709
        %v1711 = vand.u32 %v321, 4294901760
        %1712 = vmatprep.subr.mxu0 %v1711
        %v1713 = vand.u32 %v320, 4294901760
        %1714 = vmatpush1.msra.mxu0 %v1713
        %v1715 = vand.u32 %v323, 4294901760
        %1716 = vmatprep.subr.mxu0 %v1715
        %v1717 = vand.u32 %v322, 4294901760
        %1718 = vmatpush1.msra.mxu0 %v1717
        %v1719 = vand.u32 %v325, 4294901760
        %1720 = vmatprep.subr.mxu0 %v1719
        %v1721 = vand.u32 %v324, 4294901760
        %1722 = vmatpush1.msra.mxu0 %v1721
        %v1723 = vand.u32 %v327, 4294901760
        %1724 = vmatprep.subr.mxu0 %v1723
        %v1725 = vand.u32 %v326, 4294901760
        %1726 = vmatpush1.msra.mxu0 %v1725
        %v1727 = vand.u32 %v329, 4294901760
        %1728 = vmatprep.subr.mxu0 %v1727
        %v1729 = vand.u32 %v328, 4294901760
        %1730 = vmatpush1.msra.mxu0 %v1729
        %v1731 = vand.u32 %v331, 4294901760
        %1732 = vmatprep.subr.mxu0 %v1731
        %v1733 = vand.u32 %v330, 4294901760
        %1734 = vmatpush1.msra.mxu0 %v1733
        %v1735 = vand.u32 %v333, 4294901760
        %1736 = vmatprep.subr.mxu0 %v1735
        %v1737 = vand.u32 %v332, 4294901760
        %1738 = vmatpush1.msra.mxu0 %v1737
        %v1739 = vand.u32 %v335, 4294901760
        %1740 = vmatprep.subr.mxu0 %v1739
        %v1741 = vand.u32 %v334, 4294901760
        %1742 = vmatpush1.msra.mxu0 %v1741
        %v1743 = vand.u32 %v337, 4294901760
        %1744 = vmatprep.subr.mxu0 %v1743
        %v1745 = vand.u32 %v336, 4294901760
        %1746 = vmatpush1.msra.mxu0 %v1745
        %v1747 = vand.u32 %v339, 4294901760
        %1748 = vmatprep.subr.mxu0 %v1747
        %v1749 = vand.u32 %v338, 4294901760
        %1750 = vmatpush1.msra.mxu0 %v1749
        %v1751 = vand.u32 %v341, 4294901760
        %1752 = vmatprep.subr.mxu0 %v1751
        %v1753 = vand.u32 %v340, 4294901760
        %1754 = vmatpush1.msra.mxu0 %v1753
        %v1755 = vand.u32 %v343, 4294901760
        %1756 = vmatprep.subr.mxu0 %v1755
        %v1757 = vand.u32 %v342, 4294901760
        %1758 = vmatpush1.msra.mxu0 %v1757
        %v1759 = vand.u32 %v345, 4294901760
        %1760 = vmatprep.subr.mxu0 %v1759
        %v1761 = vand.u32 %v344, 4294901760
        %1762 = vmatpush1.msra.mxu0 %v1761
        %v1763 = vand.u32 %v347, 4294901760
        %1764 = vmatprep.subr.mxu0 %v1763
        %v1765 = vand.u32 %v346, 4294901760
        %1766 = vmatpush1.msra.mxu0 %v1765
        %v1767 = vand.u32 %v349, 4294901760
        %1768 = vmatprep.subr.mxu0 %v1767
        %v1769 = vand.u32 %v348, 4294901760
        %1770 = vmatpush1.msra.mxu0 %v1769
        %v1771 = vand.u32 %v351, 4294901760
        %1772 = vmatprep.subr.mxu0 %v1771
        %v1773 = vand.u32 %v350, 4294901760
        %1774 = vmatpush1.msra.mxu0 %v1773
        %v1775 = vand.u32 %v353, 4294901760
        %1776 = vmatprep.subr.mxu0 %v1775
        %v1777 = vand.u32 %v352, 4294901760
        %1778 = vmatpush1.msra.mxu0 %v1777
        %v1779 = vand.u32 %v355, 4294901760
        %1780 = vmatprep.subr.mxu0 %v1779
        %v1781 = vand.u32 %v354, 4294901760
        %1782 = vmatpush1.msra.mxu0 %v1781
        %v1783 = vand.u32 %v357, 4294901760
        %1784 = vmatprep.subr.mxu0 %v1783
        %v1785 = vand.u32 %v356, 4294901760
        %1786 = vmatpush1.msra.mxu0 %v1785
        %v1787 = vand.u32 %v359, 4294901760
        %1788 = vmatprep.subr.mxu0 %v1787
        %v1789 = vand.u32 %v358, 4294901760
        %1790 = vmatpush1.msra.mxu0 %v1789
        %v1791 = vand.u32 %v361, 4294901760
        %1792 = vmatprep.subr.mxu0 %v1791
        %v1793 = vand.u32 %v360, 4294901760
        %1794 = vmatpush1.msra.mxu0 %v1793
        %v1795 = vand.u32 %v363, 4294901760
        %1796 = vmatprep.subr.mxu0 %v1795
        %v1797 = vand.u32 %v362, 4294901760
        %1798 = vmatpush1.msra.mxu0 %v1797
        %v1799 = vand.u32 %v365, 4294901760
        %1800 = vmatprep.subr.mxu0 %v1799
        %v1801 = vand.u32 %v364, 4294901760
        %1802 = vmatpush1.msra.mxu0 %v1801
        %v1803 = vand.u32 %v295, 4294901760
        %1804 = vmatprep.mubr.f32.mxu0 %v1803
        %v1805 = vand.u32 %v294, 4294901760
        %1806 = vmatmul.mubr.f32.gmra.mrb[0].mxu0 %v1805
        %v1807 = vpop.f32.mrb[0].mxu0
        %v1808 = vadd.f32 %v1647, %v1807
        %v1809 = vpop.f32.mrb[0].mxu0
        %v1810 = vadd.f32 %v1649, %v1809
        %v1811 = vand.u32 %v297, 4294901760
        %1812 = vmatprep.mubr.f32.mxu0 %v1811
        %v1813 = vand.u32 %v296, 4294901760
        %1814 = vmatmul.mubr.f32.gmra.mrb[0].mxu0 %v1813
        %v1815 = vpop.f32.mrb[0].mxu0
        %v1816 = vadd.f32 %v1655, %v1815
        %v1817 = vpop.f32.mrb[0].mxu0
        %v1818 = vadd.f32 %v1657, %v1817
        %v1819 = vand.u32 %v299, 4294901760
        %1820 = vmatprep.mubr.f32.mxu0 %v1819
        %v1821 = vand.u32 %v298, 4294901760
        %1822 = vmatmul.mubr.f32.gmra.mrb[0].mxu0 %v1821
        %v1823 = vpop.f32.mrb[0].mxu0
        %v1824 = vadd.f32 %v1663, %v1823
        %v1825 = vpop.f32.mrb[0].mxu0
        %v1826 = vadd.f32 %v1665, %v1825
        %v1827 = vand.u32 %v301, 4294901760
        %1828 = vmatprep.mubr.f32.mxu0 %v1827
        %v1829 = vand.u32 %v300, 4294901760
        %1830 = vmatmul.mubr.f32.gmra.mrb[0].mxu0 %v1829
        %v1831 = vpop.f32.mrb[0].mxu0
        %v1832 = vadd.f32 %v1671, %v1831
        %v1833 = vpop.f32.mrb[0].mxu0
        %v1834 = vadd.f32 %v1673, %v1833
        %1835 = vdwg.mxu0
        %v1836 = vld [vmem:[%s2] sm:$0xff]
        %v1837 = vld [vmem:[%s2 + $0x8] sm:$0xff]
        %v1838 = vld [vmem:[%s2 + $0x10] sm:$0xff]
        %v1839 = vld [vmem:[%s2 + $0x18] sm:$0xff]
        %v1840 = vld [vmem:[%s2 + $0x20] sm:$0xff]
        %v1841 = vld [vmem:[%s2 + $0x28] sm:$0xff]
        %v1842 = vld [vmem:[%s2 + $0x30] sm:$0xff]
        %v1843 = vld [vmem:[%s2 + $0x38] sm:$0xff]
        %v1844 = vld [vmem:[%s2 + $0x40] sm:$0xff]
        %v1845 = vld [vmem:[%s2 + $0x48] sm:$0xff]
        %v1846 = vld [vmem:[%s2 + $0x50] sm:$0xff]
        %v1847 = vld [vmem:[%s2 + $0x58] sm:$0xff]
        %v1848 = vld [vmem:[%s2 + $0x60] sm:$0xff]
        %v1849 = vld [vmem:[%s2 + $0x68] sm:$0xff]
        %v1850 = vld [vmem:[%s2 + $0x70] sm:$0xff]
        %v1851 = vld [vmem:[%s2 + $0x78] sm:$0xff]
        %v1852 = vld [vmem:[%s2 + $0x80] sm:$0xff]
        %v1853 = vld [vmem:[%s2 + $0x88] sm:$0xff]
        %v1854 = vld [vmem:[%s2 + $0x90] sm:$0xff]
        %v1855 = vld [vmem:[%s2 + $0x98] sm:$0xff]
        %v1856 = vld [vmem:[%s2 + $0xa0] sm:$0xff]
        %v1857 = vld [vmem:[%s2 + $0xa8] sm:$0xff]
        %v1858 = vld [vmem:[%s2 + $0xb0] sm:$0xff]
        %v1859 = vld [vmem:[%s2 + $0xb8] sm:$0xff]
        %v1860 = vld [vmem:[%s2 + $0xc0] sm:$0xff]
        %v1861 = vld [vmem:[%s2 + $0xc8] sm:$0xff]
        %v1862 = vld [vmem:[%s2 + $0xd0] sm:$0xff]
        %v1863 = vld [vmem:[%s2 + $0xd8] sm:$0xff]
        %v1864 = vld [vmem:[%s2 + $0xe0] sm:$0xff]
        %v1865 = vld [vmem:[%s2 + $0xe8] sm:$0xff]
        %v1866 = vld [vmem:[%s2 + $0xf0] sm:$0xff]
        %v1867 = vld [vmem:[%s2 + $0xf8] sm:$0xff]
        %v1868 = vld [vmem:[%s2 + $0x100] sm:$0xff]
        %v1869 = vld [vmem:[%s2 + $0x108] sm:$0xff]
        %v1870 = vld [vmem:[%s2 + $0x110] sm:$0xff]
        %v1871 = vld [vmem:[%s2 + $0x118] sm:$0xff]
        %v1872 = vld [vmem:[%s2 + $0x120] sm:$0xff]
        %v1873 = vld [vmem:[%s2 + $0x128] sm:$0xff]
        %v1874 = vld [vmem:[%s2 + $0x130] sm:$0xff]
        %v1875 = vld [vmem:[%s2 + $0x138] sm:$0xff]
        %v1876 = vld [vmem:[%s2 + $0x140] sm:$0xff]
        %v1877 = vld [vmem:[%s2 + $0x148] sm:$0xff]
        %v1878 = vld [vmem:[%s2 + $0x150] sm:$0xff]
        %v1879 = vld [vmem:[%s2 + $0x158] sm:$0xff]
        %v1880 = vld [vmem:[%s2 + $0x160] sm:$0xff]
        %v1881 = vld [vmem:[%s2 + $0x168] sm:$0xff]
        %v1882 = vld [vmem:[%s2 + $0x170] sm:$0xff]
        %v1883 = vld [vmem:[%s2 + $0x178] sm:$0xff]
        %v1884 = vld [vmem:[%s2 + $0x180] sm:$0xff]
        %v1885 = vld [vmem:[%s2 + $0x188] sm:$0xff]
        %v1886 = vld [vmem:[%s2 + $0x190] sm:$0xff]
        %v1887 = vld [vmem:[%s2 + $0x198] sm:$0xff]
        %v1888 = vld [vmem:[%s2 + $0x1a0] sm:$0xff]
        %v1889 = vld [vmem:[%s2 + $0x1a8] sm:$0xff]
        %v1890 = vld [vmem:[%s2 + $0x1b0] sm:$0xff]
        %v1891 = vld [vmem:[%s2 + $0x1b8] sm:$0xff]
        %v1892 = vld [vmem:[%s2 + $0x1c0] sm:$0xff]
        %v1893 = vld [vmem:[%s2 + $0x1c8] sm:$0xff]
        %v1894 = vld [vmem:[%s2 + $0x1d0] sm:$0xff]
        %v1895 = vld [vmem:[%s2 + $0x1d8] sm:$0xff]
        %v1896 = vld [vmem:[%s2 + $0x1e0] sm:$0xff]
        %v1897 = vld [vmem:[%s2 + $0x1e8] sm:$0xff]
        %v1898 = vld [vmem:[%s2 + $0x1f0] sm:$0xff]
        %v1899 = vld [vmem:[%s2 + $0x1f8] sm:$0xff]
        %v1900 = vld [vmem:[%s3] sm:$0xff]
        %v1901 = vld [vmem:[%s4] sm:$0xff]
        %v1902 = vld [vmem:[%s5] sm:$0xff]
        %v1903 = vld [vmem:[%s5 + $0x8] sm:$0xff]
        %v1904 = vld [vmem:[%s5 + $0x10] sm:$0xff]
        %v1905 = vld [vmem:[%s5 + $0x18] sm:$0xff]
        %v1906 = vld [vmem:[%s5 + $0x20] sm:$0xff]
        %v1907 = vld [vmem:[%s5 + $0x28] sm:$0xff]
        %v1908 = vld [vmem:[%s5 + $0x30] sm:$0xff]
        %v1909 = vld [vmem:[%s5 + $0x38] sm:$0xff]
        %v1910 = vld [vmem:[%s6] sm:$0xff]
        %v1911 = vld [vmem:[%s6 + $0x8] sm:$0xff]
        %v1912 = vld [vmem:[%s6 + $0x10] sm:$0xff]
        %v1913 = vld [vmem:[%s6 + $0x18] sm:$0xff]
        %v1914 = vld [vmem:[%s6 + $0x20] sm:$0xff]
        %v1915 = vld [vmem:[%s6 + $0x28] sm:$0xff]
        %v1916 = vld [vmem:[%s6 + $0x30] sm:$0xff]
        %v1917 = vld [vmem:[%s6 + $0x38] sm:$0xff]
        %1919 = vset.pattern.permute.xlu0 0
        %1920 = vperm.xlu0 %1919, %v1901
        %v1921 = vpop.permute.xlu0 %1920
        %vm1923 = vcmask 261120
        %v1925 = vsel %vm1923, %v1900, 0
        %v1927 = vand.u32 %v1810, 4294901760
        %1928 = vmatprep.subr.mxu0 %v1927
        %v1929 = vand.u32 %v1808, 4294901760
        %1930 = vmatpush1.msra.mxu0 %v1929
        %v1931 = vand.u32 %v1818, 4294901760
        %1932 = vmatprep.subr.mxu0 %v1931
        %v1933 = vand.u32 %v1816, 4294901760
        %1934 = vmatpush1.msra.mxu0 %v1933
        %v1935 = vand.u32 %v1826, 4294901760
        %1936 = vmatprep.subr.mxu0 %v1935
        %v1937 = vand.u32 %v1824, 4294901760
        %1938 = vmatpush1.msra.mxu0 %v1937
        %v1939 = vand.u32 %v1834, 4294901760
        %1940 = vmatprep.subr.mxu0 %v1939
        %v1941 = vand.u32 %v1832, 4294901760
        %1942 = vmatpush1.msra.mxu0 %v1941
        %1943 = vmatprep.subr.mxu0 0.0
        %1944 = vmatpush1.msra.mxu0 0.0
        %1945 = vmatprep.subr.mxu0 0.0
        %1946 = vmatpush1.msra.mxu0 0.0
        %1947 = vmatprep.subr.mxu0 0.0
        %1948 = vmatpush1.msra.mxu0 0.0
        %1949 = vmatprep.subr.mxu0 0.0
        %1950 = vmatpush1.msra.mxu0 0.0
        %1951 = vmatprep.subr.mxu0 0.0
        %1952 = vmatpush1.msra.mxu0 0.0
        %1953 = vmatprep.subr.mxu0 0.0
        %1954 = vmatpush1.msra.mxu0 0.0
        %1955 = vmatprep.subr.mxu0 0.0
        %1956 = vmatpush1.msra.mxu0 0.0
        %1957 = vmatprep.subr.mxu0 0.0
        %1958 = vmatpush1.msra.mxu0 0.0
        %1959 = vmatprep.subr.mxu0 0.0
        %1960 = vmatpush1.msra.mxu0 0.0
        %1961 = vmatprep.subr.mxu0 0.0
        %1962 = vmatpush1.msra.mxu0 0.0
        %1963 = vmatprep.subr.mxu0 0.0
        %1964 = vmatpush1.msra.mxu0 0.0
        %1965 = vmatprep.subr.mxu0 0.0
        %1966 = vmatpush1.msra.mxu0 0.0
        %1967 = vmatprep.subr.mxu0 0.0
        %1968 = vmatpush1.msra.mxu0 0.0
        %1969 = vmatprep.subr.mxu0 0.0
        %1970 = vmatpush1.msra.mxu0 0.0
        %1971 = vmatprep.subr.mxu0 0.0
        %1972 = vmatpush1.msra.mxu0 0.0
        %1973 = vmatprep.subr.mxu0 0.0
        %1974 = vmatpush1.msra.mxu0 0.0
        %1975 = vmatprep.subr.mxu0 0.0
        %1976 = vmatpush1.msra.mxu0 0.0
        %1977 = vmatprep.subr.mxu0 0.0
        %1978 = vmatpush1.msra.mxu0 0.0
        %1979 = vmatprep.subr.mxu0 0.0
        %1980 = vmatpush1.msra.mxu0 0.0
        %1981 = vmatprep.subr.mxu0 0.0
        %1982 = vmatpush1.msra.mxu0 0.0
        %1983 = vmatprep.subr.mxu0 0.0
        %1984 = vmatpush1.msra.mxu0 0.0
        %1985 = vmatprep.subr.mxu0 0.0
        %1986 = vmatpush1.msra.mxu0 0.0
        %1987 = vmatprep.subr.mxu0 0.0
        %1988 = vmatpush1.msra.mxu0 0.0
        %1989 = vmatprep.subr.mxu0 0.0
        %1990 = vmatpush1.msra.mxu0 0.0
        %1991 = vmatprep.subr.mxu0 0.0
        %1992 = vmatpush1.msra.mxu0 0.0
        %1993 = vmatprep.subr.mxu0 0.0
        %1994 = vmatpush1.msra.mxu0 0.0
        %1995 = vmatprep.subr.mxu0 0.0
        %1996 = vmatpush1.msra.mxu0 0.0
        %1997 = vmatprep.subr.mxu0 0.0
        %1998 = vmatpush1.msra.mxu0 0.0
        %1999 = vmatprep.mubr.f32.mxu0 0.0
        %v2000 = vand.u32 %v1925, 4294901760
        %v2001 = vsub.f32 %v1925, %v2000
        %v2002 = vand.u32 %v2001, 4294901760
        %v2003 = vsub.f32 %v2001, %v2002
        %v2004 = vand.u32 %v2003, 4294901760
        %2005 = vmatmul.mubr.f32.gmra.mrb[0].mxu0 %v2004
        %v2006 = vpop.f32.mrb[0].mxu0
        %v2007 = vadd.f32 %v1921, %v2006
        %v2008 = vpop.f32.mrb[0].mxu0
        %v2009 = vadd.f32 %v1921, %v2008
        %2010 = vdwg.mxu0
        %v2011 = vand.u32 %v1810, 4294901760
        %v2012 = vsub.f32 %v1810, %v2011
        %v2013 = vand.u32 %v2012, 4294901760
        %v2014 = vsub.f32 %v2012, %v2013
        %v2015 = vand.u32 %v2014, 4294901760
        %2016 = vmatprep.subr.mxu0 %v2015
        %v2017 = vand.u32 %v1808, 4294901760
        %v2018 = vsub.f32 %v1808, %v2017
        %v2019 = vand.u32 %v2018, 4294901760
        %v2020 = vsub.f32 %v2018, %v2019
        %v2021 = vand.u32 %v2020, 4294901760
        %2022 = vmatpush1.msra.mxu0 %v2021
        %v2023 = vand.u32 %v1818, 4294901760
        %v2024 = vsub.f32 %v1818, %v2023
        %v2025 = vand.u32 %v2024, 4294901760
        %v2026 = vsub.f32 %v2024, %v2025
        %v2027 = vand.u32 %v2026, 4294901760
        %2028 = vmatprep.subr.mxu0 %v2027
        %v2029 = vand.u32 %v1816, 4294901760
        %v2030 = vsub.f32 %v1816, %v2029
        %v2031 = vand.u32 %v2030, 4294901760
        %v2032 = vsub.f32 %v2030, %v2031
        %v2033 = vand.u32 %v2032, 4294901760
        %2034 = vmatpush1.msra.mxu0 %v2033
        %v2035 = vand.u32 %v1826, 4294901760
        %v2036 = vsub.f32 %v1826, %v2035
        %v2037 = vand.u32 %v2036, 4294901760
        %v2038 = vsub.f32 %v2036, %v2037
        %v2039 = vand.u32 %v2038, 4294901760
        %2040 = vmatprep.subr.mxu0 %v2039
        %v2041 = vand.u32 %v1824, 4294901760
        %v2042 = vsub.f32 %v1824, %v2041
        %v2043 = vand.u32 %v2042, 4294901760
        %v2044 = vsub.f32 %v2042, %v2043
        %v2045 = vand.u32 %v2044, 4294901760
        %2046 = vmatpush1.msra.mxu0 %v2045
        %v2047 = vand.u32 %v1834, 4294901760
        %v2048 = vsub.f32 %v1834, %v2047
        %v2049 = vand.u32 %v2048, 4294901760
        %v2050 = vsub.f32 %v2048, %v2049
        %v2051 = vand.u32 %v2050, 4294901760
        %2052 = vmatprep.subr.mxu0 %v2051
        %v2053 = vand.u32 %v1832, 4294901760
        %v2054 = vsub.f32 %v1832, %v2053
        %v2055 = vand.u32 %v2054, 4294901760
        %v2056 = vsub.f32 %v2054, %v2055
        %v2057 = vand.u32 %v2056, 4294901760
        %2058 = vmatpush1.msra.mxu0 %v2057
        %2059 = vmatprep.subr.mxu0 0.0
        %2060 = vmatpush1.msra.mxu0 0.0
        %2061 = vmatprep.subr.mxu0 0.0
        %2062 = vmatpush1.msra.mxu0 0.0
        %2063 = vmatprep.subr.mxu0 0.0
        %2064 = vmatpush1.msra.mxu0 0.0
        %2065 = vmatprep.subr.mxu0 0.0
        %2066 = vmatpush1.msra.mxu0 0.0
        %2067 = vmatprep.subr.mxu0 0.0
        %2068 = vmatpush1.msra.mxu0 0.0
        %2069 = vmatprep.subr.mxu0 0.0
        %2070 = vmatpush1.msra.mxu0 0.0
        %2071 = vmatprep.subr.mxu0 0.0
        %2072 = vmatpush1.msra.mxu0 0.0
        %2073 = vmatprep.subr.mxu0 0.0
        %2074 = vmatpush1.msra.mxu0 0.0
        %2075 = vmatprep.subr.mxu0 0.0
        %2076 = vmatpush1.msra.mxu0 0.0
        %2077 = vmatprep.subr.mxu0 0.0
        %2078 = vmatpush1.msra.mxu0 0.0
        %2079 = vmatprep.subr.mxu0 0.0
        %2080 = vmatpush1.msra.mxu0 0.0
        %2081 = vmatprep.subr.mxu0 0.0
        %2082 = vmatpush1.msra.mxu0 0.0
        %2083 = vmatprep.subr.mxu0 0.0
        %2084 = vmatpush1.msra.mxu0 0.0
        %2085 = vmatprep.subr.mxu0 0.0
        %2086 = vmatpush1.msra.mxu0 0.0
        %2087 = vmatprep.subr.mxu0 0.0
        %2088 = vmatpush1.msra.mxu0 0.0
        %2089 = vmatprep.subr.mxu0 0.0
        %2090 = vmatpush1.msra.mxu0 0.0
        %2091 = vmatprep.subr.mxu0 0.0
        %2092 = vmatpush1.msra.mxu0 0.0
        %2093 = vmatprep.subr.mxu0 0.0
        %2094 = vmatpush1.msra.mxu0 0.0
        %2095 = vmatprep.subr.mxu0 0.0
        %2096 = vmatpush1.msra.mxu0 0.0
        %2097 = vmatprep.subr.mxu0 0.0
        %2098 = vmatpush1.msra.mxu0 0.0
        %2099 = vmatprep.subr.mxu0 0.0
        %2100 = vmatpush1.msra.mxu0 0.0
        %2101 = vmatprep.subr.mxu0 0.0
        %2102 = vmatpush1.msra.mxu0 0.0
        %2103 = vmatprep.subr.mxu0 0.0
        %2104 = vmatpush1.msra.mxu0 0.0
        %2105 = vmatprep.subr.mxu0 0.0
        %2106 = vmatpush1.msra.mxu0 0.0
        %2107 = vmatprep.subr.mxu0 0.0
        %2108 = vmatpush1.msra.mxu0 0.0
        %2109 = vmatprep.subr.mxu0 0.0
        %2110 = vmatpush1.msra.mxu0 0.0
        %2111 = vmatprep.subr.mxu0 0.0
        %2112 = vmatpush1.msra.mxu0 0.0
        %2113 = vmatprep.subr.mxu0 0.0
        %2114 = vmatpush1.msra.mxu0 0.0
        %2115 = vmatprep.mubr.f32.mxu0 0.0
        %v2116 = vand.u32 %v1925, 4294901760
        %2117 = vmatmul.mubr.f32.gmra.mrb[0].mxu0 %v2116
        %v2118 = vpop.f32.mrb[0].mxu0
        %v2119 = vadd.f32 %v2007, %v2118
        %v2120 = vpop.f32.mrb[0].mxu0
        %v2121 = vadd.f32 %v2009, %v2120
        %2122 = vdwg.mxu0
        %v2123 = vand.u32 %v1810, 4294901760
        %v2124 = vsub.f32 %v1810, %v2123
        %2125 = vmatprep.subr.mxu0 %v2124
        %v2126 = vand.u32 %v1808, 4294901760
        %v2127 = vsub.f32 %v1808, %v2126
        %2128 = vmatpush1.msra.mxu0 %v2127
        %v2129 = vand.u32 %v1818, 4294901760
        %v2130 = vsub.f32 %v1818, %v2129
        %2131 = vmatprep.subr.mxu0 %v2130
        %v2132 = vand.u32 %v1816, 4294901760
        %v2133 = vsub.f32 %v1816, %v2132
        %2134 = vmatpush1.msra.mxu0 %v2133
        %v2135 = vand.u32 %v1826, 4294901760
        %v2136 = vsub.f32 %v1826, %v2135
        %2137 = vmatprep.subr.mxu0 %v2136
        %v2138 = vand.u32 %v1824, 4294901760
        %v2139 = vsub.f32 %v1824, %v2138
        %2140 = vmatpush1.msra.mxu0 %v2139
        %v2141 = vand.u32 %v1834, 4294901760
        %v2142 = vsub.f32 %v1834, %v2141
        %2143 = vmatprep.subr.mxu0 %v2142
        %v2144 = vand.u32 %v1832, 4294901760
        %v2145 = vsub.f32 %v1832, %v2144
        %2146 = vmatpush1.msra.mxu0 %v2145
        %2147 = vmatprep.subr.mxu0 0.0
        %2148 = vmatpush1.msra.mxu0 0.0
        %2149 = vmatprep.subr.mxu0 0.0
        %2150 = vmatpush1.msra.mxu0 0.0
        %2151 = vmatprep.subr.mxu0 0.0
        %2152 = vmatpush1.msra.mxu0 0.0
        %2153 = vmatprep.subr.mxu0 0.0
        %2154 = vmatpush1.msra.mxu0 0.0
        %2155 = vmatprep.subr.mxu0 0.0
        %2156 = vmatpush1.msra.mxu0 0.0
        %2157 = vmatprep.subr.mxu0 0.0
        %2158 = vmatpush1.msra.mxu0 0.0
        %2159 = vmatprep.subr.mxu0 0.0
        %2160 = vmatpush1.msra.mxu0 0.0
        %2161 = vmatprep.subr.mxu0 0.0
        %2162 = vmatpush1.msra.mxu0 0.0
        %2163 = vmatprep.subr.mxu0 0.0
        %2164 = vmatpush1.msra.mxu0 0.0
        %2165 = vmatprep.subr.mxu0 0.0
        %2166 = vmatpush1.msra.mxu0 0.0
        %2167 = vmatprep.subr.mxu0 0.0
        %2168 = vmatpush1.msra.mxu0 0.0
        %2169 = vmatprep.subr.mxu0 0.0
        %2170 = vmatpush1.msra.mxu0 0.0
        %2171 = vmatprep.subr.mxu0 0.0
        %2172 = vmatpush1.msra.mxu0 0.0
        %2173 = vmatprep.subr.mxu0 0.0
        %2174 = vmatpush1.msra.mxu0 0.0
        %2175 = vmatprep.subr.mxu0 0.0
        %2176 = vmatpush1.msra.mxu0 0.0
        %2177 = vmatprep.subr.mxu0 0.0
        %2178 = vmatpush1.msra.mxu0 0.0
        %2179 = vmatprep.subr.mxu0 0.0
        %2180 = vmatpush1.msra.mxu0 0.0
        %2181 = vmatprep.subr.mxu0 0.0
        %2182 = vmatpush1.msra.mxu0 0.0
        %2183 = vmatprep.subr.mxu0 0.0
        %2184 = vmatpush1.msra.mxu0 0.0
        %2185 = vmatprep.subr.mxu0 0.0
        %2186 = vmatpush1.msra.mxu0 0.0
        %2187 = vmatprep.subr.mxu0 0.0
        %2188 = vmatpush1.msra.mxu0 0.0
        %2189 = vmatprep.subr.mxu0 0.0
        %2190 = vmatpush1.msra.mxu0 0.0
        %2191 = vmatprep.subr.mxu0 0.0
        %2192 = vmatpush1.msra.mxu0 0.0
        %2193 = vmatprep.subr.mxu0 0.0
        %2194 = vmatpush1.msra.mxu0 0.0
        %2195 = vmatprep.subr.mxu0 0.0
        %2196 = vmatpush1.msra.mxu0 0.0
        %2197 = vmatprep.subr.mxu0 0.0
        %2198 = vmatpush1.msra.mxu0 0.0
        %2199 = vmatprep.subr.mxu0 0.0
        %2200 = vmatpush1.msra.mxu0 0.0
        %2201 = vmatprep.subr.mxu0 0.0
        %2202 = vmatpush1.msra.mxu0 0.0
        %2203 = vmatprep.mubr.f32.mxu0 0.0
        %v2204 = vand.u32 %v1925, 4294901760
        %v2205 = vsub.f32 %v1925, %v2204
        %2206 = vmatmul.mubr.f32.gmra.mrb[0].mxu0 %v2205
        %v2207 = vpop.f32.mrb[0].mxu0
        %v2208 = vadd.f32 %v2119, %v2207
        %v2209 = vpop.f32.mrb[0].mxu0
        %v2210 = vadd.f32 %v2121, %v2209
        %2211 = vdwg.mxu0
        %v2212 = vand.u32 %v1810, 4294901760
        %2213 = vmatprep.subr.mxu0 %v2212
        %v2214 = vand.u32 %v1808, 4294901760
        %2215 = vmatpush1.msra.mxu0 %v2214
        %v2216 = vand.u32 %v1818, 4294901760
        %2217 = vmatprep.subr.mxu0 %v2216
        %v2218 = vand.u32 %v1816, 4294901760
        %2219 = vmatpush1.msra.mxu0 %v2218
        %v2220 = vand.u32 %v1826, 4294901760
        %2221 = vmatprep.subr.mxu0 %v2220
        %v2222 = vand.u32 %v1824, 4294901760
        %2223 = vmatpush1.msra.mxu0 %v2222
        %v2224 = vand.u32 %v1834, 4294901760
        %2225 = vmatprep.subr.mxu0 %v2224
        %v2226 = vand.u32 %v1832, 4294901760
        %2227 = vmatpush1.msra.mxu0 %v2226
        %2228 = vmatprep.subr.mxu0 0.0
        %2229 = vmatpush1.msra.mxu0 0.0
        %2230 = vmatprep.subr.mxu0 0.0
        %2231 = vmatpush1.msra.mxu0 0.0
        %2232 = vmatprep.subr.mxu0 0.0
        %2233 = vmatpush1.msra.mxu0 0.0
        %2234 = vmatprep.subr.mxu0 0.0
        %2235 = vmatpush1.msra.mxu0 0.0
        %2236 = vmatprep.subr.mxu0 0.0
        %2237 = vmatpush1.msra.mxu0 0.0
        %2238 = vmatprep.subr.mxu0 0.0
        %2239 = vmatpush1.msra.mxu0 0.0
        %2240 = vmatprep.subr.mxu0 0.0
        %2241 = vmatpush1.msra.mxu0 0.0
        %2242 = vmatprep.subr.mxu0 0.0
        %2243 = vmatpush1.msra.mxu0 0.0
        %2244 = vmatprep.subr.mxu0 0.0
        %2245 = vmatpush1.msra.mxu0 0.0
        %2246 = vmatprep.subr.mxu0 0.0
        %2247 = vmatpush1.msra.mxu0 0.0
        %2248 = vmatprep.subr.mxu0 0.0
        %2249 = vmatpush1.msra.mxu0 0.0
        %2250 = vmatprep.subr.mxu0 0.0
        %2251 = vmatpush1.msra.mxu0 0.0
        %2252 = vmatprep.subr.mxu0 0.0
        %2253 = vmatpush1.msra.mxu0 0.0
        %2254 = vmatprep.subr.mxu0 0.0
        %2255 = vmatpush1.msra.mxu0 0.0
        %2256 = vmatprep.subr.mxu0 0.0
        %2257 = vmatpush1.msra.mxu0 0.0
        %2258 = vmatprep.subr.mxu0 0.0
        %2259 = vmatpush1.msra.mxu0 0.0
        %2260 = vmatprep.subr.mxu0 0.0
        %2261 = vmatpush1.msra.mxu0 0.0
        %2262 = vmatprep.subr.mxu0 0.0
        %2263 = vmatpush1.msra.mxu0 0.0
        %2264 = vmatprep.subr.mxu0 0.0
        %2265 = vmatpush1.msra.mxu0 0.0
        %2266 = vmatprep.subr.mxu0 0.0
        %2267 = vmatpush1.msra.mxu0 0.0
        %2268 = vmatprep.subr.mxu0 0.0
        %2269 = vmatpush1.msra.mxu0 0.0
        %2270 = vmatprep.subr.mxu0 0.0
        %2271 = vmatpush1.msra.mxu0 0.0
        %2272 = vmatprep.subr.mxu0 0.0
        %2273 = vmatpush1.msra.mxu0 0.0
        %2274 = vmatprep.subr.mxu0 0.0
        %2275 = vmatpush1.msra.mxu0 0.0
        %2276 = vmatprep.subr.mxu0 0.0
        %2277 = vmatpush1.msra.mxu0 0.0
        %2278 = vmatprep.subr.mxu0 0.0
        %2279 = vmatpush1.msra.mxu0 0.0
        %2280 = vmatprep.subr.mxu0 0.0
        %2281 = vmatpush1.msra.mxu0 0.0
        %2282 = vmatprep.subr.mxu0 0.0
        %2283 = vmatpush1.msra.mxu0 0.0
        %2284 = vmatprep.mubr.f32.mxu0 0.0
        %v2285 = vand.u32 %v1925, 4294901760
        %v2286 = vsub.f32 %v1925, %v2285
        %v2287 = vand.u32 %v2286, 4294901760
        %2288 = vmatmul.mubr.f32.gmra.mrb[0].mxu0 %v2287
        %v2289 = vpop.f32.mrb[0].mxu0
        %v2290 = vadd.f32 %v2208, %v2289
        %v2291 = vpop.f32.mrb[0].mxu0
        %v2292 = vadd.f32 %v2210, %v2291
        %2293 = vdwg.mxu0
        %v2294 = vand.u32 %v1810, 4294901760
        %v2295 = vsub.f32 %v1810, %v2294
        %v2296 = vand.u32 %v2295, 4294901760
        %2297 = vmatprep.subr.mxu0 %v2296
        %v2298 = vand.u32 %v1808, 4294901760
        %v2299 = vsub.f32 %v1808, %v2298
        %v2300 = vand.u32 %v2299, 4294901760
        %2301 = vmatpush1.msra.mxu0 %v2300
        %v2302 = vand.u32 %v1818, 4294901760
        %v2303 = vsub.f32 %v1818, %v2302
        %v2304 = vand.u32 %v2303, 4294901760
        %2305 = vmatprep.subr.mxu0 %v2304
        %v2306 = vand.u32 %v1816, 4294901760
        %v2307 = vsub.f32 %v1816, %v2306
        %v2308 = vand.u32 %v2307, 4294901760
        %2309 = vmatpush1.msra.mxu0 %v2308
        %v2310 = vand.u32 %v1826, 4294901760
        %v2311 = vsub.f32 %v1826, %v2310
        %v2312 = vand.u32 %v2311, 4294901760
        %2313 = vmatprep.subr.mxu0 %v2312
        %v2314 = vand.u32 %v1824, 4294901760
        %v2315 = vsub.f32 %v1824, %v2314
        %v2316 = vand.u32 %v2315, 4294901760
        %2317 = vmatpush1.msra.mxu0 %v2316
        %v2318 = vand.u32 %v1834, 4294901760
        %v2319 = vsub.f32 %v1834, %v2318
        %v2320 = vand.u32 %v2319, 4294901760
        %2321 = vmatprep.subr.mxu0 %v2320
        %v2322 = vand.u32 %v1832, 4294901760
        %v2323 = vsub.f32 %v1832, %v2322
        %v2324 = vand.u32 %v2323, 4294901760
        %2325 = vmatpush1.msra.mxu0 %v2324
        %2326 = vmatprep.subr.mxu0 0.0
        %2327 = vmatpush1.msra.mxu0 0.0
        %2328 = vmatprep.subr.mxu0 0.0
        %2329 = vmatpush1.msra.mxu0 0.0
        %2330 = vmatprep.subr.mxu0 0.0
        %2331 = vmatpush1.msra.mxu0 0.0
        %2332 = vmatprep.subr.mxu0 0.0
        %2333 = vmatpush1.msra.mxu0 0.0
        %2334 = vmatprep.subr.mxu0 0.0
        %2335 = vmatpush1.msra.mxu0 0.0
        %2336 = vmatprep.subr.mxu0 0.0
        %2337 = vmatpush1.msra.mxu0 0.0
        %2338 = vmatprep.subr.mxu0 0.0
        %2339 = vmatpush1.msra.mxu0 0.0
        %2340 = vmatprep.subr.mxu0 0.0
        %2341 = vmatpush1.msra.mxu0 0.0
        %2342 = vmatprep.subr.mxu0 0.0
        %2343 = vmatpush1.msra.mxu0 0.0
        %2344 = vmatprep.subr.mxu0 0.0
        %2345 = vmatpush1.msra.mxu0 0.0
        %2346 = vmatprep.subr.mxu0 0.0
        %2347 = vmatpush1.msra.mxu0 0.0
        %2348 = vmatprep.subr.mxu0 0.0
        %2349 = vmatpush1.msra.mxu0 0.0
        %2350 = vmatprep.subr.mxu0 0.0
        %2351 = vmatpush1.msra.mxu0 0.0
        %2352 = vmatprep.subr.mxu0 0.0
        %2353 = vmatpush1.msra.mxu0 0.0
        %2354 = vmatprep.subr.mxu0 0.0
        %2355 = vmatpush1.msra.mxu0 0.0
        %2356 = vmatprep.subr.mxu0 0.0
        %2357 = vmatpush1.msra.mxu0 0.0
        %2358 = vmatprep.subr.mxu0 0.0
        %2359 = vmatpush1.msra.mxu0 0.0
        %2360 = vmatprep.subr.mxu0 0.0
        %2361 = vmatpush1.msra.mxu0 0.0
        %2362 = vmatprep.subr.mxu0 0.0
        %2363 = vmatpush1.msra.mxu0 0.0
        %2364 = vmatprep.subr.mxu0 0.0
        %2365 = vmatpush1.msra.mxu0 0.0
        %2366 = vmatprep.subr.mxu0 0.0
        %2367 = vmatpush1.msra.mxu0 0.0
        %2368 = vmatprep.subr.mxu0 0.0
        %2369 = vmatpush1.msra.mxu0 0.0
        %2370 = vmatprep.subr.mxu0 0.0
        %2371 = vmatpush1.msra.mxu0 0.0
        %2372 = vmatprep.subr.mxu0 0.0
        %2373 = vmatpush1.msra.mxu0 0.0
        %2374 = vmatprep.subr.mxu0 0.0
        %2375 = vmatpush1.msra.mxu0 0.0
        %2376 = vmatprep.subr.mxu0 0.0
        %2377 = vmatpush1.msra.mxu0 0.0
        %2378 = vmatprep.subr.mxu0 0.0
        %2379 = vmatpush1.msra.mxu0 0.0
        %2380 = vmatprep.subr.mxu0 0.0
        %2381 = vmatpush1.msra.mxu0 0.0
        %2382 = vmatprep.mubr.f32.mxu0 0.0
        %v2383 = vand.u32 %v1925, 4294901760
        %2384 = vmatmul.mubr.f32.gmra.mrb[0].mxu0 %v2383
        %v2385 = vpop.f32.mrb[0].mxu0
        %v2386 = vadd.f32 %v2290, %v2385
        %v2387 = vpop.f32.mrb[0].mxu0
        %v2388 = vadd.f32 %v2292, %v2387
        %2389 = vdwg.mxu0
        %v2390 = vand.u32 %v1810, 4294901760
        %2391 = vmatprep.subr.mxu0 %v2390
        %v2392 = vand.u32 %v1808, 4294901760
        %2393 = vmatpush1.msra.mxu0 %v2392
        %v2394 = vand.u32 %v1818, 4294901760
        %2395 = vmatprep.subr.mxu0 %v2394
        %v2396 = vand.u32 %v1816, 4294901760
        %2397 = vmatpush1.msra.mxu0 %v2396
        %v2398 = vand.u32 %v1826, 4294901760
        %2399 = vmatprep.subr.mxu0 %v2398
        %v2400 = vand.u32 %v1824, 4294901760
        %2401 = vmatpush1.msra.mxu0 %v2400
        %v2402 = vand.u32 %v1834, 4294901760
        %2403 = vmatprep.subr.mxu0 %v2402
        %v2404 = vand.u32 %v1832, 4294901760
        %2405 = vmatpush1.msra.mxu0 %v2404
        %2406 = vmatprep.subr.mxu0 0.0
        %2407 = vmatpush1.msra.mxu0 0.0
        %2408 = vmatprep.subr.mxu0 0.0
        %2409 = vmatpush1.msra.mxu0 0.0
        %2410 = vmatprep.subr.mxu0 0.0
        %2411 = vmatpush1.msra.mxu0 0.0
        %2412 = vmatprep.subr.mxu0 0.0
        %2413 = vmatpush1.msra.mxu0 0.0
        %2414 = vmatprep.subr.mxu0 0.0
        %2415 = vmatpush1.msra.mxu0 0.0
        %2416 = vmatprep.subr.mxu0 0.0
        %2417 = vmatpush1.msra.mxu0 0.0
        %2418 = vmatprep.subr.mxu0 0.0
        %2419 = vmatpush1.msra.mxu0 0.0
        %2420 = vmatprep.subr.mxu0 0.0
        %2421 = vmatpush1.msra.mxu0 0.0
        %2422 = vmatprep.subr.mxu0 0.0
        %2423 = vmatpush1.msra.mxu0 0.0
        %2424 = vmatprep.subr.mxu0 0.0
        %2425 = vmatpush1.msra.mxu0 0.0
        %2426 = vmatprep.subr.mxu0 0.0
        %2427 = vmatpush1.msra.mxu0 0.0
        %2428 = vmatprep.subr.mxu0 0.0
        %2429 = vmatpush1.msra.mxu0 0.0
        %2430 = vmatprep.subr.mxu0 0.0
        %2431 = vmatpush1.msra.mxu0 0.0
        %2432 = vmatprep.subr.mxu0 0.0
        %2433 = vmatpush1.msra.mxu0 0.0
        %2434 = vmatprep.subr.mxu0 0.0
        %2435 = vmatpush1.msra.mxu0 0.0
        %2436 = vmatprep.subr.mxu0 0.0
        %2437 = vmatpush1.msra.mxu0 0.0
        %2438 = vmatprep.subr.mxu0 0.0
        %2439 = vmatpush1.msra.mxu0 0.0
        %2440 = vmatprep.subr.mxu0 0.0
        %2441 = vmatpush1.msra.mxu0 0.0
        %2442 = vmatprep.subr.mxu0 0.0
        %2443 = vmatpush1.msra.mxu0 0.0
        %2444 = vmatprep.subr.mxu0 0.0
        %2445 = vmatpush1.msra.mxu0 0.0
        %2446 = vmatprep.subr.mxu0 0.0
        %2447 = vmatpush1.msra.mxu0 0.0
        %2448 = vmatprep.subr.mxu0 0.0
        %2449 = vmatpush1.msra.mxu0 0.0
        %2450 = vmatprep.subr.mxu0 0.0
        %2451 = vmatpush1.msra.mxu0 0.0
        %2452 = vmatprep.subr.mxu0 0.0
        %2453 = vmatpush1.msra.mxu0 0.0
        %2454 = vmatprep.subr.mxu0 0.0
        %2455 = vmatpush1.msra.mxu0 0.0
        %2456 = vmatprep.subr.mxu0 0.0
        %2457 = vmatpush1.msra.mxu0 0.0
        %2458 = vmatprep.subr.mxu0 0.0
        %2459 = vmatpush1.msra.mxu0 0.0
        %2460 = vmatprep.subr.mxu0 0.0
        %2461 = vmatpush1.msra.mxu0 0.0
        %2462 = vmatprep.mubr.f32.mxu0 0.0
        %v2463 = vand.u32 %v1925, 4294901760
        %2464 = vmatmul.mubr.f32.gmra.mrb[0].mxu0 %v2463
        %v2465 = vpop.f32.mrb[0].mxu0
        %v2466 = vadd.f32 %v2386, %v2465
        %v2467 = vpop.f32.mrb[0].mxu0
        %v2468 = vadd.f32 %v2388, %v2467
        %2469 = vdwg.mxu0
        %v2470 = vadd.f32 %v2466, 3.0
        %v2471 = vadd.f32 %v2468, 3.0
        %v2472 = vmax.f32 %v2470, 0.0
        %v2473 = vmax.f32 %v2471, 0.0
        %v2474 = vmin.f32 %v2472, 6.0
        %v2475 = vmin.f32 %v2473, 6.0
        %v2476 = vmul.f32 %v2474, 0.16666667
        %v2477 = vmul.f32 %v2475, 0.16666667
        %v2478 = vmul.f32 %v2466, %v2476
        %v2479 = vmul.f32 %v2468, %v2477
        %2481 = vset.pattern.permute.xlu0 0
        %2482 = vperm.xlu0 %2481, %v1910
        %v2483 = vpop.permute.xlu0 %2482
        %2486 = vset.pattern.permute.xlu0 0
        %2487 = vperm.xlu0 %2486, %v1911
        %v2488 = vpop.permute.xlu0 %2487
        %2491 = vset.pattern.permute.xlu0 0
        %2492 = vperm.xlu0 %2491, %v1912
        %v2493 = vpop.permute.xlu0 %2492
        %2496 = vset.pattern.permute.xlu0 0
        %2497 = vperm.xlu0 %2496, %v1913
        %v2498 = vpop.permute.xlu0 %2497
        %vm2500 = vcmask 64512
        %v2502 = vsel %vm2500, %v1902, 0
        %v2505 = vsel %vm2500, %v1903, 0
        %v2508 = vsel %vm2500, %v1904, 0
        %v2511 = vsel %vm2500, %v1905, 0
        %2513 = vmatprep.subr.mxu0 0.0
        %v2514 = vand.u32 %v2478, 4294901760
        %2515 = vmatpush1.msra.mxu0 %v2514
        %2516 = vmatprep.subr.mxu0 0.0
        %2517 = vmatpush1.msra.mxu0 0.0
        %2518 = vmatprep.subr.mxu0 0.0
        %2519 = vmatpush1.msra.mxu0 0.0
        %2520 = vmatprep.subr.mxu0 0.0
        %2521 = vmatpush1.msra.mxu0 0.0
        %2522 = vmatprep.subr.mxu0 0.0
        %2523 = vmatpush1.msra.mxu0 0.0
        %2524 = vmatprep.subr.mxu0 0.0
        %2525 = vmatpush1.msra.mxu0 0.0
        %2526 = vmatprep.subr.mxu0 0.0
        %2527 = vmatpush1.msra.mxu0 0.0
        %2528 = vmatprep.subr.mxu0 0.0
        %2529 = vmatpush1.msra.mxu0 0.0
        %2530 = vmatprep.subr.mxu0 0.0
        %2531 = vmatpush1.msra.mxu0 0.0
        %2532 = vmatprep.subr.mxu0 0.0
        %2533 = vmatpush1.msra.mxu0 0.0
        %2534 = vmatprep.subr.mxu0 0.0
        %2535 = vmatpush1.msra.mxu0 0.0
        %2536 = vmatprep.subr.mxu0 0.0
        %2537 = vmatpush1.msra.mxu0 0.0
        %2538 = vmatprep.subr.mxu0 0.0
        %2539 = vmatpush1.msra.mxu0 0.0
        %2540 = vmatprep.subr.mxu0 0.0
        %2541 = vmatpush1.msra.mxu0 0.0
        %2542 = vmatprep.subr.mxu0 0.0
        %2543 = vmatpush1.msra.mxu0 0.0
        %2544 = vmatprep.subr.mxu0 0.0
        %2545 = vmatpush1.msra.mxu0 0.0
        %2546 = vmatprep.subr.mxu0 0.0
        %2547 = vmatpush1.msra.mxu0 0.0
        %2548 = vmatprep.subr.mxu0 0.0
        %2549 = vmatpush1.msra.mxu0 0.0
        %2550 = vmatprep.subr.mxu0 0.0
        %2551 = vmatpush1.msra.mxu0 0.0
        %2552 = vmatprep.subr.mxu0 0.0
        %2553 = vmatpush1.msra.mxu0 0.0
        %2554 = vmatprep.subr.mxu0 0.0
        %2555 = vmatpush1.msra.mxu0 0.0
        %2556 = vmatprep.subr.mxu0 0.0
        %2557 = vmatpush1.msra.mxu0 0.0
        %2558 = vmatprep.subr.mxu0 0.0
        %2559 = vmatpush1.msra.mxu0 0.0
        %2560 = vmatprep.subr.mxu0 0.0
        %2561 = vmatpush1.msra.mxu0 0.0
        %2562 = vmatprep.subr.mxu0 0.0
        %2563 = vmatpush1.msra.mxu0 0.0
        %2564 = vmatprep.subr.mxu0 0.0
        %2565 = vmatpush1.msra.mxu0 0.0
        %2566 = vmatprep.subr.mxu0 0.0
        %2567 = vmatpush1.msra.mxu0 0.0
        %2568 = vmatprep.subr.mxu0 0.0
        %2569 = vmatpush1.msra.mxu0 0.0
        %2570 = vmatprep.subr.mxu0 0.0
        %2571 = vmatpush1.msra.mxu0 0.0
        %2572 = vmatprep.subr.mxu0 0.0
        %2573 = vmatpush1.msra.mxu0 0.0
        %2574 = vmatprep.subr.mxu0 0.0
        %2575 = vmatpush1.msra.mxu0 0.0
        %2576 = vmatprep.subr.mxu0 0.0
        %2577 = vmatpush1.msra.mxu0 0.0
        %2578 = vmatprep.mubr.f32.mxu0 0.0
        %v2579 = vand.u32 %v2502, 4294901760
        %v2580 = vsub.f32 %v2502, %v2579
        %v2581 = vand.u32 %v2580, 4294901760
        %v2582 = vsub.f32 %v2580, %v2581
        %v2583 = vand.u32 %v2582, 4294901760
        %2584 = vmatmul.mubr.f32.gmra.mrb[0].mxu0 %v2583
        %v2585 = vpop.f32.mrb[0].mxu0
        %v2586 = vadd.f32 %v2483, %v2585
        %v2587 = vpop.f32.mrb[0].mxu0
        %2588 = vmatprep.mubr.f32.mxu0 0.0
        %v2589 = vand.u32 %v2505, 4294901760
        %v2590 = vsub.f32 %v2505, %v2589
        %v2591 = vand.u32 %v2590, 4294901760
        %v2592 = vsub.f32 %v2590, %v2591
        %v2593 = vand.u32 %v2592, 4294901760
        %2594 = vmatmul.mubr.f32.gmra.mrb[0].mxu0 %v2593
        %v2595 = vpop.f32.mrb[0].mxu0
        %v2596 = vadd.f32 %v2488, %v2595
        %v2597 = vpop.f32.mrb[0].mxu0
        %2598 = vmatprep.mubr.f32.mxu0 0.0
        %v2599 = vand.u32 %v2508, 4294901760
        %v2600 = vsub.f32 %v2508, %v2599
        %v2601 = vand.u32 %v2600, 4294901760
        %v2602 = vsub.f32 %v2600, %v2601
        %v2603 = vand.u32 %v2602, 4294901760
        %2604 = vmatmul.mubr.f32.gmra.mrb[0].mxu0 %v2603
        %v2605 = vpop.f32.mrb[0].mxu0
        %v2606 = vadd.f32 %v2493, %v2605
        %v2607 = vpop.f32.mrb[0].mxu0
        %2608 = vmatprep.mubr.f32.mxu0 0.0
        %v2609 = vand.u32 %v2511, 4294901760
        %v2610 = vsub.f32 %v2511, %v2609
        %v2611 = vand.u32 %v2610, 4294901760
        %v2612 = vsub.f32 %v2610, %v2611
        %v2613 = vand.u32 %v2612, 4294901760
        %2614 = vmatmul.mubr.f32.gmra.mrb[0].mxu0 %v2613
        %v2615 = vpop.f32.mrb[0].mxu0
        %v2616 = vadd.f32 %v2498, %v2615
        %v2617 = vpop.f32.mrb[0].mxu0
        %2618 = vdwg.mxu0
        %2619 = vmatprep.subr.mxu0 0.0
        %v2620 = vand.u32 %v2478, 4294901760
        %v2621 = vsub.f32 %v2478, %v2620
        %v2622 = vand.u32 %v2621, 4294901760
        %v2623 = vsub.f32 %v2621, %v2622
        %v2624 = vand.u32 %v2623, 4294901760
        %2625 = vmatpush1.msra.mxu0 %v2624
        %2626 = vmatprep.subr.mxu0 0.0
        %2627 = vmatpush1.msra.mxu0 0.0
        %2628 = vmatprep.subr.mxu0 0.0
        %2629 = vmatpush1.msra.mxu0 0.0
        %2630 = vmatprep.subr.mxu0 0.0
        %2631 = vmatpush1.msra.mxu0 0.0
        %2632 = vmatprep.subr.mxu0 0.0
        %2633 = vmatpush1.msra.mxu0 0.0
        %2634 = vmatprep.subr.mxu0 0.0
        %2635 = vmatpush1.msra.mxu0 0.0
        %2636 = vmatprep.subr.mxu0 0.0
        %2637 = vmatpush1.msra.mxu0 0.0
        %2638 = vmatprep.subr.mxu0 0.0
        %2639 = vmatpush1.msra.mxu0 0.0
        %2640 = vmatprep.subr.mxu0 0.0
        %2641 = vmatpush1.msra.mxu0 0.0
        %2642 = vmatprep.subr.mxu0 0.0
        %2643 = vmatpush1.msra.mxu0 0.0
        %2644 = vmatprep.subr.mxu0 0.0
        %2645 = vmatpush1.msra.mxu0 0.0
        %2646 = vmatprep.subr.mxu0 0.0
        %2647 = vmatpush1.msra.mxu0 0.0
        %2648 = vmatprep.subr.mxu0 0.0
        %2649 = vmatpush1.msra.mxu0 0.0
        %2650 = vmatprep.subr.mxu0 0.0
        %2651 = vmatpush1.msra.mxu0 0.0
        %2652 = vmatprep.subr.mxu0 0.0
        %2653 = vmatpush1.msra.mxu0 0.0
        %2654 = vmatprep.subr.mxu0 0.0
        %2655 = vmatpush1.msra.mxu0 0.0
        %2656 = vmatprep.subr.mxu0 0.0
        %2657 = vmatpush1.msra.mxu0 0.0
        %2658 = vmatprep.subr.mxu0 0.0
        %2659 = vmatpush1.msra.mxu0 0.0
        %2660 = vmatprep.subr.mxu0 0.0
        %2661 = vmatpush1.msra.mxu0 0.0
        %2662 = vmatprep.subr.mxu0 0.0
        %2663 = vmatpush1.msra.mxu0 0.0
        %2664 = vmatprep.subr.mxu0 0.0
        %2665 = vmatpush1.msra.mxu0 0.0
        %2666 = vmatprep.subr.mxu0 0.0
        %2667 = vmatpush1.msra.mxu0 0.0
        %2668 = vmatprep.subr.mxu0 0.0
        %2669 = vmatpush1.msra.mxu0 0.0
        %2670 = vmatprep.subr.mxu0 0.0
        %2671 = vmatpush1.msra.mxu0 0.0
        %2672 = vmatprep.subr.mxu0 0.0
        %2673 = vmatpush1.msra.mxu0 0.0
        %2674 = vmatprep.subr.mxu0 0.0
        %2675 = vmatpush1.msra.mxu0 0.0
        %2676 = vmatprep.subr.mxu0 0.0
        %2677 = vmatpush1.msra.mxu0 0.0
        %2678 = vmatprep.subr.mxu0 0.0
        %2679 = vmatpush1.msra.mxu0 0.0
        %2680 = vmatprep.subr.mxu0 0.0
        %2681 = vmatpush1.msra.mxu0 0.0
        %2682 = vmatprep.subr.mxu0 0.0
        %2683 = vmatpush1.msra.mxu0 0.0
        %2684 = vmatprep.subr.mxu0 0.0
        %2685 = vmatpush1.msra.mxu0 0.0
        %2686 = vmatprep.subr.mxu0 0.0
        %2687 = vmatpush1.msra.mxu0 0.0
        %2688 = vmatprep.mubr.f32.mxu0 0.0
        %v2689 = vand.u32 %v2502, 4294901760
        %2690 = vmatmul.mubr.f32.gmra.mrb[0].mxu0 %v2689
        %v2691 = vpop.f32.mrb[0].mxu0
        %v2692 = vadd.f32 %v2586, %v2691
        %v2693 = vpop.f32.mrb[0].mxu0
        %2694 = vmatprep.mubr.f32.mxu0 0.0
        %v2695 = vand.u32 %v2505, 4294901760
        %2696 = vmatmul.mubr.f32.gmra.mrb[0].mxu0 %v2695
        %v2697 = vpop.f32.mrb[0].mxu0
        %v2698 = vadd.f32 %v2596, %v2697
        %v2699 = vpop.f32.mrb[0].mxu0
        %2700 = vmatprep.mubr.f32.mxu0 0.0
        %v2701 = vand.u32 %v2508, 4294901760
        %2702 = vmatmul.mubr.f32.gmra.mrb[0].mxu0 %v2701
        %v2703 = vpop.f32.mrb[0].mxu0
        %v2704 = vadd.f32 %v2606, %v2703
        %v2705 = vpop.f32.mrb[0].mxu0
        %2706 = vmatprep.mubr.f32.mxu0 0.0
        %v2707 = vand.u32 %v2511, 4294901760
        %2708 = vmatmul.mubr.f32.gmra.mrb[0].mxu0 %v2707
        %v2709 = vpop.f32.mrb[0].mxu0
        %v2710 = vadd.f32 %v2616, %v2709
        %v2711 = vpop.f32.mrb[0].mxu0
        %2712 = vdwg.mxu0
        %2713 = vmatprep.subr.mxu0 0.0
        %v2714 = vand.u32 %v2478, 4294901760
        %v2715 = vsub.f32 %v2478, %v2714
        %2716 = vmatpush1.msra.mxu0 %v2715
        %2717 = vmatprep.subr.mxu0 0.0
        %2718 = vmatpush1.msra.mxu0 0.0
        %2719 = vmatprep.subr.mxu0 0.0
        %2720 = vmatpush1.msra.mxu0 0.0
        %2721 = vmatprep.subr.mxu0 0.0
        %2722 = vmatpush1.msra.mxu0 0.0
        %2723 = vmatprep.subr.mxu0 0.0
        %2724 = vmatpush1.msra.mxu0 0.0
        %2725 = vmatprep.subr.mxu0 0.0
        %2726 = vmatpush1.msra.mxu0 0.0
        %2727 = vmatprep.subr.mxu0 0.0
        %2728 = vmatpush1.msra.mxu0 0.0
        %2729 = vmatprep.subr.mxu0 0.0
        %2730 = vmatpush1.msra.mxu0 0.0
        %2731 = vmatprep.subr.mxu0 0.0
        %2732 = vmatpush1.msra.mxu0 0.0
        %2733 = vmatprep.subr.mxu0 0.0
        %2734 = vmatpush1.msra.mxu0 0.0
        %2735 = vmatprep.subr.mxu0 0.0
        %2736 = vmatpush1.msra.mxu0 0.0
        %2737 = vmatprep.subr.mxu0 0.0
        %2738 = vmatpush1.msra.mxu0 0.0
        %2739 = vmatprep.subr.mxu0 0.0
        %2740 = vmatpush1.msra.mxu0 0.0
        %2741 = vmatprep.subr.mxu0 0.0
        %2742 = vmatpush1.msra.mxu0 0.0
        %2743 = vmatprep.subr.mxu0 0.0
        %2744 = vmatpush1.msra.mxu0 0.0
        %2745 = vmatprep.subr.mxu0 0.0
        %2746 = vmatpush1.msra.mxu0 0.0
        %2747 = vmatprep.subr.mxu0 0.0
        %2748 = vmatpush1.msra.mxu0 0.0
        %2749 = vmatprep.subr.mxu0 0.0
        %2750 = vmatpush1.msra.mxu0 0.0
        %2751 = vmatprep.subr.mxu0 0.0
        %2752 = vmatpush1.msra.mxu0 0.0
        %2753 = vmatprep.subr.mxu0 0.0
        %2754 = vmatpush1.msra.mxu0 0.0
        %2755 = vmatprep.subr.mxu0 0.0
        %2756 = vmatpush1.msra.mxu0 0.0
        %2757 = vmatprep.subr.mxu0 0.0
        %2758 = vmatpush1.msra.mxu0 0.0
        %2759 = vmatprep.subr.mxu0 0.0
        %2760 = vmatpush1.msra.mxu0 0.0
        %2761 = vmatprep.subr.mxu0 0.0
        %2762 = vmatpush1.msra.mxu0 0.0
        %2763 = vmatprep.subr.mxu0 0.0
        %2764 = vmatpush1.msra.mxu0 0.0
        %2765 = vmatprep.subr.mxu0 0.0
        %2766 = vmatpush1.msra.mxu0 0.0
        %2767 = vmatprep.subr.mxu0 0.0
        %2768 = vmatpush1.msra.mxu0 0.0
        %2769 = vmatprep.subr.mxu0 0.0
        %2770 = vmatpush1.msra.mxu0 0.0
        %2771 = vmatprep.subr.mxu0 0.0
        %2772 = vmatpush1.msra.mxu0 0.0
        %2773 = vmatprep.subr.mxu0 0.0
        %2774 = vmatpush1.msra.mxu0 0.0
        %2775 = vmatprep.subr.mxu0 0.0
        %2776 = vmatpush1.msra.mxu0 0.0
        %2777 = vmatprep.subr.mxu0 0.0
        %2778 = vmatpush1.msra.mxu0 0.0
        %2779 = vmatprep.mubr.f32.mxu0 0.0
        %v2780 = vand.u32 %v2502, 4294901760
        %v2781 = vsub.f32 %v2502, %v2780
        %2782 = vmatmul.mubr.f32.gmra.mrb[0].mxu0 %v2781
        %v2783 = vpop.f32.mrb[0].mxu0
        %v2784 = vadd.f32 %v2692, %v2783
        %v2785 = vpop.f32.mrb[0].mxu0
        %2786 = vmatprep.mubr.f32.mxu0 0.0
        %v2787 = vand.u32 %v2505, 4294901760
        %v2788 = vsub.f32 %v2505, %v2787
        %2789 = vmatmul.mubr.f32.gmra.mrb[0].mxu0 %v2788
        %v2790 = vpop.f32.mrb[0].mxu0
        %v2791 = vadd.f32 %v2698, %v2790
        %v2792 = vpop.f32.mrb[0].mxu0
        %2793 = vmatprep.mubr.f32.mxu0 0.0
        %v2794 = vand.u32 %v2508, 4294901760
        %v2795 = vsub.f32 %v2508, %v2794
        %2796 = vmatmul.mubr.f32.gmra.mrb[0].mxu0 %v2795
        %v2797 = vpop.f32.mrb[0].mxu0
        %v2798 = vadd.f32 %v2704, %v2797
        %v2799 = vpop.f32.mrb[0].mxu0
        %2800 = vmatprep.mubr.f32.mxu0 0.0
        %v2801 = vand.u32 %v2511, 4294901760
        %v2802 = vsub.f32 %v2511, %v2801
        %2803 = vmatmul.mubr.f32.gmra.mrb[0].mxu0 %v2802
        %v2804 = vpop.f32.mrb[0].mxu0
        %v2805 = vadd.f32 %v2710, %v2804
        %v2806 = vpop.f32.mrb[0].mxu0
        %2807 = vdwg.mxu0
        %2808 = vmatprep.subr.mxu0 0.0
        %v2809 = vand.u32 %v2478, 4294901760
        %2810 = vmatpush1.msra.mxu0 %v2809
        %2811 = vmatprep.subr.mxu0 0.0
        %2812 = vmatpush1.msra.mxu0 0.0
        %2813 = vmatprep.subr.mxu0 0.0
        %2814 = vmatpush1.msra.mxu0 0.0
        %2815 = vmatprep.subr.mxu0 0.0
        %2816 = vmatpush1.msra.mxu0 0.0
        %2817 = vmatprep.subr.mxu0 0.0
        %2818 = vmatpush1.msra.mxu0 0.0
        %2819 = vmatprep.subr.mxu0 0.0
        %2820 = vmatpush1.msra.mxu0 0.0
        %2821 = vmatprep.subr.mxu0 0.0
        %2822 = vmatpush1.msra.mxu0 0.0
        %2823 = vmatprep.subr.mxu0 0.0
        %2824 = vmatpush1.msra.mxu0 0.0
        %2825 = vmatprep.subr.mxu0 0.0
        %2826 = vmatpush1.msra.mxu0 0.0
        %2827 = vmatprep.subr.mxu0 0.0
        %2828 = vmatpush1.msra.mxu0 0.0
        %2829 = vmatprep.subr.mxu0 0.0
        %2830 = vmatpush1.msra.mxu0 0.0
        %2831 = vmatprep.subr.mxu0 0.0
        %2832 = vmatpush1.msra.mxu0 0.0
        %2833 = vmatprep.subr.mxu0 0.0
        %2834 = vmatpush1.msra.mxu0 0.0
        %2835 = vmatprep.subr.mxu0 0.0
        %2836 = vmatpush1.msra.mxu0 0.0
        %2837 = vmatprep.subr.mxu0 0.0
        %2838 = vmatpush1.msra.mxu0 0.0
        %2839 = vmatprep.subr.mxu0 0.0
        %2840 = vmatpush1.msra.mxu0 0.0
        %2841 = vmatprep.subr.mxu0 0.0
        %2842 = vmatpush1.msra.mxu0 0.0
        %2843 = vmatprep.subr.mxu0 0.0
        %2844 = vmatpush1.msra.mxu0 0.0
        %2845 = vmatprep.subr.mxu0 0.0
        %2846 = vmatpush1.msra.mxu0 0.0
        %2847 = vmatprep.subr.mxu0 0.0
        %2848 = vmatpush1.msra.mxu0 0.0
        %2849 = vmatprep.subr.mxu0 0.0
        %2850 = vmatpush1.msra.mxu0 0.0
        %2851 = vmatprep.subr.mxu0 0.0
        %2852 = vmatpush1.msra.mxu0 0.0
        %2853 = vmatprep.subr.mxu0 0.0
        %2854 = vmatpush1.msra.mxu0 0.0
        %2855 = vmatprep.subr.mxu0 0.0
        %2856 = vmatpush1.msra.mxu0 0.0
        %2857 = vmatprep.subr.mxu0 0.0
        %2858 = vmatpush1.msra.mxu0 0.0
        %2859 = vmatprep.subr.mxu0 0.0
        %2860 = vmatpush1.msra.mxu0 0.0
        %2861 = vmatprep.subr.mxu0 0.0
        %2862 = vmatpush1.msra.mxu0 0.0
        %2863 = vmatprep.subr.mxu0 0.0
        %2864 = vmatpush1.msra.mxu0 0.0
        %2865 = vmatprep.subr.mxu0 0.0
        %2866 = vmatpush1.msra.mxu0 0.0
        %2867 = vmatprep.subr.mxu0 0.0
        %2868 = vmatpush1.msra.mxu0 0.0
        %2869 = vmatprep.subr.mxu0 0.0
        %2870 = vmatpush1.msra.mxu0 0.0
        %2871 = vmatprep.subr.mxu0 0.0
        %2872 = vmatpush1.msra.mxu0 0.0
        %2873 = vmatprep.mubr.f32.mxu0 0.0
        %v2874 = vand.u32 %v2502, 4294901760
        %v2875 = vsub.f32 %v2502, %v2874
        %v2876 = vand.u32 %v2875, 4294901760
        %2877 = vmatmul.mubr.f32.gmra.mrb[0].mxu0 %v2876
        %v2878 = vpop.f32.mrb[0].mxu0
        %v2879 = vadd.f32 %v2784, %v2878
        %v2880 = vpop.f32.mrb[0].mxu0
        %2881 = vmatprep.mubr.f32.mxu0 0.0
        %v2882 = vand.u32 %v2505, 4294901760
        %v2883 = vsub.f32 %v2505, %v2882
        %v2884 = vand.u32 %v2883, 4294901760
        %2885 = vmatmul.mubr.f32.gmra.mrb[0].mxu0 %v2884
        %v2886 = vpop.f32.mrb[0].mxu0
        %v2887 = vadd.f32 %v2791, %v2886
        %v2888 = vpop.f32.mrb[0].mxu0
        %2889 = vmatprep.mubr.f32.mxu0 0.0
        %v2890 = vand.u32 %v2508, 4294901760
        %v2891 = vsub.f32 %v2508, %v2890
        %v2892 = vand.u32 %v2891, 4294901760
        %2893 = vmatmul.mubr.f32.gmra.mrb[0].mxu0 %v2892
        %v2894 = vpop.f32.mrb[0].mxu0
        %v2895 = vadd.f32 %v2798, %v2894
        %v2896 = vpop.f32.mrb[0].mxu0
        %2897 = vmatprep.mubr.f32.mxu0 0.0
        %v2898 = vand.u32 %v2511, 4294901760
        %v2899 = vsub.f32 %v2511, %v2898
        %v2900 = vand.u32 %v2899, 4294901760
        %2901 = vmatmul.mubr.f32.gmra.mrb[0].mxu0 %v2900
        %v2902 = vpop.f32.mrb[0].mxu0
        %v2903 = vadd.f32 %v2805, %v2902
        %v2904 = vpop.f32.mrb[0].mxu0
        %2905 = vdwg.mxu0
        %2906 = vmatprep.subr.mxu0 0.0
        %v2907 = vand.u32 %v2478, 4294901760
        %v2908 = vsub.f32 %v2478, %v2907
        %v2909 = vand.u32 %v2908, 4294901760
        %2910 = vmatpush1.msra.mxu0 %v2909
        %2911 = vmatprep.subr.mxu0 0.0
        %2912 = vmatpush1.msra.mxu0 0.0
        %2913 = vmatprep.subr.mxu0 0.0
        %2914 = vmatpush1.msra.mxu0 0.0
        %2915 = vmatprep.subr.mxu0 0.0
        %2916 = vmatpush1.msra.mxu0 0.0
        %2917 = vmatprep.subr.mxu0 0.0
        %2918 = vmatpush1.msra.mxu0 0.0
        %2919 = vmatprep.subr.mxu0 0.0
        %2920 = vmatpush1.msra.mxu0 0.0
        %2921 = vmatprep.subr.mxu0 0.0
        %2922 = vmatpush1.msra.mxu0 0.0
        %2923 = vmatprep.subr.mxu0 0.0
        %2924 = vmatpush1.msra.mxu0 0.0
        %2925 = vmatprep.subr.mxu0 0.0
        %2926 = vmatpush1.msra.mxu0 0.0
        %2927 = vmatprep.subr.mxu0 0.0
        %2928 = vmatpush1.msra.mxu0 0.0
        %2929 = vmatprep.subr.mxu0 0.0
        %2930 = vmatpush1.msra.mxu0 0.0
        %2931 = vmatprep.subr.mxu0 0.0
        %2932 = vmatpush1.msra.mxu0 0.0
        %2933 = vmatprep.subr.mxu0 0.0
        %2934 = vmatpush1.msra.mxu0 0.0
        %2935 = vmatprep.subr.mxu0 0.0
        %2936 = vmatpush1.msra.mxu0 0.0
        %2937 = vmatprep.subr.mxu0 0.0
        %2938 = vmatpush1.msra.mxu0 0.0
        %2939 = vmatprep.subr.mxu0 0.0
        %2940 = vmatpush1.msra.mxu0 0.0
        %2941 = vmatprep.subr.mxu0 0.0
        %2942 = vmatpush1.msra.mxu0 0.0
        %2943 = vmatprep.subr.mxu0 0.0
        %2944 = vmatpush1.msra.mxu0 0.0
        %2945 = vmatprep.subr.mxu0 0.0
        %2946 = vmatpush1.msra.mxu0 0.0
        %2947 = vmatprep.subr.mxu0 0.0
        %2948 = vmatpush1.msra.mxu0 0.0
        %2949 = vmatprep.subr.mxu0 0.0
        %2950 = vmatpush1.msra.mxu0 0.0
        %2951 = vmatprep.subr.mxu0 0.0
        %2952 = vmatpush1.msra.mxu0 0.0
        %2953 = vmatprep.subr.mxu0 0.0
        %2954 = vmatpush1.msra.mxu0 0.0
        %2955 = vmatprep.subr.mxu0 0.0
        %2956 = vmatpush1.msra.mxu0 0.0
        %2957 = vmatprep.subr.mxu0 0.0
        %2958 = vmatpush1.msra.mxu0 0.0
        %2959 = vmatprep.subr.mxu0 0.0
        %2960 = vmatpush1.msra.mxu0 0.0
        %2961 = vmatprep.subr.mxu0 0.0
        %2962 = vmatpush1.msra.mxu0 0.0
        %2963 = vmatprep.subr.mxu0 0.0
        %2964 = vmatpush1.msra.mxu0 0.0
        %2965 = vmatprep.subr.mxu0 0.0
        %2966 = vmatpush1.msra.mxu0 0.0
        %2967 = vmatprep.subr.mxu0 0.0
        %2968 = vmatpush1.msra.mxu0 0.0
        %2969 = vmatprep.subr.mxu0 0.0
        %2970 = vmatpush1.msra.mxu0 0.0
        %2971 = vmatprep.subr.mxu0 0.0
        %2972 = vmatpush1.msra.mxu0 0.0
        %2973 = vmatprep.mubr.f32.mxu0 0.0
        %v2974 = vand.u32 %v2502, 4294901760
        %2975 = vmatmul.mubr.f32.gmra.mrb[0].mxu0 %v2974
        %v2976 = vpop.f32.mrb[0].mxu0
        %v2977 = vadd.f32 %v2879, %v2976
        %v2978 = vpop.f32.mrb[0].mxu0
        %2979 = vmatprep.mubr.f32.mxu0 0.0
        %v2980 = vand.u32 %v2505, 4294901760
        %2981 = vmatmul.mubr.f32.gmra.mrb[0].mxu0 %v2980
        %v2982 = vpop.f32.mrb[0].mxu0
        %v2983 = vadd.f32 %v2887, %v2982
        %v2984 = vpop.f32.mrb[0].mxu0
        %2985 = vmatprep.mubr.f32.mxu0 0.0
        %v2986 = vand.u32 %v2508, 4294901760
        %2987 = vmatmul.mubr.f32.gmra.mrb[0].mxu0 %v2986
        %v2988 = vpop.f32.mrb[0].mxu0
        %v2989 = vadd.f32 %v2895, %v2988
        %v2990 = vpop.f32.mrb[0].mxu0
        %2991 = vmatprep.mubr.f32.mxu0 0.0
        %v2992 = vand.u32 %v2511, 4294901760
        %2993 = vmatmul.mubr.f32.gmra.mrb[0].mxu0 %v2992
        %v2994 = vpop.f32.mrb[0].mxu0
        %v2995 = vadd.f32 %v2903, %v2994
        %v2996 = vpop.f32.mrb[0].mxu0
        %2997 = vdwg.mxu0
        %2998 = vmatprep.subr.mxu0 0.0
        %v2999 = vand.u32 %v2478, 4294901760
        %3000 = vmatpush1.msra.mxu0 %v2999
        %3001 = vmatprep.subr.mxu0 0.0
        %3002 = vmatpush1.msra.mxu0 0.0
        %3003 = vmatprep.subr.mxu0 0.0
        %3004 = vmatpush1.msra.mxu0 0.0
        %3005 = vmatprep.subr.mxu0 0.0
        %3006 = vmatpush1.msra.mxu0 0.0
        %3007 = vmatprep.subr.mxu0 0.0
        %3008 = vmatpush1.msra.mxu0 0.0
        %3009 = vmatprep.subr.mxu0 0.0
        %3010 = vmatpush1.msra.mxu0 0.0
        %3011 = vmatprep.subr.mxu0 0.0
        %3012 = vmatpush1.msra.mxu0 0.0
        %3013 = vmatprep.subr.mxu0 0.0
        %3014 = vmatpush1.msra.mxu0 0.0
        %3015 = vmatprep.subr.mxu0 0.0
        %3016 = vmatpush1.msra.mxu0 0.0
        %3017 = vmatprep.subr.mxu0 0.0
        %3018 = vmatpush1.msra.mxu0 0.0
        %3019 = vmatprep.subr.mxu0 0.0
        %3020 = vmatpush1.msra.mxu0 0.0
        %3021 = vmatprep.subr.mxu0 0.0
        %3022 = vmatpush1.msra.mxu0 0.0
        %3023 = vmatprep.subr.mxu0 0.0
        %3024 = vmatpush1.msra.mxu0 0.0
        %3025 = vmatprep.subr.mxu0 0.0
        %3026 = vmatpush1.msra.mxu0 0.0
        %3027 = vmatprep.subr.mxu0 0.0
        %3028 = vmatpush1.msra.mxu0 0.0
        %3029 = vmatprep.subr.mxu0 0.0
        %3030 = vmatpush1.msra.mxu0 0.0
        %3031 = vmatprep.subr.mxu0 0.0
        %3032 = vmatpush1.msra.mxu0 0.0
        %3033 = vmatprep.subr.mxu0 0.0
        %3034 = vmatpush1.msra.mxu0 0.0
        %3035 = vmatprep.subr.mxu0 0.0
        %3036 = vmatpush1.msra.mxu0 0.0
        %3037 = vmatprep.subr.mxu0 0.0
        %3038 = vmatpush1.msra.mxu0 0.0
        %3039 = vmatprep.subr.mxu0 0.0
        %3040 = vmatpush1.msra.mxu0 0.0
        %3041 = vmatprep.subr.mxu0 0.0
        %3042 = vmatpush1.msra.mxu0 0.0
        %3043 = vmatprep.subr.mxu0 0.0
        %3044 = vmatpush1.msra.mxu0 0.0
        %3045 = vmatprep.subr.mxu0 0.0
        %3046 = vmatpush1.msra.mxu0 0.0
        %3047 = vmatprep.subr.mxu0 0.0
        %3048 = vmatpush1.msra.mxu0 0.0
        %3049 = vmatprep.subr.mxu0 0.0
        %3050 = vmatpush1.msra.mxu0 0.0
        %3051 = vmatprep.subr.mxu0 0.0
        %3052 = vmatpush1.msra.mxu0 0.0
        %3053 = vmatprep.subr.mxu0 0.0
        %3054 = vmatpush1.msra.mxu0 0.0
        %3055 = vmatprep.subr.mxu0 0.0
        %3056 = vmatpush1.msra.mxu0 0.0
        %3057 = vmatprep.subr.mxu0 0.0
        %3058 = vmatpush1.msra.mxu0 0.0
        %3059 = vmatprep.subr.mxu0 0.0
        %3060 = vmatpush1.msra.mxu0 0.0
        %3061 = vmatprep.subr.mxu0 0.0
        %3062 = vmatpush1.msra.mxu0 0.0
        %3063 = vmatprep.mubr.f32.mxu0 0.0
        %v3064 = vand.u32 %v2502, 4294901760
        %3065 = vmatmul.mubr.f32.gmra.mrb[0].mxu0 %v3064
        %v3066 = vpop.f32.mrb[0].mxu0
        %v3067 = vadd.f32 %v2977, %v3066
        %v3068 = vpop.f32.mrb[0].mxu0
        %3069 = vmatprep.mubr.f32.mxu0 0.0
        %v3070 = vand.u32 %v2505, 4294901760
        %3071 = vmatmul.mubr.f32.gmra.mrb[0].mxu0 %v3070
        %v3072 = vpop.f32.mrb[0].mxu0
        %v3073 = vadd.f32 %v2983, %v3072
        %v3074 = vpop.f32.mrb[0].mxu0
        %3075 = vmatprep.mubr.f32.mxu0 0.0
        %v3076 = vand.u32 %v2508, 4294901760
        %3077 = vmatmul.mubr.f32.gmra.mrb[0].mxu0 %v3076
        %v3078 = vpop.f32.mrb[0].mxu0
        %v3079 = vadd.f32 %v2989, %v3078
        %v3080 = vpop.f32.mrb[0].mxu0
        %3081 = vmatprep.mubr.f32.mxu0 0.0
        %v3082 = vand.u32 %v2511, 4294901760
        %3083 = vmatmul.mubr.f32.gmra.mrb[0].mxu0 %v3082
        %v3084 = vpop.f32.mrb[0].mxu0
        %v3085 = vadd.f32 %v2995, %v3084
        %v3086 = vpop.f32.mrb[0].mxu0
        %3087 = vdwg.mxu0
        %v3088 = vxor.u32 %v3067, 2147483648
        %v3089 = vxor.u32 %v3073, 2147483648
        %v3090 = vxor.u32 %v3079, 2147483648
        %v3091 = vxor.u32 %v3085, 2147483648
        %v3092 = vmul.f32 %v3088, 1.442695
        %v3093 = vpow.pop %v3092
        %v3094 = vmul.f32 %v3089, 1.442695
        %v3095 = vpow.pop %v3094
        %v3096 = vmul.f32 %v3090, 1.442695
        %v3097 = vpow.pop %v3096
        %v3098 = vmul.f32 %v3091, 1.442695
        %v3099 = vpow.pop %v3098
        %v3100 = vadd.f32 %v3093, 1.0
        %v3101 = vadd.f32 %v3095, 1.0
        %v3102 = vadd.f32 %v3097, 1.0
        %v3103 = vadd.f32 %v3099, 1.0
        %v3104 = vrcp.pop %v3100
        %v3105 = vmul.f32 1.0, %v3104
        %v3106 = vrcp.pop %v3101
        %v3107 = vmul.f32 1.0, %v3106
        %v3108 = vrcp.pop %v3102
        %v3109 = vmul.f32 1.0, %v3108
        %v3110 = vrcp.pop %v3103
        %v3111 = vmul.f32 1.0, %v3110
        %3113 = vset.pattern.permute.xlu0 0
        %3114 = vperm.xlu0 %3113, %v1914
        %v3115 = vpop.permute.xlu0 %3114
        %3118 = vset.pattern.permute.xlu0 0
        %3119 = vperm.xlu0 %3118, %v1915
        %v3120 = vpop.permute.xlu0 %3119
        %3123 = vset.pattern.permute.xlu0 0
        %3124 = vperm.xlu0 %3123, %v1916
        %v3125 = vpop.permute.xlu0 %3124
        %3128 = vset.pattern.permute.xlu0 0
        %3129 = vperm.xlu0 %3128, %v1917
        %v3130 = vpop.permute.xlu0 %3129
        %v3133 = vsel %vm2500, %v1906, 0
        %v3136 = vsel %vm2500, %v1907, 0
        %v3139 = vsel %vm2500, %v1908, 0
        %v3142 = vsel %vm2500, %v1909, 0
        %3144 = vmatprep.subr.mxu0 0.0
        %v3145 = vand.u32 %v2479, 4294901760
        %3146 = vmatpush1.msra.mxu0 %v3145
        %3147 = vmatprep.subr.mxu0 0.0
        %3148 = vmatpush1.msra.mxu0 0.0
        %3149 = vmatprep.subr.mxu0 0.0
        %3150 = vmatpush1.msra.mxu0 0.0
        %3151 = vmatprep.subr.mxu0 0.0
        %3152 = vmatpush1.msra.mxu0 0.0
        %3153 = vmatprep.subr.mxu0 0.0
        %3154 = vmatpush1.msra.mxu0 0.0
        %3155 = vmatprep.subr.mxu0 0.0
        %3156 = vmatpush1.msra.mxu0 0.0
        %3157 = vmatprep.subr.mxu0 0.0
        %3158 = vmatpush1.msra.mxu0 0.0
        %3159 = vmatprep.subr.mxu0 0.0
        %3160 = vmatpush1.msra.mxu0 0.0
        %3161 = vmatprep.subr.mxu0 0.0
        %3162 = vmatpush1.msra.mxu0 0.0
        %3163 = vmatprep.subr.mxu0 0.0
        %3164 = vmatpush1.msra.mxu0 0.0
        %3165 = vmatprep.subr.mxu0 0.0
        %3166 = vmatpush1.msra.mxu0 0.0
        %3167 = vmatprep.subr.mxu0 0.0
        %3168 = vmatpush1.msra.mxu0 0.0
        %3169 = vmatprep.subr.mxu0 0.0
        %3170 = vmatpush1.msra.mxu0 0.0
        %3171 = vmatprep.subr.mxu0 0.0
        %3172 = vmatpush1.msra.mxu0 0.0
        %3173 = vmatprep.subr.mxu0 0.0
        %3174 = vmatpush1.msra.mxu0 0.0
        %3175 = vmatprep.subr.mxu0 0.0
        %3176 = vmatpush1.msra.mxu0 0.0
        %3177 = vmatprep.subr.mxu0 0.0
        %3178 = vmatpush1.msra.mxu0 0.0
        %3179 = vmatprep.subr.mxu0 0.0
        %3180 = vmatpush1.msra.mxu0 0.0
        %3181 = vmatprep.subr.mxu0 0.0
        %3182 = vmatpush1.msra.mxu0 0.0
        %3183 = vmatprep.subr.mxu0 0.0
        %3184 = vmatpush1.msra.mxu0 0.0
        %3185 = vmatprep.subr.mxu0 0.0
        %3186 = vmatpush1.msra.mxu0 0.0
        %3187 = vmatprep.subr.mxu0 0.0
        %3188 = vmatpush1.msra.mxu0 0.0
        %3189 = vmatprep.subr.mxu0 0.0
        %3190 = vmatpush1.msra.mxu0 0.0
        %3191 = vmatprep.subr.mxu0 0.0
        %3192 = vmatpush1.msra.mxu0 0.0
        %3193 = vmatprep.subr.mxu0 0.0
        %3194 = vmatpush1.msra.mxu0 0.0
        %3195 = vmatprep.subr.mxu0 0.0
        %3196 = vmatpush1.msra.mxu0 0.0
        %3197 = vmatprep.subr.mxu0 0.0
        %3198 = vmatpush1.msra.mxu0 0.0
        %3199 = vmatprep.subr.mxu0 0.0
        %3200 = vmatpush1.msra.mxu0 0.0
        %3201 = vmatprep.subr.mxu0 0.0
        %3202 = vmatpush1.msra.mxu0 0.0
        %3203 = vmatprep.subr.mxu0 0.0
        %3204 = vmatpush1.msra.mxu0 0.0
        %3205 = vmatprep.subr.mxu0 0.0
        %3206 = vmatpush1.msra.mxu0 0.0
        %3207 = vmatprep.subr.mxu0 0.0
        %3208 = vmatpush1.msra.mxu0 0.0
        %3209 = vmatprep.mubr.f32.mxu0 0.0
        %v3210 = vand.u32 %v3133, 4294901760
        %v3211 = vsub.f32 %v3133, %v3210
        %v3212 = vand.u32 %v3211, 4294901760
        %v3213 = vsub.f32 %v3211, %v3212
        %v3214 = vand.u32 %v3213, 4294901760
        %3215 = vmatmul.mubr.f32.gmra.mrb[0].mxu0 %v3214
        %v3216 = vpop.f32.mrb[0].mxu0
        %v3217 = vadd.f32 %v3115, %v3216
        %v3218 = vpop.f32.mrb[0].mxu0
        %3219 = vmatprep.mubr.f32.mxu0 0.0
        %v3220 = vand.u32 %v3136, 4294901760
        %v3221 = vsub.f32 %v3136, %v3220
        %v3222 = vand.u32 %v3221, 4294901760
        %v3223 = vsub.f32 %v3221, %v3222
        %v3224 = vand.u32 %v3223, 4294901760
        %3225 = vmatmul.mubr.f32.gmra.mrb[0].mxu0 %v3224
        %v3226 = vpop.f32.mrb[0].mxu0
        %v3227 = vadd.f32 %v3120, %v3226
        %v3228 = vpop.f32.mrb[0].mxu0
        %3229 = vmatprep.mubr.f32.mxu0 0.0
        %v3230 = vand.u32 %v3139, 4294901760
        %v3231 = vsub.f32 %v3139, %v3230
        %v3232 = vand.u32 %v3231, 4294901760
        %v3233 = vsub.f32 %v3231, %v3232
        %v3234 = vand.u32 %v3233, 4294901760
        %3235 = vmatmul.mubr.f32.gmra.mrb[0].mxu0 %v3234
        %v3236 = vpop.f32.mrb[0].mxu0
        %v3237 = vadd.f32 %v3125, %v3236
        %v3238 = vpop.f32.mrb[0].mxu0
        %3239 = vmatprep.mubr.f32.mxu0 0.0
        %v3240 = vand.u32 %v3142, 4294901760
        %v3241 = vsub.f32 %v3142, %v3240
        %v3242 = vand.u32 %v3241, 4294901760
        %v3243 = vsub.f32 %v3241, %v3242
        %v3244 = vand.u32 %v3243, 4294901760
        %3245 = vmatmul.mubr.f32.gmra.mrb[0].mxu0 %v3244
        %v3246 = vpop.f32.mrb[0].mxu0
        %v3247 = vadd.f32 %v3130, %v3246
        %v3248 = vpop.f32.mrb[0].mxu0
        %3249 = vdwg.mxu0
        %3250 = vmatprep.subr.mxu0 0.0
        %v3251 = vand.u32 %v2479, 4294901760
        %v3252 = vsub.f32 %v2479, %v3251
        %v3253 = vand.u32 %v3252, 4294901760
        %v3254 = vsub.f32 %v3252, %v3253
        %v3255 = vand.u32 %v3254, 4294901760
        %3256 = vmatpush1.msra.mxu0 %v3255
        %3257 = vmatprep.subr.mxu0 0.0
        %3258 = vmatpush1.msra.mxu0 0.0
        %3259 = vmatprep.subr.mxu0 0.0
        %3260 = vmatpush1.msra.mxu0 0.0
        %3261 = vmatprep.subr.mxu0 0.0
        %3262 = vmatpush1.msra.mxu0 0.0
        %3263 = vmatprep.subr.mxu0 0.0
        %3264 = vmatpush1.msra.mxu0 0.0
        %3265 = vmatprep.subr.mxu0 0.0
        %3266 = vmatpush1.msra.mxu0 0.0
        %3267 = vmatprep.subr.mxu0 0.0
        %3268 = vmatpush1.msra.mxu0 0.0
        %3269 = vmatprep.subr.mxu0 0.0
        %3270 = vmatpush1.msra.mxu0 0.0
        %3271 = vmatprep.subr.mxu0 0.0
        %3272 = vmatpush1.msra.mxu0 0.0
        %3273 = vmatprep.subr.mxu0 0.0
        %3274 = vmatpush1.msra.mxu0 0.0
        %3275 = vmatprep.subr.mxu0 0.0
        %3276 = vmatpush1.msra.mxu0 0.0
        %3277 = vmatprep.subr.mxu0 0.0
        %3278 = vmatpush1.msra.mxu0 0.0
        %3279 = vmatprep.subr.mxu0 0.0
        %3280 = vmatpush1.msra.mxu0 0.0
        %3281 = vmatprep.subr.mxu0 0.0
        %3282 = vmatpush1.msra.mxu0 0.0
        %3283 = vmatprep.subr.mxu0 0.0
        %3284 = vmatpush1.msra.mxu0 0.0
        %3285 = vmatprep.subr.mxu0 0.0
        %3286 = vmatpush1.msra.mxu0 0.0
        %3287 = vmatprep.subr.mxu0 0.0
        %3288 = vmatpush1.msra.mxu0 0.0
        %3289 = vmatprep.subr.mxu0 0.0
        %3290 = vmatpush1.msra.mxu0 0.0
        %3291 = vmatprep.subr.mxu0 0.0
        %3292 = vmatpush1.msra.mxu0 0.0
        %3293 = vmatprep.subr.mxu0 0.0
        %3294 = vmatpush1.msra.mxu0 0.0
        %3295 = vmatprep.subr.mxu0 0.0
        %3296 = vmatpush1.msra.mxu0 0.0
        %3297 = vmatprep.subr.mxu0 0.0
        %3298 = vmatpush1.msra.mxu0 0.0
        %3299 = vmatprep.subr.mxu0 0.0
        %3300 = vmatpush1.msra.mxu0 0.0
        %3301 = vmatprep.subr.mxu0 0.0
        %3302 = vmatpush1.msra.mxu0 0.0
        %3303 = vmatprep.subr.mxu0 0.0
        %3304 = vmatpush1.msra.mxu0 0.0
        %3305 = vmatprep.subr.mxu0 0.0
        %3306 = vmatpush1.msra.mxu0 0.0
        %3307 = vmatprep.subr.mxu0 0.0
        %3308 = vmatpush1.msra.mxu0 0.0
        %3309 = vmatprep.subr.mxu0 0.0
        %3310 = vmatpush1.msra.mxu0 0.0
        %3311 = vmatprep.subr.mxu0 0.0
        %3312 = vmatpush1.msra.mxu0 0.0
        %3313 = vmatprep.subr.mxu0 0.0
        %3314 = vmatpush1.msra.mxu0 0.0
        %3315 = vmatprep.subr.mxu0 0.0
        %3316 = vmatpush1.msra.mxu0 0.0
        %3317 = vmatprep.subr.mxu0 0.0
        %3318 = vmatpush1.msra.mxu0 0.0
        %3319 = vmatprep.mubr.f32.mxu0 0.0
        %v3320 = vand.u32 %v3133, 4294901760
        %3321 = vmatmul.mubr.f32.gmra.mrb[0].mxu0 %v3320
        %v3322 = vpop.f32.mrb[0].mxu0
        %v3323 = vadd.f32 %v3217, %v3322
        %v3324 = vpop.f32.mrb[0].mxu0
        %3325 = vmatprep.mubr.f32.mxu0 0.0
        %v3326 = vand.u32 %v3136, 4294901760
        %3327 = vmatmul.mubr.f32.gmra.mrb[0].mxu0 %v3326
        %v3328 = vpop.f32.mrb[0].mxu0
        %v3329 = vadd.f32 %v3227, %v3328
        %v3330 = vpop.f32.mrb[0].mxu0
        %3331 = vmatprep.mubr.f32.mxu0 0.0
        %v3332 = vand.u32 %v3139, 4294901760
        %3333 = vmatmul.mubr.f32.gmra.mrb[0].mxu0 %v3332
        %v3334 = vpop.f32.mrb[0].mxu0
        %v3335 = vadd.f32 %v3237, %v3334
        %v3336 = vpop.f32.mrb[0].mxu0
        %3337 = vmatprep.mubr.f32.mxu0 0.0
        %v3338 = vand.u32 %v3142, 4294901760
        %3339 = vmatmul.mubr.f32.gmra.mrb[0].mxu0 %v3338
        %v3340 = vpop.f32.mrb[0].mxu0
        %v3341 = vadd.f32 %v3247, %v3340
        %v3342 = vpop.f32.mrb[0].mxu0
        %3343 = vdwg.mxu0
        %3344 = vmatprep.subr.mxu0 0.0
        %v3345 = vand.u32 %v2479, 4294901760
        %v3346 = vsub.f32 %v2479, %v3345
        %3347 = vmatpush1.msra.mxu0 %v3346
        %3348 = vmatprep.subr.mxu0 0.0
        %3349 = vmatpush1.msra.mxu0 0.0
        %3350 = vmatprep.subr.mxu0 0.0
        %3351 = vmatpush1.msra.mxu0 0.0
        %3352 = vmatprep.subr.mxu0 0.0
        %3353 = vmatpush1.msra.mxu0 0.0
        %3354 = vmatprep.subr.mxu0 0.0
        %3355 = vmatpush1.msra.mxu0 0.0
        %3356 = vmatprep.subr.mxu0 0.0
        %3357 = vmatpush1.msra.mxu0 0.0
        %3358 = vmatprep.subr.mxu0 0.0
        %3359 = vmatpush1.msra.mxu0 0.0
        %3360 = vmatprep.subr.mxu0 0.0
        %3361 = vmatpush1.msra.mxu0 0.0
        %3362 = vmatprep.subr.mxu0 0.0
        %3363 = vmatpush1.msra.mxu0 0.0
        %3364 = vmatprep.subr.mxu0 0.0
        %3365 = vmatpush1.msra.mxu0 0.0
        %3366 = vmatprep.subr.mxu0 0.0
        %3367 = vmatpush1.msra.mxu0 0.0
        %3368 = vmatprep.subr.mxu0 0.0
        %3369 = vmatpush1.msra.mxu0 0.0
        %3370 = vmatprep.subr.mxu0 0.0
        %3371 = vmatpush1.msra.mxu0 0.0
        %3372 = vmatprep.subr.mxu0 0.0
        %3373 = vmatpush1.msra.mxu0 0.0
        %3374 = vmatprep.subr.mxu0 0.0
        %3375 = vmatpush1.msra.mxu0 0.0
        %3376 = vmatprep.subr.mxu0 0.0
        %3377 = vmatpush1.msra.mxu0 0.0
        %3378 = vmatprep.subr.mxu0 0.0
        %3379 = vmatpush1.msra.mxu0 0.0
        %3380 = vmatprep.subr.mxu0 0.0
        %3381 = vmatpush1.msra.mxu0 0.0
        %3382 = vmatprep.subr.mxu0 0.0
        %3383 = vmatpush1.msra.mxu0 0.0
        %3384 = vmatprep.subr.mxu0 0.0
        %3385 = vmatpush1.msra.mxu0 0.0
        %3386 = vmatprep.subr.mxu0 0.0
        %3387 = vmatpush1.msra.mxu0 0.0
        %3388 = vmatprep.subr.mxu0 0.0
        %3389 = vmatpush1.msra.mxu0 0.0
        %3390 = vmatprep.subr.mxu0 0.0
        %3391 = vmatpush1.msra.mxu0 0.0
        %3392 = vmatprep.subr.mxu0 0.0
        %3393 = vmatpush1.msra.mxu0 0.0
        %3394 = vmatprep.subr.mxu0 0.0
        %3395 = vmatpush1.msra.mxu0 0.0
        %3396 = vmatprep.subr.mxu0 0.0
        %3397 = vmatpush1.msra.mxu0 0.0
        %3398 = vmatprep.subr.mxu0 0.0
        %3399 = vmatpush1.msra.mxu0 0.0
        %3400 = vmatprep.subr.mxu0 0.0
        %3401 = vmatpush1.msra.mxu0 0.0
        %3402 = vmatprep.subr.mxu0 0.0
        %3403 = vmatpush1.msra.mxu0 0.0
        %3404 = vmatprep.subr.mxu0 0.0
        %3405 = vmatpush1.msra.mxu0 0.0
        %3406 = vmatprep.subr.mxu0 0.0
        %3407 = vmatpush1.msra.mxu0 0.0
        %3408 = vmatprep.subr.mxu0 0.0
        %3409 = vmatpush1.msra.mxu0 0.0
        %3410 = vmatprep.mubr.f32.mxu0 0.0
        %v3411 = vand.u32 %v3133, 4294901760
        %v3412 = vsub.f32 %v3133, %v3411
        %3413 = vmatmul.mubr.f32.gmra.mrb[0].mxu0 %v3412
        %v3414 = vpop.f32.mrb[0].mxu0
        %v3415 = vadd.f32 %v3323, %v3414
        %v3416 = vpop.f32.mrb[0].mxu0
        %3417 = vmatprep.mubr.f32.mxu0 0.0
        %v3418 = vand.u32 %v3136, 4294901760
        %v3419 = vsub.f32 %v3136, %v3418
        %3420 = vmatmul.mubr.f32.gmra.mrb[0].mxu0 %v3419
        %v3421 = vpop.f32.mrb[0].mxu0
        %v3422 = vadd.f32 %v3329, %v3421
        %v3423 = vpop.f32.mrb[0].mxu0
        %3424 = vmatprep.mubr.f32.mxu0 0.0
        %v3425 = vand.u32 %v3139, 4294901760
        %v3426 = vsub.f32 %v3139, %v3425
        %3427 = vmatmul.mubr.f32.gmra.mrb[0].mxu0 %v3426
        %v3428 = vpop.f32.mrb[0].mxu0
        %v3429 = vadd.f32 %v3335, %v3428
        %v3430 = vpop.f32.mrb[0].mxu0
        %3431 = vmatprep.mubr.f32.mxu0 0.0
        %v3432 = vand.u32 %v3142, 4294901760
        %v3433 = vsub.f32 %v3142, %v3432
        %3434 = vmatmul.mubr.f32.gmra.mrb[0].mxu0 %v3433
        %v3435 = vpop.f32.mrb[0].mxu0
        %v3436 = vadd.f32 %v3341, %v3435
        %v3437 = vpop.f32.mrb[0].mxu0
        %3438 = vdwg.mxu0
        %3439 = vmatprep.subr.mxu0 0.0
        %v3440 = vand.u32 %v2479, 4294901760
        %3441 = vmatpush1.msra.mxu0 %v3440
        %3442 = vmatprep.subr.mxu0 0.0
        %3443 = vmatpush1.msra.mxu0 0.0
        %3444 = vmatprep.subr.mxu0 0.0
        %3445 = vmatpush1.msra.mxu0 0.0
        %3446 = vmatprep.subr.mxu0 0.0
        %3447 = vmatpush1.msra.mxu0 0.0
        %3448 = vmatprep.subr.mxu0 0.0
        %3449 = vmatpush1.msra.mxu0 0.0
        %3450 = vmatprep.subr.mxu0 0.0
        %3451 = vmatpush1.msra.mxu0 0.0
        %3452 = vmatprep.subr.mxu0 0.0
        %3453 = vmatpush1.msra.mxu0 0.0
        %3454 = vmatprep.subr.mxu0 0.0
        %3455 = vmatpush1.msra.mxu0 0.0
        %3456 = vmatprep.subr.mxu0 0.0
        %3457 = vmatpush1.msra.mxu0 0.0
        %3458 = vmatprep.subr.mxu0 0.0
        %3459 = vmatpush1.msra.mxu0 0.0
        %3460 = vmatprep.subr.mxu0 0.0
        %3461 = vmatpush1.msra.mxu0 0.0
        %3462 = vmatprep.subr.mxu0 0.0
        %3463 = vmatpush1.msra.mxu0 0.0
        %3464 = vmatprep.subr.mxu0 0.0
        %3465 = vmatpush1.msra.mxu0 0.0
        %3466 = vmatprep.subr.mxu0 0.0
        %3467 = vmatpush1.msra.mxu0 0.0
        %3468 = vmatprep.subr.mxu0 0.0
        %3469 = vmatpush1.msra.mxu0 0.0
        %3470 = vmatprep.subr.mxu0 0.0
        %3471 = vmatpush1.msra.mxu0 0.0
        %3472 = vmatprep.subr.mxu0 0.0
        %3473 = vmatpush1.msra.mxu0 0.0
        %3474 = vmatprep.subr.mxu0 0.0
        %3475 = vmatpush1.msra.mxu0 0.0
        %3476 = vmatprep.subr.mxu0 0.0
        %3477 = vmatpush1.msra.mxu0 0.0
        %3478 = vmatprep.subr.mxu0 0.0
        %3479 = vmatpush1.msra.mxu0 0.0
        %3480 = vmatprep.subr.mxu0 0.0
        %3481 = vmatpush1.msra.mxu0 0.0
        %3482 = vmatprep.subr.mxu0 0.0
        %3483 = vmatpush1.msra.mxu0 0.0
        %3484 = vmatprep.subr.mxu0 0.0
        %3485 = vmatpush1.msra.mxu0 0.0
        %3486 = vmatprep.subr.mxu0 0.0
        %3487 = vmatpush1.msra.mxu0 0.0
        %3488 = vmatprep.subr.mxu0 0.0
        %3489 = vmatpush1.msra.mxu0 0.0
        %3490 = vmatprep.subr.mxu0 0.0
        %3491 = vmatpush1.msra.mxu0 0.0
        %3492 = vmatprep.subr.mxu0 0.0
        %3493 = vmatpush1.msra.mxu0 0.0
        %3494 = vmatprep.subr.mxu0 0.0
        %3495 = vmatpush1.msra.mxu0 0.0
        %3496 = vmatprep.subr.mxu0 0.0
        %3497 = vmatpush1.msra.mxu0 0.0
        %3498 = vmatprep.subr.mxu0 0.0
        %3499 = vmatpush1.msra.mxu0 0.0
        %3500 = vmatprep.subr.mxu0 0.0
        %3501 = vmatpush1.msra.mxu0 0.0
        %3502 = vmatprep.subr.mxu0 0.0
        %3503 = vmatpush1.msra.mxu0 0.0
        %3504 = vmatprep.mubr.f32.mxu0 0.0
        %v3505 = vand.u32 %v3133, 4294901760
        %v3506 = vsub.f32 %v3133, %v3505
        %v3507 = vand.u32 %v3506, 4294901760
        %3508 = vmatmul.mubr.f32.gmra.mrb[0].mxu0 %v3507
        %v3509 = vpop.f32.mrb[0].mxu0
        %v3510 = vadd.f32 %v3415, %v3509
        %v3511 = vpop.f32.mrb[0].mxu0
        %3512 = vmatprep.mubr.f32.mxu0 0.0
        %v3513 = vand.u32 %v3136, 4294901760
        %v3514 = vsub.f32 %v3136, %v3513
        %v3515 = vand.u32 %v3514, 4294901760
        %3516 = vmatmul.mubr.f32.gmra.mrb[0].mxu0 %v3515
        %v3517 = vpop.f32.mrb[0].mxu0
        %v3518 = vadd.f32 %v3422, %v3517
        %v3519 = vpop.f32.mrb[0].mxu0
        %3520 = vmatprep.mubr.f32.mxu0 0.0
        %v3521 = vand.u32 %v3139, 4294901760
        %v3522 = vsub.f32 %v3139, %v3521
        %v3523 = vand.u32 %v3522, 4294901760
        %3524 = vmatmul.mubr.f32.gmra.mrb[0].mxu0 %v3523
        %v3525 = vpop.f32.mrb[0].mxu0
        %v3526 = vadd.f32 %v3429, %v3525
        %v3527 = vpop.f32.mrb[0].mxu0
        %3528 = vmatprep.mubr.f32.mxu0 0.0
        %v3529 = vand.u32 %v3142, 4294901760
        %v3530 = vsub.f32 %v3142, %v3529
        %v3531 = vand.u32 %v3530, 4294901760
        %3532 = vmatmul.mubr.f32.gmra.mrb[0].mxu0 %v3531
        %v3533 = vpop.f32.mrb[0].mxu0
        %v3534 = vadd.f32 %v3436, %v3533
        %v3535 = vpop.f32.mrb[0].mxu0
        %3536 = vdwg.mxu0
        %3537 = vmatprep.subr.mxu0 0.0
        %v3538 = vand.u32 %v2479, 4294901760
        %v3539 = vsub.f32 %v2479, %v3538
        %v3540 = vand.u32 %v3539, 4294901760
        %3541 = vmatpush1.msra.mxu0 %v3540
        %3542 = vmatprep.subr.mxu0 0.0
        %3543 = vmatpush1.msra.mxu0 0.0
        %3544 = vmatprep.subr.mxu0 0.0
        %3545 = vmatpush1.msra.mxu0 0.0
        %3546 = vmatprep.subr.mxu0 0.0
        %3547 = vmatpush1.msra.mxu0 0.0
        %3548 = vmatprep.subr.mxu0 0.0
        %3549 = vmatpush1.msra.mxu0 0.0
        %3550 = vmatprep.subr.mxu0 0.0
        %3551 = vmatpush1.msra.mxu0 0.0
        %3552 = vmatprep.subr.mxu0 0.0
        %3553 = vmatpush1.msra.mxu0 0.0
        %3554 = vmatprep.subr.mxu0 0.0
        %3555 = vmatpush1.msra.mxu0 0.0
        %3556 = vmatprep.subr.mxu0 0.0
        %3557 = vmatpush1.msra.mxu0 0.0
        %3558 = vmatprep.subr.mxu0 0.0
        %3559 = vmatpush1.msra.mxu0 0.0
        %3560 = vmatprep.subr.mxu0 0.0
        %3561 = vmatpush1.msra.mxu0 0.0
        %3562 = vmatprep.subr.mxu0 0.0
        %3563 = vmatpush1.msra.mxu0 0.0
        %3564 = vmatprep.subr.mxu0 0.0
        %3565 = vmatpush1.msra.mxu0 0.0
        %3566 = vmatprep.subr.mxu0 0.0
        %3567 = vmatpush1.msra.mxu0 0.0
        %3568 = vmatprep.subr.mxu0 0.0
        %3569 = vmatpush1.msra.mxu0 0.0
        %3570 = vmatprep.subr.mxu0 0.0
        %3571 = vmatpush1.msra.mxu0 0.0
        %3572 = vmatprep.subr.mxu0 0.0
        %3573 = vmatpush1.msra.mxu0 0.0
        %3574 = vmatprep.subr.mxu0 0.0
        %3575 = vmatpush1.msra.mxu0 0.0
        %3576 = vmatprep.subr.mxu0 0.0
        %3577 = vmatpush1.msra.mxu0 0.0
        %3578 = vmatprep.subr.mxu0 0.0
        %3579 = vmatpush1.msra.mxu0 0.0
        %3580 = vmatprep.subr.mxu0 0.0
        %3581 = vmatpush1.msra.mxu0 0.0
        %3582 = vmatprep.subr.mxu0 0.0
        %3583 = vmatpush1.msra.mxu0 0.0
        %3584 = vmatprep.subr.mxu0 0.0
        %3585 = vmatpush1.msra.mxu0 0.0
        %3586 = vmatprep.subr.mxu0 0.0
        %3587 = vmatpush1.msra.mxu0 0.0
        %3588 = vmatprep.subr.mxu0 0.0
        %3589 = vmatpush1.msra.mxu0 0.0
        %3590 = vmatprep.subr.mxu0 0.0
        %3591 = vmatpush1.msra.mxu0 0.0
        %3592 = vmatprep.subr.mxu0 0.0
        %3593 = vmatpush1.msra.mxu0 0.0
        %3594 = vmatprep.subr.mxu0 0.0
        %3595 = vmatpush1.msra.mxu0 0.0
        %3596 = vmatprep.subr.mxu0 0.0
        %3597 = vmatpush1.msra.mxu0 0.0
        %3598 = vmatprep.subr.mxu0 0.0
        %3599 = vmatpush1.msra.mxu0 0.0
        %3600 = vmatprep.subr.mxu0 0.0
        %3601 = vmatpush1.msra.mxu0 0.0
        %3602 = vmatprep.subr.mxu0 0.0
        %3603 = vmatpush1.msra.mxu0 0.0
        %3604 = vmatprep.mubr.f32.mxu0 0.0
        %v3605 = vand.u32 %v3133, 4294901760
        %3606 = vmatmul.mubr.f32.gmra.mrb[0].mxu0 %v3605
        %v3607 = vpop.f32.mrb[0].mxu0
        %v3608 = vadd.f32 %v3510, %v3607
        %v3609 = vpop.f32.mrb[0].mxu0
        %3610 = vmatprep.mubr.f32.mxu0 0.0
        %v3611 = vand.u32 %v3136, 4294901760
        %3612 = vmatmul.mubr.f32.gmra.mrb[0].mxu0 %v3611
        %v3613 = vpop.f32.mrb[0].mxu0
        %v3614 = vadd.f32 %v3518, %v3613
        %v3615 = vpop.f32.mrb[0].mxu0
        %3616 = vmatprep.mubr.f32.mxu0 0.0
        %v3617 = vand.u32 %v3139, 4294901760
        %3618 = vmatmul.mubr.f32.gmra.mrb[0].mxu0 %v3617
        %v3619 = vpop.f32.mrb[0].mxu0
        %v3620 = vadd.f32 %v3526, %v3619
        %v3621 = vpop.f32.mrb[0].mxu0
        %3622 = vmatprep.mubr.f32.mxu0 0.0
        %v3623 = vand.u32 %v3142, 4294901760
        %3624 = vmatmul.mubr.f32.gmra.mrb[0].mxu0 %v3623
        %v3625 = vpop.f32.mrb[0].mxu0
        %v3626 = vadd.f32 %v3534, %v3625
        %v3627 = vpop.f32.mrb[0].mxu0
        %3628 = vdwg.mxu0
        %3629 = vmatprep.subr.mxu0 0.0
        %v3630 = vand.u32 %v2479, 4294901760
        %3631 = vmatpush1.msra.mxu0 %v3630
        %3632 = vmatprep.subr.mxu0 0.0
        %3633 = vmatpush1.msra.mxu0 0.0
        %3634 = vmatprep.subr.mxu0 0.0
        %3635 = vmatpush1.msra.mxu0 0.0
        %3636 = vmatprep.subr.mxu0 0.0
        %3637 = vmatpush1.msra.mxu0 0.0
        %3638 = vmatprep.subr.mxu0 0.0
        %3639 = vmatpush1.msra.mxu0 0.0
        %3640 = vmatprep.subr.mxu0 0.0
        %3641 = vmatpush1.msra.mxu0 0.0
        %3642 = vmatprep.subr.mxu0 0.0
        %3643 = vmatpush1.msra.mxu0 0.0
        %3644 = vmatprep.subr.mxu0 0.0
        %3645 = vmatpush1.msra.mxu0 0.0
        %3646 = vmatprep.subr.mxu0 0.0
        %3647 = vmatpush1.msra.mxu0 0.0
        %3648 = vmatprep.subr.mxu0 0.0
        %3649 = vmatpush1.msra.mxu0 0.0
        %3650 = vmatprep.subr.mxu0 0.0
        %3651 = vmatpush1.msra.mxu0 0.0
        %3652 = vmatprep.subr.mxu0 0.0
        %3653 = vmatpush1.msra.mxu0 0.0
        %3654 = vmatprep.subr.mxu0 0.0
        %3655 = vmatpush1.msra.mxu0 0.0
        %3656 = vmatprep.subr.mxu0 0.0
        %3657 = vmatpush1.msra.mxu0 0.0
        %3658 = vmatprep.subr.mxu0 0.0
        %3659 = vmatpush1.msra.mxu0 0.0
        %3660 = vmatprep.subr.mxu0 0.0
        %3661 = vmatpush1.msra.mxu0 0.0
        %3662 = vmatprep.subr.mxu0 0.0
        %3663 = vmatpush1.msra.mxu0 0.0
        %3664 = vmatprep.subr.mxu0 0.0
        %3665 = vmatpush1.msra.mxu0 0.0
        %3666 = vmatprep.subr.mxu0 0.0
        %3667 = vmatpush1.msra.mxu0 0.0
        %3668 = vmatprep.subr.mxu0 0.0
        %3669 = vmatpush1.msra.mxu0 0.0
        %3670 = vmatprep.subr.mxu0 0.0
        %3671 = vmatpush1.msra.mxu0 0.0
        %3672 = vmatprep.subr.mxu0 0.0
        %3673 = vmatpush1.msra.mxu0 0.0
        %3674 = vmatprep.subr.mxu0 0.0
        %3675 = vmatpush1.msra.mxu0 0.0
        %3676 = vmatprep.subr.mxu0 0.0
        %3677 = vmatpush1.msra.mxu0 0.0
        %3678 = vmatprep.subr.mxu0 0.0
        %3679 = vmatpush1.msra.mxu0 0.0
        %3680 = vmatprep.subr.mxu0 0.0
        %3681 = vmatpush1.msra.mxu0 0.0
        %3682 = vmatprep.subr.mxu0 0.0
        %3683 = vmatpush1.msra.mxu0 0.0
        %3684 = vmatprep.subr.mxu0 0.0
        %3685 = vmatpush1.msra.mxu0 0.0
        %3686 = vmatprep.subr.mxu0 0.0
        %3687 = vmatpush1.msra.mxu0 0.0
        %3688 = vmatprep.subr.mxu0 0.0
        %3689 = vmatpush1.msra.mxu0 0.0
        %3690 = vmatprep.subr.mxu0 0.0
        %3691 = vmatpush1.msra.mxu0 0.0
        %3692 = vmatprep.subr.mxu0 0.0
        %3693 = vmatpush1.msra.mxu0 0.0
        %3694 = vmatprep.mubr.f32.mxu0 0.0
        %v3695 = vand.u32 %v3133, 4294901760
        %3696 = vmatmul.mubr.f32.gmra.mrb[0].mxu0 %v3695
        %v3697 = vpop.f32.mrb[0].mxu0
        %v3698 = vadd.f32 %v3608, %v3697
        %v3699 = vpop.f32.mrb[0].mxu0
        %3700 = vmatprep.mubr.f32.mxu0 0.0
        %v3701 = vand.u32 %v3136, 4294901760
        %3702 = vmatmul.mubr.f32.gmra.mrb[0].mxu0 %v3701
        %v3703 = vpop.f32.mrb[0].mxu0
        %v3704 = vadd.f32 %v3614, %v3703
        %v3705 = vpop.f32.mrb[0].mxu0
        %3706 = vmatprep.mubr.f32.mxu0 0.0
        %v3707 = vand.u32 %v3139, 4294901760
        %3708 = vmatmul.mubr.f32.gmra.mrb[0].mxu0 %v3707
        %v3709 = vpop.f32.mrb[0].mxu0
        %v3710 = vadd.f32 %v3620, %v3709
        %v3711 = vpop.f32.mrb[0].mxu0
        %3712 = vmatprep.mubr.f32.mxu0 0.0
        %v3713 = vand.u32 %v3142, 4294901760
        %3714 = vmatmul.mubr.f32.gmra.mrb[0].mxu0 %v3713
        %v3715 = vpop.f32.mrb[0].mxu0
        %v3716 = vadd.f32 %v3626, %v3715
        %v3717 = vpop.f32.mrb[0].mxu0
        %3718 = vdwg.mxu0
        %v3719 = vxor.u32 %v3698, 2147483648
        %v3720 = vxor.u32 %v3704, 2147483648
        %v3721 = vxor.u32 %v3710, 2147483648
        %v3722 = vxor.u32 %v3716, 2147483648
        %v3723 = vmul.f32 %v3719, 1.442695
        %v3724 = vpow.pop %v3723
        %v3725 = vmul.f32 %v3720, 1.442695
        %v3726 = vpow.pop %v3725
        %v3727 = vmul.f32 %v3721, 1.442695
        %v3728 = vpow.pop %v3727
        %v3729 = vmul.f32 %v3722, 1.442695
        %v3730 = vpow.pop %v3729
        %v3731 = vadd.f32 %v3724, 1.0
        %v3732 = vadd.f32 %v3726, 1.0
        %v3733 = vadd.f32 %v3728, 1.0
        %v3734 = vadd.f32 %v3730, 1.0
        %v3735 = vrcp.pop %v3731
        %v3736 = vmul.f32 1.0, %v3735
        %v3737 = vrcp.pop %v3732
        %v3738 = vmul.f32 1.0, %v3737
        %v3739 = vrcp.pop %v3733
        %v3740 = vmul.f32 1.0, %v3739
        %v3741 = vrcp.pop %v3734
        %v3742 = vmul.f32 1.0, %v3741
        %v3743 = vand.u32 %v1837, 4294901760
        %3744 = vmatprep.subr.mxu0 %v3743
        %v3745 = vand.u32 %v1836, 4294901760
        %3746 = vmatpush1.msra.mxu0 %v3745
        %v3747 = vand.u32 %v1839, 4294901760
        %3748 = vmatprep.subr.mxu0 %v3747
        %v3749 = vand.u32 %v1838, 4294901760
        %3750 = vmatpush1.msra.mxu0 %v3749
        %v3751 = vand.u32 %v1841, 4294901760
        %3752 = vmatprep.subr.mxu0 %v3751
        %v3753 = vand.u32 %v1840, 4294901760
        %3754 = vmatpush1.msra.mxu0 %v3753
        %v3755 = vand.u32 %v1843, 4294901760
        %3756 = vmatprep.subr.mxu0 %v3755
        %v3757 = vand.u32 %v1842, 4294901760
        %3758 = vmatpush1.msra.mxu0 %v3757
        %v3759 = vand.u32 %v1845, 4294901760
        %3760 = vmatprep.subr.mxu0 %v3759
        %v3761 = vand.u32 %v1844, 4294901760
        %3762 = vmatpush1.msra.mxu0 %v3761
        %v3763 = vand.u32 %v1847, 4294901760
        %3764 = vmatprep.subr.mxu0 %v3763
        %v3765 = vand.u32 %v1846, 4294901760
        %3766 = vmatpush1.msra.mxu0 %v3765
        %v3767 = vand.u32 %v1849, 4294901760
        %3768 = vmatprep.subr.mxu0 %v3767
        %v3769 = vand.u32 %v1848, 4294901760
        %3770 = vmatpush1.msra.mxu0 %v3769
        %v3771 = vand.u32 %v1851, 4294901760
        %3772 = vmatprep.subr.mxu0 %v3771
        %v3773 = vand.u32 %v1850, 4294901760
        %3774 = vmatpush1.msra.mxu0 %v3773
        %v3775 = vand.u32 %v1853, 4294901760
        %3776 = vmatprep.subr.mxu0 %v3775
        %v3777 = vand.u32 %v1852, 4294901760
        %3778 = vmatpush1.msra.mxu0 %v3777
        %v3779 = vand.u32 %v1855, 4294901760
        %3780 = vmatprep.subr.mxu0 %v3779
        %v3781 = vand.u32 %v1854, 4294901760
        %3782 = vmatpush1.msra.mxu0 %v3781
        %v3783 = vand.u32 %v1857, 4294901760
        %3784 = vmatprep.subr.mxu0 %v3783
        %v3785 = vand.u32 %v1856, 4294901760
        %3786 = vmatpush1.msra.mxu0 %v3785
        %v3787 = vand.u32 %v1859, 4294901760
        %3788 = vmatprep.subr.mxu0 %v3787
        %v3789 = vand.u32 %v1858, 4294901760
        %3790 = vmatpush1.msra.mxu0 %v3789
        %v3791 = vand.u32 %v1861, 4294901760
        %3792 = vmatprep.subr.mxu0 %v3791
        %v3793 = vand.u32 %v1860, 4294901760
        %3794 = vmatpush1.msra.mxu0 %v3793
        %v3795 = vand.u32 %v1863, 4294901760
        %3796 = vmatprep.subr.mxu0 %v3795
        %v3797 = vand.u32 %v1862, 4294901760
        %3798 = vmatpush1.msra.mxu0 %v3797
        %v3799 = vand.u32 %v1865, 4294901760
        %3800 = vmatprep.subr.mxu0 %v3799
        %v3801 = vand.u32 %v1864, 4294901760
        %3802 = vmatpush1.msra.mxu0 %v3801
        %v3803 = vand.u32 %v1867, 4294901760
        %3804 = vmatprep.subr.mxu0 %v3803
        %v3805 = vand.u32 %v1866, 4294901760
        %3806 = vmatpush1.msra.mxu0 %v3805
        %3807 = vmatprep.subr.mxu0 0.0
        %3808 = vmatpush1.msra.mxu0 0.0
        %3809 = vmatprep.subr.mxu0 0.0
        %3810 = vmatpush1.msra.mxu0 0.0
        %3811 = vmatprep.subr.mxu0 0.0
        %3812 = vmatpush1.msra.mxu0 0.0
        %3813 = vmatprep.subr.mxu0 0.0
        %3814 = vmatpush1.msra.mxu0 0.0
        %3815 = vmatprep.subr.mxu0 0.0
        %3816 = vmatpush1.msra.mxu0 0.0
        %3817 = vmatprep.subr.mxu0 0.0
        %3818 = vmatpush1.msra.mxu0 0.0
        %3819 = vmatprep.subr.mxu0 0.0
        %3820 = vmatpush1.msra.mxu0 0.0
        %3821 = vmatprep.subr.mxu0 0.0
        %3822 = vmatpush1.msra.mxu0 0.0
        %3823 = vmatprep.subr.mxu0 0.0
        %3824 = vmatpush1.msra.mxu0 0.0
        %3825 = vmatprep.subr.mxu0 0.0
        %3826 = vmatpush1.msra.mxu0 0.0
        %3827 = vmatprep.subr.mxu0 0.0
        %3828 = vmatpush1.msra.mxu0 0.0
        %3829 = vmatprep.subr.mxu0 0.0
        %3830 = vmatpush1.msra.mxu0 0.0
        %3831 = vmatprep.subr.mxu0 0.0
        %3832 = vmatpush1.msra.mxu0 0.0
        %3833 = vmatprep.subr.mxu0 0.0
        %3834 = vmatpush1.msra.mxu0 0.0
        %3835 = vmatprep.subr.mxu0 0.0
        %3836 = vmatpush1.msra.mxu0 0.0
        %3837 = vmatprep.subr.mxu0 0.0
        %3838 = vmatpush1.msra.mxu0 0.0
        %3839 = vmatprep.mubr.f32.mxu0 0.0
        %v3840 = vand.u32 %v3105, 4294901760
        %v3841 = vsub.f32 %v3105, %v3840
        %v3842 = vand.u32 %v3841, 4294901760
        %v3843 = vsub.f32 %v3841, %v3842
        %v3844 = vand.u32 %v3843, 4294901760
        %3845 = vmatmul.mubr.f32.gmra.mrb[0].mxu0 %v3844
        %v3846 = vpop.f32.mrb[0].mxu0
        %v3847 = vadd.f32 0.0, %v3846
        %v3848 = vpop.f32.mrb[0].mxu0
        %v3849 = vadd.f32 0.0, %v3848
        %3850 = vmatprep.mubr.f32.mxu0 0.0
        %v3851 = vand.u32 %v3107, 4294901760
        %v3852 = vsub.f32 %v3107, %v3851
        %v3853 = vand.u32 %v3852, 4294901760
        %v3854 = vsub.f32 %v3852, %v3853
        %v3855 = vand.u32 %v3854, 4294901760
        %3856 = vmatmul.mubr.f32.gmra.mrb[0].mxu0 %v3855
        %v3857 = vpop.f32.mrb[0].mxu0
        %v3858 = vadd.f32 0.0, %v3857
        %v3859 = vpop.f32.mrb[0].mxu0
        %v3860 = vadd.f32 0.0, %v3859
        %3861 = vmatprep.mubr.f32.mxu0 0.0
        %v3862 = vand.u32 %v3109, 4294901760
        %v3863 = vsub.f32 %v3109, %v3862
        %v3864 = vand.u32 %v3863, 4294901760
        %v3865 = vsub.f32 %v3863, %v3864
        %v3866 = vand.u32 %v3865, 4294901760
        %3867 = vmatmul.mubr.f32.gmra.mrb[0].mxu0 %v3866
        %v3868 = vpop.f32.mrb[0].mxu0
        %v3869 = vadd.f32 0.0, %v3868
        %v3870 = vpop.f32.mrb[0].mxu0
        %v3871 = vadd.f32 0.0, %v3870
        %3872 = vmatprep.mubr.f32.mxu0 0.0
        %v3873 = vand.u32 %v3111, 4294901760
        %v3874 = vsub.f32 %v3111, %v3873
        %v3875 = vand.u32 %v3874, 4294901760
        %v3876 = vsub.f32 %v3874, %v3875
        %v3877 = vand.u32 %v3876, 4294901760
        %3878 = vmatmul.mubr.f32.gmra.mrb[0].mxu0 %v3877
        %v3879 = vpop.f32.mrb[0].mxu0
        %v3880 = vadd.f32 0.0, %v3879
        %v3881 = vpop.f32.mrb[0].mxu0
        %v3882 = vadd.f32 0.0, %v3881
        %3883 = vdwg.mxu0
        %v3884 = vand.u32 %v1837, 4294901760
        %v3885 = vsub.f32 %v1837, %v3884
        %v3886 = vand.u32 %v3885, 4294901760
        %v3887 = vsub.f32 %v3885, %v3886
        %v3888 = vand.u32 %v3887, 4294901760
        %3889 = vmatprep.subr.mxu0 %v3888
        %v3890 = vand.u32 %v1836, 4294901760
        %v3891 = vsub.f32 %v1836, %v3890
        %v3892 = vand.u32 %v3891, 4294901760
        %v3893 = vsub.f32 %v3891, %v3892
        %v3894 = vand.u32 %v3893, 4294901760
        %3895 = vmatpush1.msra.mxu0 %v3894
        %v3896 = vand.u32 %v1839, 4294901760
        %v3897 = vsub.f32 %v1839, %v3896
        %v3898 = vand.u32 %v3897, 4294901760
        %v3899 = vsub.f32 %v3897, %v3898
        %v3900 = vand.u32 %v3899, 4294901760
        %3901 = vmatprep.subr.mxu0 %v3900
        %v3902 = vand.u32 %v1838, 4294901760
        %v3903 = vsub.f32 %v1838, %v3902
        %v3904 = vand.u32 %v3903, 4294901760
        %v3905 = vsub.f32 %v3903, %v3904
        %v3906 = vand.u32 %v3905, 4294901760
        %3907 = vmatpush1.msra.mxu0 %v3906
        %v3908 = vand.u32 %v1841, 4294901760
        %v3909 = vsub.f32 %v1841, %v3908
        %v3910 = vand.u32 %v3909, 4294901760
        %v3911 = vsub.f32 %v3909, %v3910
        %v3912 = vand.u32 %v3911, 4294901760
        %3913 = vmatprep.subr.mxu0 %v3912
        %v3914 = vand.u32 %v1840, 4294901760
        %v3915 = vsub.f32 %v1840, %v3914
        %v3916 = vand.u32 %v3915, 4294901760
        %v3917 = vsub.f32 %v3915, %v3916
        %v3918 = vand.u32 %v3917, 4294901760
        %3919 = vmatpush1.msra.mxu0 %v3918
        %v3920 = vand.u32 %v1843, 4294901760
        %v3921 = vsub.f32 %v1843, %v3920
        %v3922 = vand.u32 %v3921, 4294901760
        %v3923 = vsub.f32 %v3921, %v3922
        %v3924 = vand.u32 %v3923, 4294901760
        %3925 = vmatprep.subr.mxu0 %v3924
        %v3926 = vand.u32 %v1842, 4294901760
        %v3927 = vsub.f32 %v1842, %v3926
        %v3928 = vand.u32 %v3927, 4294901760
        %v3929 = vsub.f32 %v3927, %v3928
        %v3930 = vand.u32 %v3929, 4294901760
        %3931 = vmatpush1.msra.mxu0 %v3930
        %v3932 = vand.u32 %v1845, 4294901760
        %v3933 = vsub.f32 %v1845, %v3932
        %v3934 = vand.u32 %v3933, 4294901760
        %v3935 = vsub.f32 %v3933, %v3934
        %v3936 = vand.u32 %v3935, 4294901760
        %3937 = vmatprep.subr.mxu0 %v3936
        %v3938 = vand.u32 %v1844, 4294901760
        %v3939 = vsub.f32 %v1844, %v3938
        %v3940 = vand.u32 %v3939, 4294901760
        %v3941 = vsub.f32 %v3939, %v3940
        %v3942 = vand.u32 %v3941, 4294901760
        %3943 = vmatpush1.msra.mxu0 %v3942
        %v3944 = vand.u32 %v1847, 4294901760
        %v3945 = vsub.f32 %v1847, %v3944
        %v3946 = vand.u32 %v3945, 4294901760
        %v3947 = vsub.f32 %v3945, %v3946
        %v3948 = vand.u32 %v3947, 4294901760
        %3949 = vmatprep.subr.mxu0 %v3948
        %v3950 = vand.u32 %v1846, 4294901760
        %v3951 = vsub.f32 %v1846, %v3950
        %v3952 = vand.u32 %v3951, 4294901760
        %v3953 = vsub.f32 %v3951, %v3952
        %v3954 = vand.u32 %v3953, 4294901760
        %3955 = vmatpush1.msra.mxu0 %v3954
        %v3956 = vand.u32 %v1849, 4294901760
        %v3957 = vsub.f32 %v1849, %v3956
        %v3958 = vand.u32 %v3957, 4294901760
        %v3959 = vsub.f32 %v3957, %v3958
        %v3960 = vand.u32 %v3959, 4294901760
        %3961 = vmatprep.subr.mxu0 %v3960
        %v3962 = vand.u32 %v1848, 4294901760
        %v3963 = vsub.f32 %v1848, %v3962
        %v3964 = vand.u32 %v3963, 4294901760
        %v3965 = vsub.f32 %v3963, %v3964
        %v3966 = vand.u32 %v3965, 4294901760
        %3967 = vmatpush1.msra.mxu0 %v3966
        %v3968 = vand.u32 %v1851, 4294901760
        %v3969 = vsub.f32 %v1851, %v3968
        %v3970 = vand.u32 %v3969, 4294901760
        %v3971 = vsub.f32 %v3969, %v3970
        %v3972 = vand.u32 %v3971, 4294901760
        %3973 = vmatprep.subr.mxu0 %v3972
        %v3974 = vand.u32 %v1850, 4294901760
        %v3975 = vsub.f32 %v1850, %v3974
        %v3976 = vand.u32 %v3975, 4294901760
        %v3977 = vsub.f32 %v3975, %v3976
        %v3978 = vand.u32 %v3977, 4294901760
        %3979 = vmatpush1.msra.mxu0 %v3978
        %v3980 = vand.u32 %v1853, 4294901760
        %v3981 = vsub.f32 %v1853, %v3980
        %v3982 = vand.u32 %v3981, 4294901760
        %v3983 = vsub.f32 %v3981, %v3982
        %v3984 = vand.u32 %v3983, 4294901760
        %3985 = vmatprep.subr.mxu0 %v3984
        %v3986 = vand.u32 %v1852, 4294901760
        %v3987 = vsub.f32 %v1852, %v3986
        %v3988 = vand.u32 %v3987, 4294901760
        %v3989 = vsub.f32 %v3987, %v3988
        %v3990 = vand.u32 %v3989, 4294901760
        %3991 = vmatpush1.msra.mxu0 %v3990
        %v3992 = vand.u32 %v1855, 4294901760
        %v3993 = vsub.f32 %v1855, %v3992
        %v3994 = vand.u32 %v3993, 4294901760
        %v3995 = vsub.f32 %v3993, %v3994
        %v3996 = vand.u32 %v3995, 4294901760
        %3997 = vmatprep.subr.mxu0 %v3996
        %v3998 = vand.u32 %v1854, 4294901760
        %v3999 = vsub.f32 %v1854, %v3998
        %v4000 = vand.u32 %v3999, 4294901760
        %v4001 = vsub.f32 %v3999, %v4000
        %v4002 = vand.u32 %v4001, 4294901760
        %4003 = vmatpush1.msra.mxu0 %v4002
        %v4004 = vand.u32 %v1857, 4294901760
        %v4005 = vsub.f32 %v1857, %v4004
        %v4006 = vand.u32 %v4005, 4294901760
        %v4007 = vsub.f32 %v4005, %v4006
        %v4008 = vand.u32 %v4007, 4294901760
        %4009 = vmatprep.subr.mxu0 %v4008
        %v4010 = vand.u32 %v1856, 4294901760
        %v4011 = vsub.f32 %v1856, %v4010
        %v4012 = vand.u32 %v4011, 4294901760
        %v4013 = vsub.f32 %v4011, %v4012
        %v4014 = vand.u32 %v4013, 4294901760
        %4015 = vmatpush1.msra.mxu0 %v4014
        %v4016 = vand.u32 %v1859, 4294901760
        %v4017 = vsub.f32 %v1859, %v4016
        %v4018 = vand.u32 %v4017, 4294901760
        %v4019 = vsub.f32 %v4017, %v4018
        %v4020 = vand.u32 %v4019, 4294901760
        %4021 = vmatprep.subr.mxu0 %v4020
        %v4022 = vand.u32 %v1858, 4294901760
        %v4023 = vsub.f32 %v1858, %v4022
        %v4024 = vand.u32 %v4023, 4294901760
        %v4025 = vsub.f32 %v4023, %v4024
        %v4026 = vand.u32 %v4025, 4294901760
        %4027 = vmatpush1.msra.mxu0 %v4026
        %v4028 = vand.u32 %v1861, 4294901760
        %v4029 = vsub.f32 %v1861, %v4028
        %v4030 = vand.u32 %v4029, 4294901760
        %v4031 = vsub.f32 %v4029, %v4030
        %v4032 = vand.u32 %v4031, 4294901760
        %4033 = vmatprep.subr.mxu0 %v4032
        %v4034 = vand.u32 %v1860, 4294901760
        %v4035 = vsub.f32 %v1860, %v4034
        %v4036 = vand.u32 %v4035, 4294901760
        %v4037 = vsub.f32 %v4035, %v4036
        %v4038 = vand.u32 %v4037, 4294901760
        %4039 = vmatpush1.msra.mxu0 %v4038
        %v4040 = vand.u32 %v1863, 4294901760
        %v4041 = vsub.f32 %v1863, %v4040
        %v4042 = vand.u32 %v4041, 4294901760
        %v4043 = vsub.f32 %v4041, %v4042
        %v4044 = vand.u32 %v4043, 4294901760
        %4045 = vmatprep.subr.mxu0 %v4044
        %v4046 = vand.u32 %v1862, 4294901760
        %v4047 = vsub.f32 %v1862, %v4046
        %v4048 = vand.u32 %v4047, 4294901760
        %v4049 = vsub.f32 %v4047, %v4048
        %v4050 = vand.u32 %v4049, 4294901760
        %4051 = vmatpush1.msra.mxu0 %v4050
        %v4052 = vand.u32 %v1865, 4294901760
        %v4053 = vsub.f32 %v1865, %v4052
        %v4054 = vand.u32 %v4053, 4294901760
        %v4055 = vsub.f32 %v4053, %v4054
        %v4056 = vand.u32 %v4055, 4294901760
        %4057 = vmatprep.subr.mxu0 %v4056
        %v4058 = vand.u32 %v1864, 4294901760
        %v4059 = vsub.f32 %v1864, %v4058
        %v4060 = vand.u32 %v4059, 4294901760
        %v4061 = vsub.f32 %v4059, %v4060
        %v4062 = vand.u32 %v4061, 4294901760
        %4063 = vmatpush1.msra.mxu0 %v4062
        %v4064 = vand.u32 %v1867, 4294901760
        %v4065 = vsub.f32 %v1867, %v4064
        %v4066 = vand.u32 %v4065, 4294901760
        %v4067 = vsub.f32 %v4065, %v4066
        %v4068 = vand.u32 %v4067, 4294901760
        %4069 = vmatprep.subr.mxu0 %v4068
        %v4070 = vand.u32 %v1866, 4294901760
        %v4071 = vsub.f32 %v1866, %v4070
        %v4072 = vand.u32 %v4071, 4294901760
        %v4073 = vsub.f32 %v4071, %v4072
        %v4074 = vand.u32 %v4073, 4294901760
        %4075 = vmatpush1.msra.mxu0 %v4074
        %4076 = vmatprep.subr.mxu0 0.0
        %4077 = vmatpush1.msra.mxu0 0.0
        %4078 = vmatprep.subr.mxu0 0.0
        %4079 = vmatpush1.msra.mxu0 0.0
        %4080 = vmatprep.subr.mxu0 0.0
        %4081 = vmatpush1.msra.mxu0 0.0
        %4082 = vmatprep.subr.mxu0 0.0
        %4083 = vmatpush1.msra.mxu0 0.0
        %4084 = vmatprep.subr.mxu0 0.0
        %4085 = vmatpush1.msra.mxu0 0.0
        %4086 = vmatprep.subr.mxu0 0.0
        %4087 = vmatpush1.msra.mxu0 0.0
        %4088 = vmatprep.subr.mxu0 0.0
        %4089 = vmatpush1.msra.mxu0 0.0
        %4090 = vmatprep.subr.mxu0 0.0
        %4091 = vmatpush1.msra.mxu0 0.0
        %4092 = vmatprep.subr.mxu0 0.0
        %4093 = vmatpush1.msra.mxu0 0.0
        %4094 = vmatprep.subr.mxu0 0.0
        %4095 = vmatpush1.msra.mxu0 0.0
        %4096 = vmatprep.subr.mxu0 0.0
        %4097 = vmatpush1.msra.mxu0 0.0
        %4098 = vmatprep.subr.mxu0 0.0
        %4099 = vmatpush1.msra.mxu0 0.0
        %4100 = vmatprep.subr.mxu0 0.0
        %4101 = vmatpush1.msra.mxu0 0.0
        %4102 = vmatprep.subr.mxu0 0.0
        %4103 = vmatpush1.msra.mxu0 0.0
        %4104 = vmatprep.subr.mxu0 0.0
        %4105 = vmatpush1.msra.mxu0 0.0
        %4106 = vmatprep.subr.mxu0 0.0
        %4107 = vmatpush1.msra.mxu0 0.0
        %4108 = vmatprep.mubr.f32.mxu0 0.0
        %v4109 = vand.u32 %v3105, 4294901760
        %4110 = vmatmul.mubr.f32.gmra.mrb[0].mxu0 %v4109
        %v4111 = vpop.f32.mrb[0].mxu0
        %v4112 = vadd.f32 %v3847, %v4111
        %v4113 = vpop.f32.mrb[0].mxu0
        %v4114 = vadd.f32 %v3849, %v4113
        %4115 = vmatprep.mubr.f32.mxu0 0.0
        %v4116 = vand.u32 %v3107, 4294901760
        %4117 = vmatmul.mubr.f32.gmra.mrb[0].mxu0 %v4116
        %v4118 = vpop.f32.mrb[0].mxu0
        %v4119 = vadd.f32 %v3858, %v4118
        %v4120 = vpop.f32.mrb[0].mxu0
        %v4121 = vadd.f32 %v3860, %v4120
        %4122 = vmatprep.mubr.f32.mxu0 0.0
        %v4123 = vand.u32 %v3109, 4294901760
        %4124 = vmatmul.mubr.f32.gmra.mrb[0].mxu0 %v4123
        %v4125 = vpop.f32.mrb[0].mxu0
        %v4126 = vadd.f32 %v3869, %v4125
        %v4127 = vpop.f32.mrb[0].mxu0
        %v4128 = vadd.f32 %v3871, %v4127
        %4129 = vmatprep.mubr.f32.mxu0 0.0
        %v4130 = vand.u32 %v3111, 4294901760
        %4131 = vmatmul.mubr.f32.gmra.mrb[0].mxu0 %v4130
        %v4132 = vpop.f32.mrb[0].mxu0
        %v4133 = vadd.f32 %v3880, %v4132
        %v4134 = vpop.f32.mrb[0].mxu0
        %v4135 = vadd.f32 %v3882, %v4134
        %4136 = vdwg.mxu0
        %v4137 = vand.u32 %v1837, 4294901760
        %v4138 = vsub.f32 %v1837, %v4137
        %4139 = vmatprep.subr.mxu0 %v4138
        %v4140 = vand.u32 %v1836, 4294901760
        %v4141 = vsub.f32 %v1836, %v4140
        %4142 = vmatpush1.msra.mxu0 %v4141
        %v4143 = vand.u32 %v1839, 4294901760
        %v4144 = vsub.f32 %v1839, %v4143
        %4145 = vmatprep.subr.mxu0 %v4144
        %v4146 = vand.u32 %v1838, 4294901760
        %v4147 = vsub.f32 %v1838, %v4146
        %4148 = vmatpush1.msra.mxu0 %v4147
        %v4149 = vand.u32 %v1841, 4294901760
        %v4150 = vsub.f32 %v1841, %v4149
        %4151 = vmatprep.subr.mxu0 %v4150
        %v4152 = vand.u32 %v1840, 4294901760
        %v4153 = vsub.f32 %v1840, %v4152
        %4154 = vmatpush1.msra.mxu0 %v4153
        %v4155 = vand.u32 %v1843, 4294901760
        %v4156 = vsub.f32 %v1843, %v4155
        %4157 = vmatprep.subr.mxu0 %v4156
        %v4158 = vand.u32 %v1842, 4294901760
        %v4159 = vsub.f32 %v1842, %v4158
        %4160 = vmatpush1.msra.mxu0 %v4159
        %v4161 = vand.u32 %v1845, 4294901760
        %v4162 = vsub.f32 %v1845, %v4161
        %4163 = vmatprep.subr.mxu0 %v4162
        %v4164 = vand.u32 %v1844, 4294901760
        %v4165 = vsub.f32 %v1844, %v4164
        %4166 = vmatpush1.msra.mxu0 %v4165
        %v4167 = vand.u32 %v1847, 4294901760
        %v4168 = vsub.f32 %v1847, %v4167
        %4169 = vmatprep.subr.mxu0 %v4168
        %v4170 = vand.u32 %v1846, 4294901760
        %v4171 = vsub.f32 %v1846, %v4170
        %4172 = vmatpush1.msra.mxu0 %v4171
        %v4173 = vand.u32 %v1849, 4294901760
        %v4174 = vsub.f32 %v1849, %v4173
        %4175 = vmatprep.subr.mxu0 %v4174
        %v4176 = vand.u32 %v1848, 4294901760
        %v4177 = vsub.f32 %v1848, %v4176
        %4178 = vmatpush1.msra.mxu0 %v4177
        %v4179 = vand.u32 %v1851, 4294901760
        %v4180 = vsub.f32 %v1851, %v4179
        %4181 = vmatprep.subr.mxu0 %v4180
        %v4182 = vand.u32 %v1850, 4294901760
        %v4183 = vsub.f32 %v1850, %v4182
        %4184 = vmatpush1.msra.mxu0 %v4183
        %v4185 = vand.u32 %v1853, 4294901760
        %v4186 = vsub.f32 %v1853, %v4185
        %4187 = vmatprep.subr.mxu0 %v4186
        %v4188 = vand.u32 %v1852, 4294901760
        %v4189 = vsub.f32 %v1852, %v4188
        %4190 = vmatpush1.msra.mxu0 %v4189
        %v4191 = vand.u32 %v1855, 4294901760
        %v4192 = vsub.f32 %v1855, %v4191
        %4193 = vmatprep.subr.mxu0 %v4192
        %v4194 = vand.u32 %v1854, 4294901760
        %v4195 = vsub.f32 %v1854, %v4194
        %4196 = vmatpush1.msra.mxu0 %v4195
        %v4197 = vand.u32 %v1857, 4294901760
        %v4198 = vsub.f32 %v1857, %v4197
        %4199 = vmatprep.subr.mxu0 %v4198
        %v4200 = vand.u32 %v1856, 4294901760
        %v4201 = vsub.f32 %v1856, %v4200
        %4202 = vmatpush1.msra.mxu0 %v4201
        %v4203 = vand.u32 %v1859, 4294901760
        %v4204 = vsub.f32 %v1859, %v4203
        %4205 = vmatprep.subr.mxu0 %v4204
        %v4206 = vand.u32 %v1858, 4294901760
        %v4207 = vsub.f32 %v1858, %v4206
        %4208 = vmatpush1.msra.mxu0 %v4207
        %v4209 = vand.u32 %v1861, 4294901760
        %v4210 = vsub.f32 %v1861, %v4209
        %4211 = vmatprep.subr.mxu0 %v4210
        %v4212 = vand.u32 %v1860, 4294901760
        %v4213 = vsub.f32 %v1860, %v4212
        %4214 = vmatpush1.msra.mxu0 %v4213
        %v4215 = vand.u32 %v1863, 4294901760
        %v4216 = vsub.f32 %v1863, %v4215
        %4217 = vmatprep.subr.mxu0 %v4216
        %v4218 = vand.u32 %v1862, 4294901760
        %v4219 = vsub.f32 %v1862, %v4218
        %4220 = vmatpush1.msra.mxu0 %v4219
        %v4221 = vand.u32 %v1865, 4294901760
        %v4222 = vsub.f32 %v1865, %v4221
        %4223 = vmatprep.subr.mxu0 %v4222
        %v4224 = vand.u32 %v1864, 4294901760
        %v4225 = vsub.f32 %v1864, %v4224
        %4226 = vmatpush1.msra.mxu0 %v4225
        %v4227 = vand.u32 %v1867, 4294901760
        %v4228 = vsub.f32 %v1867, %v4227
        %4229 = vmatprep.subr.mxu0 %v4228
        %v4230 = vand.u32 %v1866, 4294901760
        %v4231 = vsub.f32 %v1866, %v4230
        %4232 = vmatpush1.msra.mxu0 %v4231
        %4233 = vmatprep.subr.mxu0 0.0
        %4234 = vmatpush1.msra.mxu0 0.0
        %4235 = vmatprep.subr.mxu0 0.0
        %4236 = vmatpush1.msra.mxu0 0.0
        %4237 = vmatprep.subr.mxu0 0.0
        %4238 = vmatpush1.msra.mxu0 0.0
        %4239 = vmatprep.subr.mxu0 0.0
        %4240 = vmatpush1.msra.mxu0 0.0
        %4241 = vmatprep.subr.mxu0 0.0
        %4242 = vmatpush1.msra.mxu0 0.0
        %4243 = vmatprep.subr.mxu0 0.0
        %4244 = vmatpush1.msra.mxu0 0.0
        %4245 = vmatprep.subr.mxu0 0.0
        %4246 = vmatpush1.msra.mxu0 0.0
        %4247 = vmatprep.subr.mxu0 0.0
        %4248 = vmatpush1.msra.mxu0 0.0
        %4249 = vmatprep.subr.mxu0 0.0
        %4250 = vmatpush1.msra.mxu0 0.0
        %4251 = vmatprep.subr.mxu0 0.0
        %4252 = vmatpush1.msra.mxu0 0.0
        %4253 = vmatprep.subr.mxu0 0.0
        %4254 = vmatpush1.msra.mxu0 0.0
        %4255 = vmatprep.subr.mxu0 0.0
        %4256 = vmatpush1.msra.mxu0 0.0
        %4257 = vmatprep.subr.mxu0 0.0
        %4258 = vmatpush1.msra.mxu0 0.0
        %4259 = vmatprep.subr.mxu0 0.0
        %4260 = vmatpush1.msra.mxu0 0.0
        %4261 = vmatprep.subr.mxu0 0.0
        %4262 = vmatpush1.msra.mxu0 0.0
        %4263 = vmatprep.subr.mxu0 0.0
        %4264 = vmatpush1.msra.mxu0 0.0
        %4265 = vmatprep.mubr.f32.mxu0 0.0
        %v4266 = vand.u32 %v3105, 4294901760
        %v4267 = vsub.f32 %v3105, %v4266
        %4268 = vmatmul.mubr.f32.gmra.mrb[0].mxu0 %v4267
        %v4269 = vpop.f32.mrb[0].mxu0
        %v4270 = vadd.f32 %v4112, %v4269
        %v4271 = vpop.f32.mrb[0].mxu0
        %v4272 = vadd.f32 %v4114, %v4271
        %4273 = vmatprep.mubr.f32.mxu0 0.0
        %v4274 = vand.u32 %v3107, 4294901760
        %v4275 = vsub.f32 %v3107, %v4274
        %4276 = vmatmul.mubr.f32.gmra.mrb[0].mxu0 %v4275
        %v4277 = vpop.f32.mrb[0].mxu0
        %v4278 = vadd.f32 %v4119, %v4277
        %v4279 = vpop.f32.mrb[0].mxu0
        %v4280 = vadd.f32 %v4121, %v4279
        %4281 = vmatprep.mubr.f32.mxu0 0.0
        %v4282 = vand.u32 %v3109, 4294901760
        %v4283 = vsub.f32 %v3109, %v4282
        %4284 = vmatmul.mubr.f32.gmra.mrb[0].mxu0 %v4283
        %v4285 = vpop.f32.mrb[0].mxu0
        %v4286 = vadd.f32 %v4126, %v4285
        %v4287 = vpop.f32.mrb[0].mxu0
        %v4288 = vadd.f32 %v4128, %v4287
        %4289 = vmatprep.mubr.f32.mxu0 0.0
        %v4290 = vand.u32 %v3111, 4294901760
        %v4291 = vsub.f32 %v3111, %v4290
        %4292 = vmatmul.mubr.f32.gmra.mrb[0].mxu0 %v4291
        %v4293 = vpop.f32.mrb[0].mxu0
        %v4294 = vadd.f32 %v4133, %v4293
        %v4295 = vpop.f32.mrb[0].mxu0
        %v4296 = vadd.f32 %v4135, %v4295
        %4297 = vdwg.mxu0
        %v4298 = vand.u32 %v1837, 4294901760
        %4299 = vmatprep.subr.mxu0 %v4298
        %v4300 = vand.u32 %v1836, 4294901760
        %4301 = vmatpush1.msra.mxu0 %v4300
        %v4302 = vand.u32 %v1839, 4294901760
        %4303 = vmatprep.subr.mxu0 %v4302
        %v4304 = vand.u32 %v1838, 4294901760
        %4305 = vmatpush1.msra.mxu0 %v4304
        %v4306 = vand.u32 %v1841, 4294901760
        %4307 = vmatprep.subr.mxu0 %v4306
        %v4308 = vand.u32 %v1840, 4294901760
        %4309 = vmatpush1.msra.mxu0 %v4308
        %v4310 = vand.u32 %v1843, 4294901760
        %4311 = vmatprep.subr.mxu0 %v4310
        %v4312 = vand.u32 %v1842, 4294901760
        %4313 = vmatpush1.msra.mxu0 %v4312
        %v4314 = vand.u32 %v1845, 4294901760
        %4315 = vmatprep.subr.mxu0 %v4314
        %v4316 = vand.u32 %v1844, 4294901760
        %4317 = vmatpush1.msra.mxu0 %v4316
        %v4318 = vand.u32 %v1847, 4294901760
        %4319 = vmatprep.subr.mxu0 %v4318
        %v4320 = vand.u32 %v1846, 4294901760
        %4321 = vmatpush1.msra.mxu0 %v4320
        %v4322 = vand.u32 %v1849, 4294901760
        %4323 = vmatprep.subr.mxu0 %v4322
        %v4324 = vand.u32 %v1848, 4294901760
        %4325 = vmatpush1.msra.mxu0 %v4324
        %v4326 = vand.u32 %v1851, 4294901760
        %4327 = vmatprep.subr.mxu0 %v4326
        %v4328 = vand.u32 %v1850, 4294901760
        %4329 = vmatpush1.msra.mxu0 %v4328
        %v4330 = vand.u32 %v1853, 4294901760
        %4331 = vmatprep.subr.mxu0 %v4330
        %v4332 = vand.u32 %v1852, 4294901760
        %4333 = vmatpush1.msra.mxu0 %v4332
        %v4334 = vand.u32 %v1855, 4294901760
        %4335 = vmatprep.subr.mxu0 %v4334
        %v4336 = vand.u32 %v1854, 4294901760
        %4337 = vmatpush1.msra.mxu0 %v4336
        %v4338 = vand.u32 %v1857, 4294901760
        %4339 = vmatprep.subr.mxu0 %v4338
        %v4340 = vand.u32 %v1856, 4294901760
        %4341 = vmatpush1.msra.mxu0 %v4340
        %v4342 = vand.u32 %v1859, 4294901760
        %4343 = vmatprep.subr.mxu0 %v4342
        %v4344 = vand.u32 %v1858, 4294901760
        %4345 = vmatpush1.msra.mxu0 %v4344
        %v4346 = vand.u32 %v1861, 4294901760
        %4347 = vmatprep.subr.mxu0 %v4346
        %v4348 = vand.u32 %v1860, 4294901760
        %4349 = vmatpush1.msra.mxu0 %v4348
        %v4350 = vand.u32 %v1863, 4294901760
        %4351 = vmatprep.subr.mxu0 %v4350
        %v4352 = vand.u32 %v1862, 4294901760
        %4353 = vmatpush1.msra.mxu0 %v4352
        %v4354 = vand.u32 %v1865, 4294901760
        %4355 = vmatprep.subr.mxu0 %v4354
        %v4356 = vand.u32 %v1864, 4294901760
        %4357 = vmatpush1.msra.mxu0 %v4356
        %v4358 = vand.u32 %v1867, 4294901760
        %4359 = vmatprep.subr.mxu0 %v4358
        %v4360 = vand.u32 %v1866, 4294901760
        %4361 = vmatpush1.msra.mxu0 %v4360
        %4362 = vmatprep.subr.mxu0 0.0
        %4363 = vmatpush1.msra.mxu0 0.0
        %4364 = vmatprep.subr.mxu0 0.0
        %4365 = vmatpush1.msra.mxu0 0.0
        %4366 = vmatprep.subr.mxu0 0.0
        %4367 = vmatpush1.msra.mxu0 0.0
        %4368 = vmatprep.subr.mxu0 0.0
        %4369 = vmatpush1.msra.mxu0 0.0
        %4370 = vmatprep.subr.mxu0 0.0
        %4371 = vmatpush1.msra.mxu0 0.0
        %4372 = vmatprep.subr.mxu0 0.0
        %4373 = vmatpush1.msra.mxu0 0.0
        %4374 = vmatprep.subr.mxu0 0.0
        %4375 = vmatpush1.msra.mxu0 0.0
        %4376 = vmatprep.subr.mxu0 0.0
        %4377 = vmatpush1.msra.mxu0 0.0
        %4378 = vmatprep.subr.mxu0 0.0
        %4379 = vmatpush1.msra.mxu0 0.0
        %4380 = vmatprep.subr.mxu0 0.0
        %4381 = vmatpush1.msra.mxu0 0.0
        %4382 = vmatprep.subr.mxu0 0.0
        %4383 = vmatpush1.msra.mxu0 0.0
        %4384 = vmatprep.subr.mxu0 0.0
        %4385 = vmatpush1.msra.mxu0 0.0
        %4386 = vmatprep.subr.mxu0 0.0
        %4387 = vmatpush1.msra.mxu0 0.0
        %4388 = vmatprep.subr.mxu0 0.0
        %4389 = vmatpush1.msra.mxu0 0.0
        %4390 = vmatprep.subr.mxu0 0.0
        %4391 = vmatpush1.msra.mxu0 0.0
        %4392 = vmatprep.subr.mxu0 0.0
        %4393 = vmatpush1.msra.mxu0 0.0
        %4394 = vmatprep.mubr.f32.mxu0 0.0
        %v4395 = vand.u32 %v3105, 4294901760
        %v4396 = vsub.f32 %v3105, %v4395
        %v4397 = vand.u32 %v4396, 4294901760
        %4398 = vmatmul.mubr.f32.gmra.mrb[0].mxu0 %v4397
        %v4399 = vpop.f32.mrb[0].mxu0
        %v4400 = vadd.f32 %v4270, %v4399
        %v4401 = vpop.f32.mrb[0].mxu0
        %v4402 = vadd.f32 %v4272, %v4401
        %4403 = vmatprep.mubr.f32.mxu0 0.0
        %v4404 = vand.u32 %v3107, 4294901760
        %v4405 = vsub.f32 %v3107, %v4404
        %v4406 = vand.u32 %v4405, 4294901760
        %4407 = vmatmul.mubr.f32.gmra.mrb[0].mxu0 %v4406
        %v4408 = vpop.f32.mrb[0].mxu0
        %v4409 = vadd.f32 %v4278, %v4408
        %v4410 = vpop.f32.mrb[0].mxu0
        %v4411 = vadd.f32 %v4280, %v4410
        %4412 = vmatprep.mubr.f32.mxu0 0.0
        %v4413 = vand.u32 %v3109, 4294901760
        %v4414 = vsub.f32 %v3109, %v4413
        %v4415 = vand.u32 %v4414, 4294901760
        %4416 = vmatmul.mubr.f32.gmra.mrb[0].mxu0 %v4415
        %v4417 = vpop.f32.mrb[0].mxu0
        %v4418 = vadd.f32 %v4286, %v4417
        %v4419 = vpop.f32.mrb[0].mxu0
        %v4420 = vadd.f32 %v4288, %v4419
        %4421 = vmatprep.mubr.f32.mxu0 0.0
        %v4422 = vand.u32 %v3111, 4294901760
        %v4423 = vsub.f32 %v3111, %v4422
        %v4424 = vand.u32 %v4423, 4294901760
        %4425 = vmatmul.mubr.f32.gmra.mrb[0].mxu0 %v4424
        %v4426 = vpop.f32.mrb[0].mxu0
        %v4427 = vadd.f32 %v4294, %v4426
        %v4428 = vpop.f32.mrb[0].mxu0
        %v4429 = vadd.f32 %v4296, %v4428
        %4430 = vdwg.mxu0
        %v4431 = vand.u32 %v1837, 4294901760
        %v4432 = vsub.f32 %v1837, %v4431
        %v4433 = vand.u32 %v4432, 4294901760
        %4434 = vmatprep.subr.mxu0 %v4433
        %v4435 = vand.u32 %v1836, 4294901760
        %v4436 = vsub.f32 %v1836, %v4435
        %v4437 = vand.u32 %v4436, 4294901760
        %4438 = vmatpush1.msra.mxu0 %v4437
        %v4439 = vand.u32 %v1839, 4294901760
        %v4440 = vsub.f32 %v1839, %v4439
        %v4441 = vand.u32 %v4440, 4294901760
        %4442 = vmatprep.subr.mxu0 %v4441
        %v4443 = vand.u32 %v1838, 4294901760
        %v4444 = vsub.f32 %v1838, %v4443
        %v4445 = vand.u32 %v4444, 4294901760
        %4446 = vmatpush1.msra.mxu0 %v4445
        %v4447 = vand.u32 %v1841, 4294901760
        %v4448 = vsub.f32 %v1841, %v4447
        %v4449 = vand.u32 %v4448, 4294901760
        %4450 = vmatprep.subr.mxu0 %v4449
        %v4451 = vand.u32 %v1840, 4294901760
        %v4452 = vsub.f32 %v1840, %v4451
        %v4453 = vand.u32 %v4452, 4294901760
        %4454 = vmatpush1.msra.mxu0 %v4453
        %v4455 = vand.u32 %v1843, 4294901760
        %v4456 = vsub.f32 %v1843, %v4455
        %v4457 = vand.u32 %v4456, 4294901760
        %4458 = vmatprep.subr.mxu0 %v4457
        %v4459 = vand.u32 %v1842, 4294901760
        %v4460 = vsub.f32 %v1842, %v4459
        %v4461 = vand.u32 %v4460, 4294901760
        %4462 = vmatpush1.msra.mxu0 %v4461
        %v4463 = vand.u32 %v1845, 4294901760
        %v4464 = vsub.f32 %v1845, %v4463
        %v4465 = vand.u32 %v4464, 4294901760
        %4466 = vmatprep.subr.mxu0 %v4465
        %v4467 = vand.u32 %v1844, 4294901760
        %v4468 = vsub.f32 %v1844, %v4467
        %v4469 = vand.u32 %v4468, 4294901760
        %4470 = vmatpush1.msra.mxu0 %v4469
        %v4471 = vand.u32 %v1847, 4294901760
        %v4472 = vsub.f32 %v1847, %v4471
        %v4473 = vand.u32 %v4472, 4294901760
        %4474 = vmatprep.subr.mxu0 %v4473
        %v4475 = vand.u32 %v1846, 4294901760
        %v4476 = vsub.f32 %v1846, %v4475
        %v4477 = vand.u32 %v4476, 4294901760
        %4478 = vmatpush1.msra.mxu0 %v4477
        %v4479 = vand.u32 %v1849, 4294901760
        %v4480 = vsub.f32 %v1849, %v4479
        %v4481 = vand.u32 %v4480, 4294901760
        %4482 = vmatprep.subr.mxu0 %v4481
        %v4483 = vand.u32 %v1848, 4294901760
        %v4484 = vsub.f32 %v1848, %v4483
        %v4485 = vand.u32 %v4484, 4294901760
        %4486 = vmatpush1.msra.mxu0 %v4485
        %v4487 = vand.u32 %v1851, 4294901760
        %v4488 = vsub.f32 %v1851, %v4487
        %v4489 = vand.u32 %v4488, 4294901760
        %4490 = vmatprep.subr.mxu0 %v4489
        %v4491 = vand.u32 %v1850, 4294901760
        %v4492 = vsub.f32 %v1850, %v4491
        %v4493 = vand.u32 %v4492, 4294901760
        %4494 = vmatpush1.msra.mxu0 %v4493
        %v4495 = vand.u32 %v1853, 4294901760
        %v4496 = vsub.f32 %v1853, %v4495
        %v4497 = vand.u32 %v4496, 4294901760
        %4498 = vmatprep.subr.mxu0 %v4497
        %v4499 = vand.u32 %v1852, 4294901760
        %v4500 = vsub.f32 %v1852, %v4499
        %v4501 = vand.u32 %v4500, 4294901760
        %4502 = vmatpush1.msra.mxu0 %v4501
        %v4503 = vand.u32 %v1855, 4294901760
        %v4504 = vsub.f32 %v1855, %v4503
        %v4505 = vand.u32 %v4504, 4294901760
        %4506 = vmatprep.subr.mxu0 %v4505
        %v4507 = vand.u32 %v1854, 4294901760
        %v4508 = vsub.f32 %v1854, %v4507
        %v4509 = vand.u32 %v4508, 4294901760
        %4510 = vmatpush1.msra.mxu0 %v4509
        %v4511 = vand.u32 %v1857, 4294901760
        %v4512 = vsub.f32 %v1857, %v4511
        %v4513 = vand.u32 %v4512, 4294901760
        %4514 = vmatprep.subr.mxu0 %v4513
        %v4515 = vand.u32 %v1856, 4294901760
        %v4516 = vsub.f32 %v1856, %v4515
        %v4517 = vand.u32 %v4516, 4294901760
        %4518 = vmatpush1.msra.mxu0 %v4517
        %v4519 = vand.u32 %v1859, 4294901760
        %v4520 = vsub.f32 %v1859, %v4519
        %v4521 = vand.u32 %v4520, 4294901760
        %4522 = vmatprep.subr.mxu0 %v4521
        %v4523 = vand.u32 %v1858, 4294901760
        %v4524 = vsub.f32 %v1858, %v4523
        %v4525 = vand.u32 %v4524, 4294901760
        %4526 = vmatpush1.msra.mxu0 %v4525
        %v4527 = vand.u32 %v1861, 4294901760
        %v4528 = vsub.f32 %v1861, %v4527
        %v4529 = vand.u32 %v4528, 4294901760
        %4530 = vmatprep.subr.mxu0 %v4529
        %v4531 = vand.u32 %v1860, 4294901760
        %v4532 = vsub.f32 %v1860, %v4531
        %v4533 = vand.u32 %v4532, 4294901760
        %4534 = vmatpush1.msra.mxu0 %v4533
        %v4535 = vand.u32 %v1863, 4294901760
        %v4536 = vsub.f32 %v1863, %v4535
        %v4537 = vand.u32 %v4536, 4294901760
        %4538 = vmatprep.subr.mxu0 %v4537
        %v4539 = vand.u32 %v1862, 4294901760
        %v4540 = vsub.f32 %v1862, %v4539
        %v4541 = vand.u32 %v4540, 4294901760
        %4542 = vmatpush1.msra.mxu0 %v4541
        %v4543 = vand.u32 %v1865, 4294901760
        %v4544 = vsub.f32 %v1865, %v4543
        %v4545 = vand.u32 %v4544, 4294901760
        %4546 = vmatprep.subr.mxu0 %v4545
        %v4547 = vand.u32 %v1864, 4294901760
        %v4548 = vsub.f32 %v1864, %v4547
        %v4549 = vand.u32 %v4548, 4294901760
        %4550 = vmatpush1.msra.mxu0 %v4549
        %v4551 = vand.u32 %v1867, 4294901760
        %v4552 = vsub.f32 %v1867, %v4551
        %v4553 = vand.u32 %v4552, 4294901760
        %4554 = vmatprep.subr.mxu0 %v4553
        %v4555 = vand.u32 %v1866, 4294901760
        %v4556 = vsub.f32 %v1866, %v4555
        %v4557 = vand.u32 %v4556, 4294901760
        %4558 = vmatpush1.msra.mxu0 %v4557
        %4559 = vmatprep.subr.mxu0 0.0
        %4560 = vmatpush1.msra.mxu0 0.0
        %4561 = vmatprep.subr.mxu0 0.0
        %4562 = vmatpush1.msra.mxu0 0.0
        %4563 = vmatprep.subr.mxu0 0.0
        %4564 = vmatpush1.msra.mxu0 0.0
        %4565 = vmatprep.subr.mxu0 0.0
        %4566 = vmatpush1.msra.mxu0 0.0
        %4567 = vmatprep.subr.mxu0 0.0
        %4568 = vmatpush1.msra.mxu0 0.0
        %4569 = vmatprep.subr.mxu0 0.0
        %4570 = vmatpush1.msra.mxu0 0.0
        %4571 = vmatprep.subr.mxu0 0.0
        %4572 = vmatpush1.msra.mxu0 0.0
        %4573 = vmatprep.subr.mxu0 0.0
        %4574 = vmatpush1.msra.mxu0 0.0
        %4575 = vmatprep.subr.mxu0 0.0
        %4576 = vmatpush1.msra.mxu0 0.0
        %4577 = vmatprep.subr.mxu0 0.0
        %4578 = vmatpush1.msra.mxu0 0.0
        %4579 = vmatprep.subr.mxu0 0.0
        %4580 = vmatpush1.msra.mxu0 0.0
        %4581 = vmatprep.subr.mxu0 0.0
        %4582 = vmatpush1.msra.mxu0 0.0
        %4583 = vmatprep.subr.mxu0 0.0
        %4584 = vmatpush1.msra.mxu0 0.0
        %4585 = vmatprep.subr.mxu0 0.0
        %4586 = vmatpush1.msra.mxu0 0.0
        %4587 = vmatprep.subr.mxu0 0.0
        %4588 = vmatpush1.msra.mxu0 0.0
        %4589 = vmatprep.subr.mxu0 0.0
        %4590 = vmatpush1.msra.mxu0 0.0
        %4591 = vmatprep.mubr.f32.mxu0 0.0
        %v4592 = vand.u32 %v3105, 4294901760
        %4593 = vmatmul.mubr.f32.gmra.mrb[0].mxu0 %v4592
        %v4594 = vpop.f32.mrb[0].mxu0
        %v4595 = vadd.f32 %v4400, %v4594
        %v4596 = vpop.f32.mrb[0].mxu0
        %v4597 = vadd.f32 %v4402, %v4596
        %4598 = vmatprep.mubr.f32.mxu0 0.0
        %v4599 = vand.u32 %v3107, 4294901760
        %4600 = vmatmul.mubr.f32.gmra.mrb[0].mxu0 %v4599
        %v4601 = vpop.f32.mrb[0].mxu0
        %v4602 = vadd.f32 %v4409, %v4601
        %v4603 = vpop.f32.mrb[0].mxu0
        %v4604 = vadd.f32 %v4411, %v4603
        %4605 = vmatprep.mubr.f32.mxu0 0.0
        %v4606 = vand.u32 %v3109, 4294901760
        %4607 = vmatmul.mubr.f32.gmra.mrb[0].mxu0 %v4606
        %v4608 = vpop.f32.mrb[0].mxu0
        %v4609 = vadd.f32 %v4418, %v4608
        %v4610 = vpop.f32.mrb[0].mxu0
        %v4611 = vadd.f32 %v4420, %v4610
        %4612 = vmatprep.mubr.f32.mxu0 0.0
        %v4613 = vand.u32 %v3111, 4294901760
        %4614 = vmatmul.mubr.f32.gmra.mrb[0].mxu0 %v4613
        %v4615 = vpop.f32.mrb[0].mxu0
        %v4616 = vadd.f32 %v4427, %v4615
        %v4617 = vpop.f32.mrb[0].mxu0
        %v4618 = vadd.f32 %v4429, %v4617
        %4619 = vdwg.mxu0
        %v4620 = vand.u32 %v1837, 4294901760
        %4621 = vmatprep.subr.mxu0 %v4620
        %v4622 = vand.u32 %v1836, 4294901760
        %4623 = vmatpush1.msra.mxu0 %v4622
        %v4624 = vand.u32 %v1839, 4294901760
        %4625 = vmatprep.subr.mxu0 %v4624
        %v4626 = vand.u32 %v1838, 4294901760
        %4627 = vmatpush1.msra.mxu0 %v4626
        %v4628 = vand.u32 %v1841, 4294901760
        %4629 = vmatprep.subr.mxu0 %v4628
        %v4630 = vand.u32 %v1840, 4294901760
        %4631 = vmatpush1.msra.mxu0 %v4630
        %v4632 = vand.u32 %v1843, 4294901760
        %4633 = vmatprep.subr.mxu0 %v4632
        %v4634 = vand.u32 %v1842, 4294901760
        %4635 = vmatpush1.msra.mxu0 %v4634
        %v4636 = vand.u32 %v1845, 4294901760
        %4637 = vmatprep.subr.mxu0 %v4636
        %v4638 = vand.u32 %v1844, 4294901760
        %4639 = vmatpush1.msra.mxu0 %v4638
        %v4640 = vand.u32 %v1847, 4294901760
        %4641 = vmatprep.subr.mxu0 %v4640
        %v4642 = vand.u32 %v1846, 4294901760
        %4643 = vmatpush1.msra.mxu0 %v4642
        %v4644 = vand.u32 %v1849, 4294901760
        %4645 = vmatprep.subr.mxu0 %v4644
        %v4646 = vand.u32 %v1848, 4294901760
        %4647 = vmatpush1.msra.mxu0 %v4646
        %v4648 = vand.u32 %v1851, 4294901760
        %4649 = vmatprep.subr.mxu0 %v4648
        %v4650 = vand.u32 %v1850, 4294901760
        %4651 = vmatpush1.msra.mxu0 %v4650
        %v4652 = vand.u32 %v1853, 4294901760
        %4653 = vmatprep.subr.mxu0 %v4652
        %v4654 = vand.u32 %v1852, 4294901760
        %4655 = vmatpush1.msra.mxu0 %v4654
        %v4656 = vand.u32 %v1855, 4294901760
        %4657 = vmatprep.subr.mxu0 %v4656
        %v4658 = vand.u32 %v1854, 4294901760
        %4659 = vmatpush1.msra.mxu0 %v4658
        %v4660 = vand.u32 %v1857, 4294901760
        %4661 = vmatprep.subr.mxu0 %v4660
        %v4662 = vand.u32 %v1856, 4294901760
        %4663 = vmatpush1.msra.mxu0 %v4662
        %v4664 = vand.u32 %v1859, 4294901760
        %4665 = vmatprep.subr.mxu0 %v4664
        %v4666 = vand.u32 %v1858, 4294901760
        %4667 = vmatpush1.msra.mxu0 %v4666
        %v4668 = vand.u32 %v1861, 4294901760
        %4669 = vmatprep.subr.mxu0 %v4668
        %v4670 = vand.u32 %v1860, 4294901760
        %4671 = vmatpush1.msra.mxu0 %v4670
        %v4672 = vand.u32 %v1863, 4294901760
        %4673 = vmatprep.subr.mxu0 %v4672
        %v4674 = vand.u32 %v1862, 4294901760
        %4675 = vmatpush1.msra.mxu0 %v4674
        %v4676 = vand.u32 %v1865, 4294901760
        %4677 = vmatprep.subr.mxu0 %v4676
        %v4678 = vand.u32 %v1864, 4294901760
        %4679 = vmatpush1.msra.mxu0 %v4678
        %v4680 = vand.u32 %v1867, 4294901760
        %4681 = vmatprep.subr.mxu0 %v4680
        %v4682 = vand.u32 %v1866, 4294901760
        %4683 = vmatpush1.msra.mxu0 %v4682
        %4684 = vmatprep.subr.mxu0 0.0
        %4685 = vmatpush1.msra.mxu0 0.0
        %4686 = vmatprep.subr.mxu0 0.0
        %4687 = vmatpush1.msra.mxu0 0.0
        %4688 = vmatprep.subr.mxu0 0.0
        %4689 = vmatpush1.msra.mxu0 0.0
        %4690 = vmatprep.subr.mxu0 0.0
        %4691 = vmatpush1.msra.mxu0 0.0
        %4692 = vmatprep.subr.mxu0 0.0
        %4693 = vmatpush1.msra.mxu0 0.0
        %4694 = vmatprep.subr.mxu0 0.0
        %4695 = vmatpush1.msra.mxu0 0.0
        %4696 = vmatprep.subr.mxu0 0.0
        %4697 = vmatpush1.msra.mxu0 0.0
        %4698 = vmatprep.subr.mxu0 0.0
        %4699 = vmatpush1.msra.mxu0 0.0
        %4700 = vmatprep.subr.mxu0 0.0
        %4701 = vmatpush1.msra.mxu0 0.0
        %4702 = vmatprep.subr.mxu0 0.0
        %4703 = vmatpush1.msra.mxu0 0.0
        %4704 = vmatprep.subr.mxu0 0.0
        %4705 = vmatpush1.msra.mxu0 0.0
        %4706 = vmatprep.subr.mxu0 0.0
        %4707 = vmatpush1.msra.mxu0 0.0
        %4708 = vmatprep.subr.mxu0 0.0
        %4709 = vmatpush1.msra.mxu0 0.0
        %4710 = vmatprep.subr.mxu0 0.0
        %4711 = vmatpush1.msra.mxu0 0.0
        %4712 = vmatprep.subr.mxu0 0.0
        %4713 = vmatpush1.msra.mxu0 0.0
        %4714 = vmatprep.subr.mxu0 0.0
        %4715 = vmatpush1.msra.mxu0 0.0
        %4716 = vmatprep.mubr.f32.mxu0 0.0
        %v4717 = vand.u32 %v3105, 4294901760
        %4718 = vmatmul.mubr.f32.gmra.mrb[0].mxu0 %v4717
        %v4719 = vpop.f32.mrb[0].mxu0
        %v4720 = vadd.f32 %v4595, %v4719
        %v4721 = vpop.f32.mrb[0].mxu0
        %v4722 = vadd.f32 %v4597, %v4721
        %4723 = vmatprep.mubr.f32.mxu0 0.0
        %v4724 = vand.u32 %v3107, 4294901760
        %4725 = vmatmul.mubr.f32.gmra.mrb[0].mxu0 %v4724
        %v4726 = vpop.f32.mrb[0].mxu0
        %v4727 = vadd.f32 %v4602, %v4726
        %v4728 = vpop.f32.mrb[0].mxu0
        %v4729 = vadd.f32 %v4604, %v4728
        %4730 = vmatprep.mubr.f32.mxu0 0.0
        %v4731 = vand.u32 %v3109, 4294901760
        %4732 = vmatmul.mubr.f32.gmra.mrb[0].mxu0 %v4731
        %v4733 = vpop.f32.mrb[0].mxu0
        %v4734 = vadd.f32 %v4609, %v4733
        %v4735 = vpop.f32.mrb[0].mxu0
        %v4736 = vadd.f32 %v4611, %v4735
        %4737 = vmatprep.mubr.f32.mxu0 0.0
        %v4738 = vand.u32 %v3111, 4294901760
        %4739 = vmatmul.mubr.f32.gmra.mrb[0].mxu0 %v4738
        %v4740 = vpop.f32.mrb[0].mxu0
        %v4741 = vadd.f32 %v4616, %v4740
        %v4742 = vpop.f32.mrb[0].mxu0
        %v4743 = vadd.f32 %v4618, %v4742
        %4744 = vdwg.mxu0
        %v4745 = vand.u32 %v1869, 4294901760
        %4746 = vmatprep.subr.mxu0 %v4745
        %v4747 = vand.u32 %v1868, 4294901760
        %4748 = vmatpush1.msra.mxu0 %v4747
        %v4749 = vand.u32 %v1871, 4294901760
        %4750 = vmatprep.subr.mxu0 %v4749
        %v4751 = vand.u32 %v1870, 4294901760
        %4752 = vmatpush1.msra.mxu0 %v4751
        %v4753 = vand.u32 %v1873, 4294901760
        %4754 = vmatprep.subr.mxu0 %v4753
        %v4755 = vand.u32 %v1872, 4294901760
        %4756 = vmatpush1.msra.mxu0 %v4755
        %v4757 = vand.u32 %v1875, 4294901760
        %4758 = vmatprep.subr.mxu0 %v4757
        %v4759 = vand.u32 %v1874, 4294901760
        %4760 = vmatpush1.msra.mxu0 %v4759
        %v4761 = vand.u32 %v1877, 4294901760
        %4762 = vmatprep.subr.mxu0 %v4761
        %v4763 = vand.u32 %v1876, 4294901760
        %4764 = vmatpush1.msra.mxu0 %v4763
        %v4765 = vand.u32 %v1879, 4294901760
        %4766 = vmatprep.subr.mxu0 %v4765
        %v4767 = vand.u32 %v1878, 4294901760
        %4768 = vmatpush1.msra.mxu0 %v4767
        %v4769 = vand.u32 %v1881, 4294901760
        %4770 = vmatprep.subr.mxu0 %v4769
        %v4771 = vand.u32 %v1880, 4294901760
        %4772 = vmatpush1.msra.mxu0 %v4771
        %v4773 = vand.u32 %v1883, 4294901760
        %4774 = vmatprep.subr.mxu0 %v4773
        %v4775 = vand.u32 %v1882, 4294901760
        %4776 = vmatpush1.msra.mxu0 %v4775
        %v4777 = vand.u32 %v1885, 4294901760
        %4778 = vmatprep.subr.mxu0 %v4777
        %v4779 = vand.u32 %v1884, 4294901760
        %4780 = vmatpush1.msra.mxu0 %v4779
        %v4781 = vand.u32 %v1887, 4294901760
        %4782 = vmatprep.subr.mxu0 %v4781
        %v4783 = vand.u32 %v1886, 4294901760
        %4784 = vmatpush1.msra.mxu0 %v4783
        %v4785 = vand.u32 %v1889, 4294901760
        %4786 = vmatprep.subr.mxu0 %v4785
        %v4787 = vand.u32 %v1888, 4294901760
        %4788 = vmatpush1.msra.mxu0 %v4787
        %v4789 = vand.u32 %v1891, 4294901760
        %4790 = vmatprep.subr.mxu0 %v4789
        %v4791 = vand.u32 %v1890, 4294901760
        %4792 = vmatpush1.msra.mxu0 %v4791
        %v4793 = vand.u32 %v1893, 4294901760
        %4794 = vmatprep.subr.mxu0 %v4793
        %v4795 = vand.u32 %v1892, 4294901760
        %4796 = vmatpush1.msra.mxu0 %v4795
        %v4797 = vand.u32 %v1895, 4294901760
        %4798 = vmatprep.subr.mxu0 %v4797
        %v4799 = vand.u32 %v1894, 4294901760
        %4800 = vmatpush1.msra.mxu0 %v4799
        %v4801 = vand.u32 %v1897, 4294901760
        %4802 = vmatprep.subr.mxu0 %v4801
        %v4803 = vand.u32 %v1896, 4294901760
        %4804 = vmatpush1.msra.mxu0 %v4803
        %v4805 = vand.u32 %v1899, 4294901760
        %4806 = vmatprep.subr.mxu0 %v4805
        %v4807 = vand.u32 %v1898, 4294901760
        %4808 = vmatpush1.msra.mxu0 %v4807
        %4809 = vmatprep.subr.mxu0 0.0
        %4810 = vmatpush1.msra.mxu0 0.0
        %4811 = vmatprep.subr.mxu0 0.0
        %4812 = vmatpush1.msra.mxu0 0.0
        %4813 = vmatprep.subr.mxu0 0.0
        %4814 = vmatpush1.msra.mxu0 0.0
        %4815 = vmatprep.subr.mxu0 0.0
        %4816 = vmatpush1.msra.mxu0 0.0
        %4817 = vmatprep.subr.mxu0 0.0
        %4818 = vmatpush1.msra.mxu0 0.0
        %4819 = vmatprep.subr.mxu0 0.0
        %4820 = vmatpush1.msra.mxu0 0.0
        %4821 = vmatprep.subr.mxu0 0.0
        %4822 = vmatpush1.msra.mxu0 0.0
        %4823 = vmatprep.subr.mxu0 0.0
        %4824 = vmatpush1.msra.mxu0 0.0
        %4825 = vmatprep.subr.mxu0 0.0
        %4826 = vmatpush1.msra.mxu0 0.0
        %4827 = vmatprep.subr.mxu0 0.0
        %4828 = vmatpush1.msra.mxu0 0.0
        %4829 = vmatprep.subr.mxu0 0.0
        %4830 = vmatpush1.msra.mxu0 0.0
        %4831 = vmatprep.subr.mxu0 0.0
        %4832 = vmatpush1.msra.mxu0 0.0
        %4833 = vmatprep.subr.mxu0 0.0
        %4834 = vmatpush1.msra.mxu0 0.0
        %4835 = vmatprep.subr.mxu0 0.0
        %4836 = vmatpush1.msra.mxu0 0.0
        %4837 = vmatprep.subr.mxu0 0.0
        %4838 = vmatpush1.msra.mxu0 0.0
        %4839 = vmatprep.subr.mxu0 0.0
        %4840 = vmatpush1.msra.mxu0 0.0
        %4841 = vmatprep.mubr.f32.mxu0 0.0
        %v4842 = vand.u32 %v3736, 4294901760
        %v4843 = vsub.f32 %v3736, %v4842
        %v4844 = vand.u32 %v4843, 4294901760
        %v4845 = vsub.f32 %v4843, %v4844
        %v4846 = vand.u32 %v4845, 4294901760
        %4847 = vmatmul.mubr.f32.gmra.mrb[0].mxu0 %v4846
        %v4848 = vpop.f32.mrb[0].mxu0
        %v4849 = vadd.f32 0.0, %v4848
        %v4850 = vpop.f32.mrb[0].mxu0
        %v4851 = vadd.f32 0.0, %v4850
        %4852 = vmatprep.mubr.f32.mxu0 0.0
        %v4853 = vand.u32 %v3738, 4294901760
        %v4854 = vsub.f32 %v3738, %v4853
        %v4855 = vand.u32 %v4854, 4294901760
        %v4856 = vsub.f32 %v4854, %v4855
        %v4857 = vand.u32 %v4856, 4294901760
        %4858 = vmatmul.mubr.f32.gmra.mrb[0].mxu0 %v4857
        %v4859 = vpop.f32.mrb[0].mxu0
        %v4860 = vadd.f32 0.0, %v4859
        %v4861 = vpop.f32.mrb[0].mxu0
        %v4862 = vadd.f32 0.0, %v4861
        %4863 = vmatprep.mubr.f32.mxu0 0.0
        %v4864 = vand.u32 %v3740, 4294901760
        %v4865 = vsub.f32 %v3740, %v4864
        %v4866 = vand.u32 %v4865, 4294901760
        %v4867 = vsub.f32 %v4865, %v4866
        %v4868 = vand.u32 %v4867, 4294901760
        %4869 = vmatmul.mubr.f32.gmra.mrb[0].mxu0 %v4868
        %v4870 = vpop.f32.mrb[0].mxu0
        %v4871 = vadd.f32 0.0, %v4870
        %v4872 = vpop.f32.mrb[0].mxu0
        %v4873 = vadd.f32 0.0, %v4872
        %4874 = vmatprep.mubr.f32.mxu0 0.0
        %v4875 = vand.u32 %v3742, 4294901760
        %v4876 = vsub.f32 %v3742, %v4875
        %v4877 = vand.u32 %v4876, 4294901760
        %v4878 = vsub.f32 %v4876, %v4877
        %v4879 = vand.u32 %v4878, 4294901760
        %4880 = vmatmul.mubr.f32.gmra.mrb[0].mxu0 %v4879
        %v4881 = vpop.f32.mrb[0].mxu0
        %v4882 = vadd.f32 0.0, %v4881
        %v4883 = vpop.f32.mrb[0].mxu0
        %v4884 = vadd.f32 0.0, %v4883
        %4885 = vdwg.mxu0
        %v4886 = vand.u32 %v1869, 4294901760
        %v4887 = vsub.f32 %v1869, %v4886
        %v4888 = vand.u32 %v4887, 4294901760
        %v4889 = vsub.f32 %v4887, %v4888
        %v4890 = vand.u32 %v4889, 4294901760
        %4891 = vmatprep.subr.mxu0 %v4890
        %v4892 = vand.u32 %v1868, 4294901760
        %v4893 = vsub.f32 %v1868, %v4892
        %v4894 = vand.u32 %v4893, 4294901760
        %v4895 = vsub.f32 %v4893, %v4894
        %v4896 = vand.u32 %v4895, 4294901760
        %4897 = vmatpush1.msra.mxu0 %v4896
        %v4898 = vand.u32 %v1871, 4294901760
        %v4899 = vsub.f32 %v1871, %v4898
        %v4900 = vand.u32 %v4899, 4294901760
        %v4901 = vsub.f32 %v4899, %v4900
        %v4902 = vand.u32 %v4901, 4294901760
        %4903 = vmatprep.subr.mxu0 %v4902
        %v4904 = vand.u32 %v1870, 4294901760
        %v4905 = vsub.f32 %v1870, %v4904
        %v4906 = vand.u32 %v4905, 4294901760
        %v4907 = vsub.f32 %v4905, %v4906
        %v4908 = vand.u32 %v4907, 4294901760
        %4909 = vmatpush1.msra.mxu0 %v4908
        %v4910 = vand.u32 %v1873, 4294901760
        %v4911 = vsub.f32 %v1873, %v4910
        %v4912 = vand.u32 %v4911, 4294901760
        %v4913 = vsub.f32 %v4911, %v4912
        %v4914 = vand.u32 %v4913, 4294901760
        %4915 = vmatprep.subr.mxu0 %v4914
        %v4916 = vand.u32 %v1872, 4294901760
        %v4917 = vsub.f32 %v1872, %v4916
        %v4918 = vand.u32 %v4917, 4294901760
        %v4919 = vsub.f32 %v4917, %v4918
        %v4920 = vand.u32 %v4919, 4294901760
        %4921 = vmatpush1.msra.mxu0 %v4920
        %v4922 = vand.u32 %v1875, 4294901760
        %v4923 = vsub.f32 %v1875, %v4922
        %v4924 = vand.u32 %v4923, 4294901760
        %v4925 = vsub.f32 %v4923, %v4924
        %v4926 = vand.u32 %v4925, 4294901760
        %4927 = vmatprep.subr.mxu0 %v4926
        %v4928 = vand.u32 %v1874, 4294901760
        %v4929 = vsub.f32 %v1874, %v4928
        %v4930 = vand.u32 %v4929, 4294901760
        %v4931 = vsub.f32 %v4929, %v4930
        %v4932 = vand.u32 %v4931, 4294901760
        %4933 = vmatpush1.msra.mxu0 %v4932
        %v4934 = vand.u32 %v1877, 4294901760
        %v4935 = vsub.f32 %v1877, %v4934
        %v4936 = vand.u32 %v4935, 4294901760
        %v4937 = vsub.f32 %v4935, %v4936
        %v4938 = vand.u32 %v4937, 4294901760
        %4939 = vmatprep.subr.mxu0 %v4938
        %v4940 = vand.u32 %v1876, 4294901760
        %v4941 = vsub.f32 %v1876, %v4940
        %v4942 = vand.u32 %v4941, 4294901760
        %v4943 = vsub.f32 %v4941, %v4942
        %v4944 = vand.u32 %v4943, 4294901760
        %4945 = vmatpush1.msra.mxu0 %v4944
        %v4946 = vand.u32 %v1879, 4294901760
        %v4947 = vsub.f32 %v1879, %v4946
        %v4948 = vand.u32 %v4947, 4294901760
        %v4949 = vsub.f32 %v4947, %v4948
        %v4950 = vand.u32 %v4949, 4294901760
        %4951 = vmatprep.subr.mxu0 %v4950
        %v4952 = vand.u32 %v1878, 4294901760
        %v4953 = vsub.f32 %v1878, %v4952
        %v4954 = vand.u32 %v4953, 4294901760
        %v4955 = vsub.f32 %v4953, %v4954
        %v4956 = vand.u32 %v4955, 4294901760
        %4957 = vmatpush1.msra.mxu0 %v4956
        %v4958 = vand.u32 %v1881, 4294901760
        %v4959 = vsub.f32 %v1881, %v4958
        %v4960 = vand.u32 %v4959, 4294901760
        %v4961 = vsub.f32 %v4959, %v4960
        %v4962 = vand.u32 %v4961, 4294901760
        %4963 = vmatprep.subr.mxu0 %v4962
        %v4964 = vand.u32 %v1880, 4294901760
        %v4965 = vsub.f32 %v1880, %v4964
        %v4966 = vand.u32 %v4965, 4294901760
        %v4967 = vsub.f32 %v4965, %v4966
        %v4968 = vand.u32 %v4967, 4294901760
        %4969 = vmatpush1.msra.mxu0 %v4968
        %v4970 = vand.u32 %v1883, 4294901760
        %v4971 = vsub.f32 %v1883, %v4970
        %v4972 = vand.u32 %v4971, 4294901760
        %v4973 = vsub.f32 %v4971, %v4972
        %v4974 = vand.u32 %v4973, 4294901760
        %4975 = vmatprep.subr.mxu0 %v4974
        %v4976 = vand.u32 %v1882, 4294901760
        %v4977 = vsub.f32 %v1882, %v4976
        %v4978 = vand.u32 %v4977, 4294901760
        %v4979 = vsub.f32 %v4977, %v4978
        %v4980 = vand.u32 %v4979, 4294901760
        %4981 = vmatpush1.msra.mxu0 %v4980
        %v4982 = vand.u32 %v1885, 4294901760
        %v4983 = vsub.f32 %v1885, %v4982
        %v4984 = vand.u32 %v4983, 4294901760
        %v4985 = vsub.f32 %v4983, %v4984
        %v4986 = vand.u32 %v4985, 4294901760
        %4987 = vmatprep.subr.mxu0 %v4986
        %v4988 = vand.u32 %v1884, 4294901760
        %v4989 = vsub.f32 %v1884, %v4988
        %v4990 = vand.u32 %v4989, 4294901760
        %v4991 = vsub.f32 %v4989, %v4990
        %v4992 = vand.u32 %v4991, 4294901760
        %4993 = vmatpush1.msra.mxu0 %v4992
        %v4994 = vand.u32 %v1887, 4294901760
        %v4995 = vsub.f32 %v1887, %v4994
        %v4996 = vand.u32 %v4995, 4294901760
        %v4997 = vsub.f32 %v4995, %v4996
        %v4998 = vand.u32 %v4997, 4294901760
        %4999 = vmatprep.subr.mxu0 %v4998
        %v5000 = vand.u32 %v1886, 4294901760
        %v5001 = vsub.f32 %v1886, %v5000
        %v5002 = vand.u32 %v5001, 4294901760
        %v5003 = vsub.f32 %v5001, %v5002
        %v5004 = vand.u32 %v5003, 4294901760
        %5005 = vmatpush1.msra.mxu0 %v5004
        %v5006 = vand.u32 %v1889, 4294901760
        %v5007 = vsub.f32 %v1889, %v5006
        %v5008 = vand.u32 %v5007, 4294901760
        %v5009 = vsub.f32 %v5007, %v5008
        %v5010 = vand.u32 %v5009, 4294901760
        %5011 = vmatprep.subr.mxu0 %v5010
        %v5012 = vand.u32 %v1888, 4294901760
        %v5013 = vsub.f32 %v1888, %v5012
        %v5014 = vand.u32 %v5013, 4294901760
        %v5015 = vsub.f32 %v5013, %v5014
        %v5016 = vand.u32 %v5015, 4294901760
        %5017 = vmatpush1.msra.mxu0 %v5016
        %v5018 = vand.u32 %v1891, 4294901760
        %v5019 = vsub.f32 %v1891, %v5018
        %v5020 = vand.u32 %v5019, 4294901760
        %v5021 = vsub.f32 %v5019, %v5020
        %v5022 = vand.u32 %v5021, 4294901760
        %5023 = vmatprep.subr.mxu0 %v5022
        %v5024 = vand.u32 %v1890, 4294901760
        %v5025 = vsub.f32 %v1890, %v5024
        %v5026 = vand.u32 %v5025, 4294901760
        %v5027 = vsub.f32 %v5025, %v5026
        %v5028 = vand.u32 %v5027, 4294901760
        %5029 = vmatpush1.msra.mxu0 %v5028
        %v5030 = vand.u32 %v1893, 4294901760
        %v5031 = vsub.f32 %v1893, %v5030
        %v5032 = vand.u32 %v5031, 4294901760
        %v5033 = vsub.f32 %v5031, %v5032
        %v5034 = vand.u32 %v5033, 4294901760
        %5035 = vmatprep.subr.mxu0 %v5034
        %v5036 = vand.u32 %v1892, 4294901760
        %v5037 = vsub.f32 %v1892, %v5036
        %v5038 = vand.u32 %v5037, 4294901760
        %v5039 = vsub.f32 %v5037, %v5038
        %v5040 = vand.u32 %v5039, 4294901760
        %5041 = vmatpush1.msra.mxu0 %v5040
        %v5042 = vand.u32 %v1895, 4294901760
        %v5043 = vsub.f32 %v1895, %v5042
        %v5044 = vand.u32 %v5043, 4294901760
        %v5045 = vsub.f32 %v5043, %v5044
        %v5046 = vand.u32 %v5045, 4294901760
        %5047 = vmatprep.subr.mxu0 %v5046
        %v5048 = vand.u32 %v1894, 4294901760
        %v5049 = vsub.f32 %v1894, %v5048
        %v5050 = vand.u32 %v5049, 4294901760
        %v5051 = vsub.f32 %v5049, %v5050
        %v5052 = vand.u32 %v5051, 4294901760
        %5053 = vmatpush1.msra.mxu0 %v5052
        %v5054 = vand.u32 %v1897, 4294901760
        %v5055 = vsub.f32 %v1897, %v5054
        %v5056 = vand.u32 %v5055, 4294901760
        %v5057 = vsub.f32 %v5055, %v5056
        %v5058 = vand.u32 %v5057, 4294901760
        %5059 = vmatprep.subr.mxu0 %v5058
        %v5060 = vand.u32 %v1896, 4294901760
        %v5061 = vsub.f32 %v1896, %v5060
        %v5062 = vand.u32 %v5061, 4294901760
        %v5063 = vsub.f32 %v5061, %v5062
        %v5064 = vand.u32 %v5063, 4294901760
        %5065 = vmatpush1.msra.mxu0 %v5064
        %v5066 = vand.u32 %v1899, 4294901760
        %v5067 = vsub.f32 %v1899, %v5066
        %v5068 = vand.u32 %v5067, 4294901760
        %v5069 = vsub.f32 %v5067, %v5068
        %v5070 = vand.u32 %v5069, 4294901760
        %5071 = vmatprep.subr.mxu0 %v5070
        %v5072 = vand.u32 %v1898, 4294901760
        %v5073 = vsub.f32 %v1898, %v5072
        %v5074 = vand.u32 %v5073, 4294901760
        %v5075 = vsub.f32 %v5073, %v5074
        %v5076 = vand.u32 %v5075, 4294901760
        %5077 = vmatpush1.msra.mxu0 %v5076
        %5078 = vmatprep.subr.mxu0 0.0
        %5079 = vmatpush1.msra.mxu0 0.0
        %5080 = vmatprep.subr.mxu0 0.0
        %5081 = vmatpush1.msra.mxu0 0.0
        %5082 = vmatprep.subr.mxu0 0.0
        %5083 = vmatpush1.msra.mxu0 0.0
        %5084 = vmatprep.subr.mxu0 0.0
        %5085 = vmatpush1.msra.mxu0 0.0
        %5086 = vmatprep.subr.mxu0 0.0
        %5087 = vmatpush1.msra.mxu0 0.0
        %5088 = vmatprep.subr.mxu0 0.0
        %5089 = vmatpush1.msra.mxu0 0.0
        %5090 = vmatprep.subr.mxu0 0.0
        %5091 = vmatpush1.msra.mxu0 0.0
        %5092 = vmatprep.subr.mxu0 0.0
        %5093 = vmatpush1.msra.mxu0 0.0
        %5094 = vmatprep.subr.mxu0 0.0
        %5095 = vmatpush1.msra.mxu0 0.0
        %5096 = vmatprep.subr.mxu0 0.0
        %5097 = vmatpush1.msra.mxu0 0.0
        %5098 = vmatprep.subr.mxu0 0.0
        %5099 = vmatpush1.msra.mxu0 0.0
        %5100 = vmatprep.subr.mxu0 0.0
        %5101 = vmatpush1.msra.mxu0 0.0
        %5102 = vmatprep.subr.mxu0 0.0
        %5103 = vmatpush1.msra.mxu0 0.0
        %5104 = vmatprep.subr.mxu0 0.0
        %5105 = vmatpush1.msra.mxu0 0.0
        %5106 = vmatprep.subr.mxu0 0.0
        %5107 = vmatpush1.msra.mxu0 0.0
        %5108 = vmatprep.subr.mxu0 0.0
        %5109 = vmatpush1.msra.mxu0 0.0
        %5110 = vmatprep.mubr.f32.mxu0 0.0
        %v5111 = vand.u32 %v3736, 4294901760
        %5112 = vmatmul.mubr.f32.gmra.mrb[0].mxu0 %v5111
        %v5113 = vpop.f32.mrb[0].mxu0
        %v5114 = vadd.f32 %v4849, %v5113
        %v5115 = vpop.f32.mrb[0].mxu0
        %v5116 = vadd.f32 %v4851, %v5115
        %5117 = vmatprep.mubr.f32.mxu0 0.0
        %v5118 = vand.u32 %v3738, 4294901760
        %5119 = vmatmul.mubr.f32.gmra.mrb[0].mxu0 %v5118
        %v5120 = vpop.f32.mrb[0].mxu0
        %v5121 = vadd.f32 %v4860, %v5120
        %v5122 = vpop.f32.mrb[0].mxu0
        %v5123 = vadd.f32 %v4862, %v5122
        %5124 = vmatprep.mubr.f32.mxu0 0.0
        %v5125 = vand.u32 %v3740, 4294901760
        %5126 = vmatmul.mubr.f32.gmra.mrb[0].mxu0 %v5125
        %v5127 = vpop.f32.mrb[0].mxu0
        %v5128 = vadd.f32 %v4871, %v5127
        %v5129 = vpop.f32.mrb[0].mxu0
        %v5130 = vadd.f32 %v4873, %v5129
        %5131 = vmatprep.mubr.f32.mxu0 0.0
        %v5132 = vand.u32 %v3742, 4294901760
        %5133 = vmatmul.mubr.f32.gmra.mrb[0].mxu0 %v5132
        %v5134 = vpop.f32.mrb[0].mxu0
        %v5135 = vadd.f32 %v4882, %v5134
        %v5136 = vpop.f32.mrb[0].mxu0
        %v5137 = vadd.f32 %v4884, %v5136
        %5138 = vdwg.mxu0
        %v5139 = vand.u32 %v1869, 4294901760
        %v5140 = vsub.f32 %v1869, %v5139
        %5141 = vmatprep.subr.mxu0 %v5140
        %v5142 = vand.u32 %v1868, 4294901760
        %v5143 = vsub.f32 %v1868, %v5142
        %5144 = vmatpush1.msra.mxu0 %v5143
        %v5145 = vand.u32 %v1871, 4294901760
        %v5146 = vsub.f32 %v1871, %v5145
        %5147 = vmatprep.subr.mxu0 %v5146
        %v5148 = vand.u32 %v1870, 4294901760
        %v5149 = vsub.f32 %v1870, %v5148
        %5150 = vmatpush1.msra.mxu0 %v5149
        %v5151 = vand.u32 %v1873, 4294901760
        %v5152 = vsub.f32 %v1873, %v5151
        %5153 = vmatprep.subr.mxu0 %v5152
        %v5154 = vand.u32 %v1872, 4294901760
        %v5155 = vsub.f32 %v1872, %v5154
        %5156 = vmatpush1.msra.mxu0 %v5155
        %v5157 = vand.u32 %v1875, 4294901760
        %v5158 = vsub.f32 %v1875, %v5157
        %5159 = vmatprep.subr.mxu0 %v5158
        %v5160 = vand.u32 %v1874, 4294901760
        %v5161 = vsub.f32 %v1874, %v5160
        %5162 = vmatpush1.msra.mxu0 %v5161
        %v5163 = vand.u32 %v1877, 4294901760
        %v5164 = vsub.f32 %v1877, %v5163
        %5165 = vmatprep.subr.mxu0 %v5164
        %v5166 = vand.u32 %v1876, 4294901760
        %v5167 = vsub.f32 %v1876, %v5166
        %5168 = vmatpush1.msra.mxu0 %v5167
        %v5169 = vand.u32 %v1879, 4294901760
        %v5170 = vsub.f32 %v1879, %v5169
        %5171 = vmatprep.subr.mxu0 %v5170
        %v5172 = vand.u32 %v1878, 4294901760
        %v5173 = vsub.f32 %v1878, %v5172
        %5174 = vmatpush1.msra.mxu0 %v5173
        %v5175 = vand.u32 %v1881, 4294901760
        %v5176 = vsub.f32 %v1881, %v5175
        %5177 = vmatprep.subr.mxu0 %v5176
        %v5178 = vand.u32 %v1880, 4294901760
        %v5179 = vsub.f32 %v1880, %v5178
        %5180 = vmatpush1.msra.mxu0 %v5179
        %v5181 = vand.u32 %v1883, 4294901760
        %v5182 = vsub.f32 %v1883, %v5181
        %5183 = vmatprep.subr.mxu0 %v5182
        %v5184 = vand.u32 %v1882, 4294901760
        %v5185 = vsub.f32 %v1882, %v5184
        %5186 = vmatpush1.msra.mxu0 %v5185
        %v5187 = vand.u32 %v1885, 4294901760
        %v5188 = vsub.f32 %v1885, %v5187
        %5189 = vmatprep.subr.mxu0 %v5188
        %v5190 = vand.u32 %v1884, 4294901760
        %v5191 = vsub.f32 %v1884, %v5190
        %5192 = vmatpush1.msra.mxu0 %v5191
        %v5193 = vand.u32 %v1887, 4294901760
        %v5194 = vsub.f32 %v1887, %v5193
        %5195 = vmatprep.subr.mxu0 %v5194
        %v5196 = vand.u32 %v1886, 4294901760
        %v5197 = vsub.f32 %v1886, %v5196
        %5198 = vmatpush1.msra.mxu0 %v5197
        %v5199 = vand.u32 %v1889, 4294901760
        %v5200 = vsub.f32 %v1889, %v5199
        %5201 = vmatprep.subr.mxu0 %v5200
        %v5202 = vand.u32 %v1888, 4294901760
        %v5203 = vsub.f32 %v1888, %v5202
        %5204 = vmatpush1.msra.mxu0 %v5203
        %v5205 = vand.u32 %v1891, 4294901760
        %v5206 = vsub.f32 %v1891, %v5205
        %5207 = vmatprep.subr.mxu0 %v5206
        %v5208 = vand.u32 %v1890, 4294901760
        %v5209 = vsub.f32 %v1890, %v5208
        %5210 = vmatpush1.msra.mxu0 %v5209
        %v5211 = vand.u32 %v1893, 4294901760
        %v5212 = vsub.f32 %v1893, %v5211
        %5213 = vmatprep.subr.mxu0 %v5212
        %v5214 = vand.u32 %v1892, 4294901760
        %v5215 = vsub.f32 %v1892, %v5214
        %5216 = vmatpush1.msra.mxu0 %v5215
        %v5217 = vand.u32 %v1895, 4294901760
        %v5218 = vsub.f32 %v1895, %v5217
        %5219 = vmatprep.subr.mxu0 %v5218
        %v5220 = vand.u32 %v1894, 4294901760
        %v5221 = vsub.f32 %v1894, %v5220
        %5222 = vmatpush1.msra.mxu0 %v5221
        %v5223 = vand.u32 %v1897, 4294901760
        %v5224 = vsub.f32 %v1897, %v5223
        %5225 = vmatprep.subr.mxu0 %v5224
        %v5226 = vand.u32 %v1896, 4294901760
        %v5227 = vsub.f32 %v1896, %v5226
        %5228 = vmatpush1.msra.mxu0 %v5227
        %v5229 = vand.u32 %v1899, 4294901760
        %v5230 = vsub.f32 %v1899, %v5229
        %5231 = vmatprep.subr.mxu0 %v5230
        %v5232 = vand.u32 %v1898, 4294901760
        %v5233 = vsub.f32 %v1898, %v5232
        %5234 = vmatpush1.msra.mxu0 %v5233
        %5235 = vmatprep.subr.mxu0 0.0
        %5236 = vmatpush1.msra.mxu0 0.0
        %5237 = vmatprep.subr.mxu0 0.0
        %5238 = vmatpush1.msra.mxu0 0.0
        %5239 = vmatprep.subr.mxu0 0.0
        %5240 = vmatpush1.msra.mxu0 0.0
        %5241 = vmatprep.subr.mxu0 0.0
        %5242 = vmatpush1.msra.mxu0 0.0
        %5243 = vmatprep.subr.mxu0 0.0
        %5244 = vmatpush1.msra.mxu0 0.0
        %5245 = vmatprep.subr.mxu0 0.0
        %5246 = vmatpush1.msra.mxu0 0.0
        %5247 = vmatprep.subr.mxu0 0.0
        %5248 = vmatpush1.msra.mxu0 0.0
        %5249 = vmatprep.subr.mxu0 0.0
        %5250 = vmatpush1.msra.mxu0 0.0
        %5251 = vmatprep.subr.mxu0 0.0
        %5252 = vmatpush1.msra.mxu0 0.0
        %5253 = vmatprep.subr.mxu0 0.0
        %5254 = vmatpush1.msra.mxu0 0.0
        %5255 = vmatprep.subr.mxu0 0.0
        %5256 = vmatpush1.msra.mxu0 0.0
        %5257 = vmatprep.subr.mxu0 0.0
        %5258 = vmatpush1.msra.mxu0 0.0
        %5259 = vmatprep.subr.mxu0 0.0
        %5260 = vmatpush1.msra.mxu0 0.0
        %5261 = vmatprep.subr.mxu0 0.0
        %5262 = vmatpush1.msra.mxu0 0.0
        %5263 = vmatprep.subr.mxu0 0.0
        %5264 = vmatpush1.msra.mxu0 0.0
        %5265 = vmatprep.subr.mxu0 0.0
        %5266 = vmatpush1.msra.mxu0 0.0
        %5267 = vmatprep.mubr.f32.mxu0 0.0
        %v5268 = vand.u32 %v3736, 4294901760
        %v5269 = vsub.f32 %v3736, %v5268
        %5270 = vmatmul.mubr.f32.gmra.mrb[0].mxu0 %v5269
        %v5271 = vpop.f32.mrb[0].mxu0
        %v5272 = vadd.f32 %v5114, %v5271
        %v5273 = vpop.f32.mrb[0].mxu0
        %v5274 = vadd.f32 %v5116, %v5273
        %5275 = vmatprep.mubr.f32.mxu0 0.0
        %v5276 = vand.u32 %v3738, 4294901760
        %v5277 = vsub.f32 %v3738, %v5276
        %5278 = vmatmul.mubr.f32.gmra.mrb[0].mxu0 %v5277
        %v5279 = vpop.f32.mrb[0].mxu0
        %v5280 = vadd.f32 %v5121, %v5279
        %v5281 = vpop.f32.mrb[0].mxu0
        %v5282 = vadd.f32 %v5123, %v5281
        %5283 = vmatprep.mubr.f32.mxu0 0.0
        %v5284 = vand.u32 %v3740, 4294901760
        %v5285 = vsub.f32 %v3740, %v5284
        %5286 = vmatmul.mubr.f32.gmra.mrb[0].mxu0 %v5285
        %v5287 = vpop.f32.mrb[0].mxu0
        %v5288 = vadd.f32 %v5128, %v5287
        %v5289 = vpop.f32.mrb[0].mxu0
        %v5290 = vadd.f32 %v5130, %v5289
        %5291 = vmatprep.mubr.f32.mxu0 0.0
        %v5292 = vand.u32 %v3742, 4294901760
        %v5293 = vsub.f32 %v3742, %v5292
        %5294 = vmatmul.mubr.f32.gmra.mrb[0].mxu0 %v5293
        %v5295 = vpop.f32.mrb[0].mxu0
        %v5296 = vadd.f32 %v5135, %v5295
        %v5297 = vpop.f32.mrb[0].mxu0
        %v5298 = vadd.f32 %v5137, %v5297
        %5299 = vdwg.mxu0
        %v5300 = vand.u32 %v1869, 4294901760
        %5301 = vmatprep.subr.mxu0 %v5300
        %v5302 = vand.u32 %v1868, 4294901760
        %5303 = vmatpush1.msra.mxu0 %v5302
        %v5304 = vand.u32 %v1871, 4294901760
        %5305 = vmatprep.subr.mxu0 %v5304
        %v5306 = vand.u32 %v1870, 4294901760
        %5307 = vmatpush1.msra.mxu0 %v5306
        %v5308 = vand.u32 %v1873, 4294901760
        %5309 = vmatprep.subr.mxu0 %v5308
        %v5310 = vand.u32 %v1872, 4294901760
        %5311 = vmatpush1.msra.mxu0 %v5310
        %v5312 = vand.u32 %v1875, 4294901760
        %5313 = vmatprep.subr.mxu0 %v5312
        %v5314 = vand.u32 %v1874, 4294901760
        %5315 = vmatpush1.msra.mxu0 %v5314
        %v5316 = vand.u32 %v1877, 4294901760
        %5317 = vmatprep.subr.mxu0 %v5316
        %v5318 = vand.u32 %v1876, 4294901760
        %5319 = vmatpush1.msra.mxu0 %v5318
        %v5320 = vand.u32 %v1879, 4294901760
        %5321 = vmatprep.subr.mxu0 %v5320
        %v5322 = vand.u32 %v1878, 4294901760
        %5323 = vmatpush1.msra.mxu0 %v5322
        %v5324 = vand.u32 %v1881, 4294901760
        %5325 = vmatprep.subr.mxu0 %v5324
        %v5326 = vand.u32 %v1880, 4294901760
        %5327 = vmatpush1.msra.mxu0 %v5326
        %v5328 = vand.u32 %v1883, 4294901760
        %5329 = vmatprep.subr.mxu0 %v5328
        %v5330 = vand.u32 %v1882, 4294901760
        %5331 = vmatpush1.msra.mxu0 %v5330
        %v5332 = vand.u32 %v1885, 4294901760
        %5333 = vmatprep.subr.mxu0 %v5332
        %v5334 = vand.u32 %v1884, 4294901760
        %5335 = vmatpush1.msra.mxu0 %v5334
        %v5336 = vand.u32 %v1887, 4294901760
        %5337 = vmatprep.subr.mxu0 %v5336
        %v5338 = vand.u32 %v1886, 4294901760
        %5339 = vmatpush1.msra.mxu0 %v5338
        %v5340 = vand.u32 %v1889, 4294901760
        %5341 = vmatprep.subr.mxu0 %v5340
        %v5342 = vand.u32 %v1888, 4294901760
        %5343 = vmatpush1.msra.mxu0 %v5342
        %v5344 = vand.u32 %v1891, 4294901760
        %5345 = vmatprep.subr.mxu0 %v5344
        %v5346 = vand.u32 %v1890, 4294901760
        %5347 = vmatpush1.msra.mxu0 %v5346
        %v5348 = vand.u32 %v1893, 4294901760
        %5349 = vmatprep.subr.mxu0 %v5348
        %v5350 = vand.u32 %v1892, 4294901760
        %5351 = vmatpush1.msra.mxu0 %v5350
        %v5352 = vand.u32 %v1895, 4294901760
        %5353 = vmatprep.subr.mxu0 %v5352
        %v5354 = vand.u32 %v1894, 4294901760
        %5355 = vmatpush1.msra.mxu0 %v5354
        %v5356 = vand.u32 %v1897, 4294901760
        %5357 = vmatprep.subr.mxu0 %v5356
        %v5358 = vand.u32 %v1896, 4294901760
        %5359 = vmatpush1.msra.mxu0 %v5358
        %v5360 = vand.u32 %v1899, 4294901760
        %5361 = vmatprep.subr.mxu0 %v5360
        %v5362 = vand.u32 %v1898, 4294901760
        %5363 = vmatpush1.msra.mxu0 %v5362
        %5364 = vmatprep.subr.mxu0 0.0
        %5365 = vmatpush1.msra.mxu0 0.0
        %5366 = vmatprep.subr.mxu0 0.0
        %5367 = vmatpush1.msra.mxu0 0.0
        %5368 = vmatprep.subr.mxu0 0.0
        %5369 = vmatpush1.msra.mxu0 0.0
        %5370 = vmatprep.subr.mxu0 0.0
        %5371 = vmatpush1.msra.mxu0 0.0
        %5372 = vmatprep.subr.mxu0 0.0
        %5373 = vmatpush1.msra.mxu0 0.0
        %5374 = vmatprep.subr.mxu0 0.0
        %5375 = vmatpush1.msra.mxu0 0.0
        %5376 = vmatprep.subr.mxu0 0.0
        %5377 = vmatpush1.msra.mxu0 0.0
        %5378 = vmatprep.subr.mxu0 0.0
        %5379 = vmatpush1.msra.mxu0 0.0
        %5380 = vmatprep.subr.mxu0 0.0
        %5381 = vmatpush1.msra.mxu0 0.0
        %5382 = vmatprep.subr.mxu0 0.0
        %5383 = vmatpush1.msra.mxu0 0.0
        %5384 = vmatprep.subr.mxu0 0.0
        %5385 = vmatpush1.msra.mxu0 0.0
        %5386 = vmatprep.subr.mxu0 0.0
        %5387 = vmatpush1.msra.mxu0 0.0
        %5388 = vmatprep.subr.mxu0 0.0
        %5389 = vmatpush1.msra.mxu0 0.0
        %5390 = vmatprep.subr.mxu0 0.0
        %5391 = vmatpush1.msra.mxu0 0.0
        %5392 = vmatprep.subr.mxu0 0.0
        %5393 = vmatpush1.msra.mxu0 0.0
        %5394 = vmatprep.subr.mxu0 0.0
        %5395 = vmatpush1.msra.mxu0 0.0
        %5396 = vmatprep.mubr.f32.mxu0 0.0
        %v5397 = vand.u32 %v3736, 4294901760
        %v5398 = vsub.f32 %v3736, %v5397
        %v5399 = vand.u32 %v5398, 4294901760
        %5400 = vmatmul.mubr.f32.gmra.mrb[0].mxu0 %v5399
        %v5401 = vpop.f32.mrb[0].mxu0
        %v5402 = vadd.f32 %v5272, %v5401
        %v5403 = vpop.f32.mrb[0].mxu0
        %v5404 = vadd.f32 %v5274, %v5403
        %5405 = vmatprep.mubr.f32.mxu0 0.0
        %v5406 = vand.u32 %v3738, 4294901760
        %v5407 = vsub.f32 %v3738, %v5406
        %v5408 = vand.u32 %v5407, 4294901760
        %5409 = vmatmul.mubr.f32.gmra.mrb[0].mxu0 %v5408
        %v5410 = vpop.f32.mrb[0].mxu0
        %v5411 = vadd.f32 %v5280, %v5410
        %v5412 = vpop.f32.mrb[0].mxu0
        %v5413 = vadd.f32 %v5282, %v5412
        %5414 = vmatprep.mubr.f32.mxu0 0.0
        %v5415 = vand.u32 %v3740, 4294901760
        %v5416 = vsub.f32 %v3740, %v5415
        %v5417 = vand.u32 %v5416, 4294901760
        %5418 = vmatmul.mubr.f32.gmra.mrb[0].mxu0 %v5417
        %v5419 = vpop.f32.mrb[0].mxu0
        %v5420 = vadd.f32 %v5288, %v5419
        %v5421 = vpop.f32.mrb[0].mxu0
        %v5422 = vadd.f32 %v5290, %v5421
        %5423 = vmatprep.mubr.f32.mxu0 0.0
        %v5424 = vand.u32 %v3742, 4294901760
        %v5425 = vsub.f32 %v3742, %v5424
        %v5426 = vand.u32 %v5425, 4294901760
        %5427 = vmatmul.mubr.f32.gmra.mrb[0].mxu0 %v5426
        %v5428 = vpop.f32.mrb[0].mxu0
        %v5429 = vadd.f32 %v5296, %v5428
        %v5430 = vpop.f32.mrb[0].mxu0
        %v5431 = vadd.f32 %v5298, %v5430
        %5432 = vdwg.mxu0
        %v5433 = vand.u32 %v1869, 4294901760
        %v5434 = vsub.f32 %v1869, %v5433
        %v5435 = vand.u32 %v5434, 4294901760
        %5436 = vmatprep.subr.mxu0 %v5435
        %v5437 = vand.u32 %v1868, 4294901760
        %v5438 = vsub.f32 %v1868, %v5437
        %v5439 = vand.u32 %v5438, 4294901760
        %5440 = vmatpush1.msra.mxu0 %v5439
        %v5441 = vand.u32 %v1871, 4294901760
        %v5442 = vsub.f32 %v1871, %v5441
        %v5443 = vand.u32 %v5442, 4294901760
        %5444 = vmatprep.subr.mxu0 %v5443
        %v5445 = vand.u32 %v1870, 4294901760
        %v5446 = vsub.f32 %v1870, %v5445
        %v5447 = vand.u32 %v5446, 4294901760
        %5448 = vmatpush1.msra.mxu0 %v5447
        %v5449 = vand.u32 %v1873, 4294901760
        %v5450 = vsub.f32 %v1873, %v5449
        %v5451 = vand.u32 %v5450, 4294901760
        %5452 = vmatprep.subr.mxu0 %v5451
        %v5453 = vand.u32 %v1872, 4294901760
        %v5454 = vsub.f32 %v1872, %v5453
        %v5455 = vand.u32 %v5454, 4294901760
        %5456 = vmatpush1.msra.mxu0 %v5455
        %v5457 = vand.u32 %v1875, 4294901760
        %v5458 = vsub.f32 %v1875, %v5457
        %v5459 = vand.u32 %v5458, 4294901760
        %5460 = vmatprep.subr.mxu0 %v5459
        %v5461 = vand.u32 %v1874, 4294901760
        %v5462 = vsub.f32 %v1874, %v5461
        %v5463 = vand.u32 %v5462, 4294901760
        %5464 = vmatpush1.msra.mxu0 %v5463
        %v5465 = vand.u32 %v1877, 4294901760
        %v5466 = vsub.f32 %v1877, %v5465
        %v5467 = vand.u32 %v5466, 4294901760
        %5468 = vmatprep.subr.mxu0 %v5467
        %v5469 = vand.u32 %v1876, 4294901760
        %v5470 = vsub.f32 %v1876, %v5469
        %v5471 = vand.u32 %v5470, 4294901760
        %5472 = vmatpush1.msra.mxu0 %v5471
        %v5473 = vand.u32 %v1879, 4294901760
        %v5474 = vsub.f32 %v1879, %v5473
        %v5475 = vand.u32 %v5474, 4294901760
        %5476 = vmatprep.subr.mxu0 %v5475
        %v5477 = vand.u32 %v1878, 4294901760
        %v5478 = vsub.f32 %v1878, %v5477
        %v5479 = vand.u32 %v5478, 4294901760
        %5480 = vmatpush1.msra.mxu0 %v5479
        %v5481 = vand.u32 %v1881, 4294901760
        %v5482 = vsub.f32 %v1881, %v5481
        %v5483 = vand.u32 %v5482, 4294901760
        %5484 = vmatprep.subr.mxu0 %v5483
        %v5485 = vand.u32 %v1880, 4294901760
        %v5486 = vsub.f32 %v1880, %v5485
        %v5487 = vand.u32 %v5486, 4294901760
        %5488 = vmatpush1.msra.mxu0 %v5487
        %v5489 = vand.u32 %v1883, 4294901760
        %v5490 = vsub.f32 %v1883, %v5489
        %v5491 = vand.u32 %v5490, 4294901760
        %5492 = vmatprep.subr.mxu0 %v5491
        %v5493 = vand.u32 %v1882, 4294901760
        %v5494 = vsub.f32 %v1882, %v5493
        %v5495 = vand.u32 %v5494, 4294901760
        %5496 = vmatpush1.msra.mxu0 %v5495
        %v5497 = vand.u32 %v1885, 4294901760
        %v5498 = vsub.f32 %v1885, %v5497
        %v5499 = vand.u32 %v5498, 4294901760
        %5500 = vmatprep.subr.mxu0 %v5499
        %v5501 = vand.u32 %v1884, 4294901760
        %v5502 = vsub.f32 %v1884, %v5501
        %v5503 = vand.u32 %v5502, 4294901760
        %5504 = vmatpush1.msra.mxu0 %v5503
        %v5505 = vand.u32 %v1887, 4294901760
        %v5506 = vsub.f32 %v1887, %v5505
        %v5507 = vand.u32 %v5506, 4294901760
        %5508 = vmatprep.subr.mxu0 %v5507
        %v5509 = vand.u32 %v1886, 4294901760
        %v5510 = vsub.f32 %v1886, %v5509
        %v5511 = vand.u32 %v5510, 4294901760
        %5512 = vmatpush1.msra.mxu0 %v5511
        %v5513 = vand.u32 %v1889, 4294901760
        %v5514 = vsub.f32 %v1889, %v5513
        %v5515 = vand.u32 %v5514, 4294901760
        %5516 = vmatprep.subr.mxu0 %v5515
        %v5517 = vand.u32 %v1888, 4294901760
        %v5518 = vsub.f32 %v1888, %v5517
        %v5519 = vand.u32 %v5518, 4294901760
        %5520 = vmatpush1.msra.mxu0 %v5519
        %v5521 = vand.u32 %v1891, 4294901760
        %v5522 = vsub.f32 %v1891, %v5521
        %v5523 = vand.u32 %v5522, 4294901760
        %5524 = vmatprep.subr.mxu0 %v5523
        %v5525 = vand.u32 %v1890, 4294901760
        %v5526 = vsub.f32 %v1890, %v5525
        %v5527 = vand.u32 %v5526, 4294901760
        %5528 = vmatpush1.msra.mxu0 %v5527
        %v5529 = vand.u32 %v1893, 4294901760
        %v5530 = vsub.f32 %v1893, %v5529
        %v5531 = vand.u32 %v5530, 4294901760
        %5532 = vmatprep.subr.mxu0 %v5531
        %v5533 = vand.u32 %v1892, 4294901760
        %v5534 = vsub.f32 %v1892, %v5533
        %v5535 = vand.u32 %v5534, 4294901760
        %5536 = vmatpush1.msra.mxu0 %v5535
        %v5537 = vand.u32 %v1895, 4294901760
        %v5538 = vsub.f32 %v1895, %v5537
        %v5539 = vand.u32 %v5538, 4294901760
        %5540 = vmatprep.subr.mxu0 %v5539
        %v5541 = vand.u32 %v1894, 4294901760
        %v5542 = vsub.f32 %v1894, %v5541
        %v5543 = vand.u32 %v5542, 4294901760
        %5544 = vmatpush1.msra.mxu0 %v5543
        %v5545 = vand.u32 %v1897, 4294901760
        %v5546 = vsub.f32 %v1897, %v5545
        %v5547 = vand.u32 %v5546, 4294901760
        %5548 = vmatprep.subr.mxu0 %v5547
        %v5549 = vand.u32 %v1896, 4294901760
        %v5550 = vsub.f32 %v1896, %v5549
        %v5551 = vand.u32 %v5550, 4294901760
        %5552 = vmatpush1.msra.mxu0 %v5551
        %v5553 = vand.u32 %v1899, 4294901760
        %v5554 = vsub.f32 %v1899, %v5553
        %v5555 = vand.u32 %v5554, 4294901760
        %5556 = vmatprep.subr.mxu0 %v5555
        %v5557 = vand.u32 %v1898, 4294901760
        %v5558 = vsub.f32 %v1898, %v5557
        %v5559 = vand.u32 %v5558, 4294901760
        %5560 = vmatpush1.msra.mxu0 %v5559
        %5561 = vmatprep.subr.mxu0 0.0
        %5562 = vmatpush1.msra.mxu0 0.0
        %5563 = vmatprep.subr.mxu0 0.0
        %5564 = vmatpush1.msra.mxu0 0.0
        %5565 = vmatprep.subr.mxu0 0.0
        %5566 = vmatpush1.msra.mxu0 0.0
        %5567 = vmatprep.subr.mxu0 0.0
        %5568 = vmatpush1.msra.mxu0 0.0
        %5569 = vmatprep.subr.mxu0 0.0
        %5570 = vmatpush1.msra.mxu0 0.0
        %5571 = vmatprep.subr.mxu0 0.0
        %5572 = vmatpush1.msra.mxu0 0.0
        %5573 = vmatprep.subr.mxu0 0.0
        %5574 = vmatpush1.msra.mxu0 0.0
        %5575 = vmatprep.subr.mxu0 0.0
        %5576 = vmatpush1.msra.mxu0 0.0
        %5577 = vmatprep.subr.mxu0 0.0
        %5578 = vmatpush1.msra.mxu0 0.0
        %5579 = vmatprep.subr.mxu0 0.0
        %5580 = vmatpush1.msra.mxu0 0.0
        %5581 = vmatprep.subr.mxu0 0.0
        %5582 = vmatpush1.msra.mxu0 0.0
        %5583 = vmatprep.subr.mxu0 0.0
        %5584 = vmatpush1.msra.mxu0 0.0
        %5585 = vmatprep.subr.mxu0 0.0
        %5586 = vmatpush1.msra.mxu0 0.0
        %5587 = vmatprep.subr.mxu0 0.0
        %5588 = vmatpush1.msra.mxu0 0.0
        %5589 = vmatprep.subr.mxu0 0.0
        %5590 = vmatpush1.msra.mxu0 0.0
        %5591 = vmatprep.subr.mxu0 0.0
        %5592 = vmatpush1.msra.mxu0 0.0
        %5593 = vmatprep.mubr.f32.mxu0 0.0
        %v5594 = vand.u32 %v3736, 4294901760
        %5595 = vmatmul.mubr.f32.gmra.mrb[0].mxu0 %v5594
        %v5596 = vpop.f32.mrb[0].mxu0
        %v5597 = vadd.f32 %v5402, %v5596
        %v5598 = vpop.f32.mrb[0].mxu0
        %v5599 = vadd.f32 %v5404, %v5598
        %5600 = vmatprep.mubr.f32.mxu0 0.0
        %v5601 = vand.u32 %v3738, 4294901760
        %5602 = vmatmul.mubr.f32.gmra.mrb[0].mxu0 %v5601
        %v5603 = vpop.f32.mrb[0].mxu0
        %v5604 = vadd.f32 %v5411, %v5603
        %v5605 = vpop.f32.mrb[0].mxu0
        %v5606 = vadd.f32 %v5413, %v5605
        %5607 = vmatprep.mubr.f32.mxu0 0.0
        %v5608 = vand.u32 %v3740, 4294901760
        %5609 = vmatmul.mubr.f32.gmra.mrb[0].mxu0 %v5608
        %v5610 = vpop.f32.mrb[0].mxu0
        %v5611 = vadd.f32 %v5420, %v5610
        %v5612 = vpop.f32.mrb[0].mxu0
        %v5613 = vadd.f32 %v5422, %v5612
        %5614 = vmatprep.mubr.f32.mxu0 0.0
        %v5615 = vand.u32 %v3742, 4294901760
        %5616 = vmatmul.mubr.f32.gmra.mrb[0].mxu0 %v5615
        %v5617 = vpop.f32.mrb[0].mxu0
        %v5618 = vadd.f32 %v5429, %v5617
        %v5619 = vpop.f32.mrb[0].mxu0
        %v5620 = vadd.f32 %v5431, %v5619
        %5621 = vdwg.mxu0
        %v5622 = vand.u32 %v1869, 4294901760
        %5623 = vmatprep.subr.mxu0 %v5622
        %v5624 = vand.u32 %v1868, 4294901760
        %5625 = vmatpush1.msra.mxu0 %v5624
        %v5626 = vand.u32 %v1871, 4294901760
        %5627 = vmatprep.subr.mxu0 %v5626
        %v5628 = vand.u32 %v1870, 4294901760
        %5629 = vmatpush1.msra.mxu0 %v5628
        %v5630 = vand.u32 %v1873, 4294901760
        %5631 = vmatprep.subr.mxu0 %v5630
        %v5632 = vand.u32 %v1872, 4294901760
        %5633 = vmatpush1.msra.mxu0 %v5632
        %v5634 = vand.u32 %v1875, 4294901760
        %5635 = vmatprep.subr.mxu0 %v5634
        %v5636 = vand.u32 %v1874, 4294901760
        %5637 = vmatpush1.msra.mxu0 %v5636
        %v5638 = vand.u32 %v1877, 4294901760
        %5639 = vmatprep.subr.mxu0 %v5638
        %v5640 = vand.u32 %v1876, 4294901760
        %5641 = vmatpush1.msra.mxu0 %v5640
        %v5642 = vand.u32 %v1879, 4294901760
        %5643 = vmatprep.subr.mxu0 %v5642
        %v5644 = vand.u32 %v1878, 4294901760
        %5645 = vmatpush1.msra.mxu0 %v5644
        %v5646 = vand.u32 %v1881, 4294901760
        %5647 = vmatprep.subr.mxu0 %v5646
        %v5648 = vand.u32 %v1880, 4294901760
        %5649 = vmatpush1.msra.mxu0 %v5648
        %v5650 = vand.u32 %v1883, 4294901760
        %5651 = vmatprep.subr.mxu0 %v5650
        %v5652 = vand.u32 %v1882, 4294901760
        %5653 = vmatpush1.msra.mxu0 %v5652
        %v5654 = vand.u32 %v1885, 4294901760
        %5655 = vmatprep.subr.mxu0 %v5654
        %v5656 = vand.u32 %v1884, 4294901760
        %5657 = vmatpush1.msra.mxu0 %v5656
        %v5658 = vand.u32 %v1887, 4294901760
        %5659 = vmatprep.subr.mxu0 %v5658
        %v5660 = vand.u32 %v1886, 4294901760
        %5661 = vmatpush1.msra.mxu0 %v5660
        %v5662 = vand.u32 %v1889, 4294901760
        %5663 = vmatprep.subr.mxu0 %v5662
        %v5664 = vand.u32 %v1888, 4294901760
        %5665 = vmatpush1.msra.mxu0 %v5664
        %v5666 = vand.u32 %v1891, 4294901760
        %5667 = vmatprep.subr.mxu0 %v5666
        %v5668 = vand.u32 %v1890, 4294901760
        %5669 = vmatpush1.msra.mxu0 %v5668
        %v5670 = vand.u32 %v1893, 4294901760
        %5671 = vmatprep.subr.mxu0 %v5670
        %v5672 = vand.u32 %v1892, 4294901760
        %5673 = vmatpush1.msra.mxu0 %v5672
        %v5674 = vand.u32 %v1895, 4294901760
        %5675 = vmatprep.subr.mxu0 %v5674
        %v5676 = vand.u32 %v1894, 4294901760
        %5677 = vmatpush1.msra.mxu0 %v5676
        %v5678 = vand.u32 %v1897, 4294901760
        %5679 = vmatprep.subr.mxu0 %v5678
        %v5680 = vand.u32 %v1896, 4294901760
        %5681 = vmatpush1.msra.mxu0 %v5680
        %v5682 = vand.u32 %v1899, 4294901760
        %5683 = vmatprep.subr.mxu0 %v5682
        %v5684 = vand.u32 %v1898, 4294901760
        %5685 = vmatpush1.msra.mxu0 %v5684
        %5686 = vmatprep.subr.mxu0 0.0
        %5687 = vmatpush1.msra.mxu0 0.0
        %5688 = vmatprep.subr.mxu0 0.0
        %5689 = vmatpush1.msra.mxu0 0.0
        %5690 = vmatprep.subr.mxu0 0.0
        %5691 = vmatpush1.msra.mxu0 0.0
        %5692 = vmatprep.subr.mxu0 0.0
        %5693 = vmatpush1.msra.mxu0 0.0
        %5694 = vmatprep.subr.mxu0 0.0
        %5695 = vmatpush1.msra.mxu0 0.0
        %5696 = vmatprep.subr.mxu0 0.0
        %5697 = vmatpush1.msra.mxu0 0.0
        %5698 = vmatprep.subr.mxu0 0.0
        %5699 = vmatpush1.msra.mxu0 0.0
        %5700 = vmatprep.subr.mxu0 0.0
        %5701 = vmatpush1.msra.mxu0 0.0
        %5702 = vmatprep.subr.mxu0 0.0
        %5703 = vmatpush1.msra.mxu0 0.0
        %5704 = vmatprep.subr.mxu0 0.0
        %5705 = vmatpush1.msra.mxu0 0.0
        %5706 = vmatprep.subr.mxu0 0.0
        %5707 = vmatpush1.msra.mxu0 0.0
        %5708 = vmatprep.subr.mxu0 0.0
        %5709 = vmatpush1.msra.mxu0 0.0
        %5710 = vmatprep.subr.mxu0 0.0
        %5711 = vmatpush1.msra.mxu0 0.0
        %5712 = vmatprep.subr.mxu0 0.0
        %5713 = vmatpush1.msra.mxu0 0.0
        %5714 = vmatprep.subr.mxu0 0.0
        %5715 = vmatpush1.msra.mxu0 0.0
        %5716 = vmatprep.subr.mxu0 0.0
        %5717 = vmatpush1.msra.mxu0 0.0
        %5718 = vmatprep.mubr.f32.mxu0 0.0
        %v5719 = vand.u32 %v3736, 4294901760
        %5720 = vmatmul.mubr.f32.gmra.mrb[0].mxu0 %v5719
        %v5721 = vpop.f32.mrb[0].mxu0
        %v5722 = vadd.f32 %v5597, %v5721
        %v5723 = vpop.f32.mrb[0].mxu0
        %v5724 = vadd.f32 %v5599, %v5723
        %5725 = vmatprep.mubr.f32.mxu0 0.0
        %v5726 = vand.u32 %v3738, 4294901760
        %5727 = vmatmul.mubr.f32.gmra.mrb[0].mxu0 %v5726
        %v5728 = vpop.f32.mrb[0].mxu0
        %v5729 = vadd.f32 %v5604, %v5728
        %v5730 = vpop.f32.mrb[0].mxu0
        %v5731 = vadd.f32 %v5606, %v5730
        %5732 = vmatprep.mubr.f32.mxu0 0.0
        %v5733 = vand.u32 %v3740, 4294901760
        %5734 = vmatmul.mubr.f32.gmra.mrb[0].mxu0 %v5733
        %v5735 = vpop.f32.mrb[0].mxu0
        %v5736 = vadd.f32 %v5611, %v5735
        %v5737 = vpop.f32.mrb[0].mxu0
        %v5738 = vadd.f32 %v5613, %v5737
        %5739 = vmatprep.mubr.f32.mxu0 0.0
        %v5740 = vand.u32 %v3742, 4294901760
        %5741 = vmatmul.mubr.f32.gmra.mrb[0].mxu0 %v5740
        %v5742 = vpop.f32.mrb[0].mxu0
        %v5743 = vadd.f32 %v5618, %v5742
        %v5744 = vpop.f32.mrb[0].mxu0
        %v5745 = vadd.f32 %v5620, %v5744
        %5746 = vdwg.mxu0
        %v5747 = vmul.f32 %v294, %v4720
        %v5748 = vmul.f32 %v295, %v4722
        %v5749 = vmul.f32 %v296, %v4727
        %v5750 = vmul.f32 %v297, %v4729
        %v5751 = vmul.f32 %v298, %v4734
        %v5752 = vmul.f32 %v299, %v4736
        %v5753 = vmul.f32 %v300, %v4741
        %v5754 = vmul.f32 %v301, %v4743
        %v5755 = vmul.f32 %v5747, %v5722
        %v5756 = vmul.f32 %v5748, %v5724
        %v5757 = vmul.f32 %v5749, %v5729
        %v5758 = vmul.f32 %v5750, %v5731
        %v5759 = vmul.f32 %v5751, %v5736
        %v5760 = vmul.f32 %v5752, %v5738
        %v5761 = vmul.f32 %v5753, %v5743
        %v5762 = vmul.f32 %v5754, %v5745
        %5763 = vst [vmem:[%s293] sm:$0xff] %v5755
        %5764 = vst [vmem:[%s293 + $0x8] sm:$0xff] %v5756
        %5765 = vst [vmem:[%s293 + $0x10] sm:$0xff] %v5757
        %5766 = vst [vmem:[%s293 + $0x18] sm:$0xff] %v5758
        %5767 = vst [vmem:[%s293 + $0x20] sm:$0xff] %v5759
        %5768 = vst [vmem:[%s293 + $0x28] sm:$0xff] %v5760
        %5769 = vst [vmem:[%s293 + $0x30] sm:$0xff] %v5761
        %5770 = vst [vmem:[%s293 + $0x38] sm:$0xff] %v5762
        %p5771 = scmp.lt.s32.totalorder %s19, 1
        %s5772 = scalar_select %p5771, %s19, 1
        %s5773 = smul.addr %s5772, 8
        %s5774 = smul.addr %s5773, 8
        %s5775 = scalar_lea.vmem %s7, %s5774
        // Predicated region
        $region53: #{coord_att.1} parent=47 // pred_check
          %p5776 = pneg %p189
        $region54: #{coord_att.1} parent=47 // pred_check_branch
          %5778 = sbr.rel (%p5776) target = $region56
        $region55: #{coord_att.1} parent=47 // pred_region
          _
        $region56: #{coord_att.1} parent=47 // pred_fallthru
          _
      $region48: #{coord_att.1} parent=5 // pred_fallthru
        _
      %p5779 = scmp.le.s32.totalorder 2, %s14
      // Predicated region
      $region57: #{coord_att.1} parent=5 // pred_check
        %p5780 = pneg %p5779
      $region58: #{coord_att.1} parent=5 // pred_check_branch
        %5782 = sbr.rel (%p5780) target = $region60
      $region59: #{coord_att.1} parent=5 // pred_region
        %s5783 = ssub.s32 %s14, 2
        // Predicated region
        $region61: #{coord_att.1} parent=59 // pred_check
          %p5784 = pneg %p195
        $region62: #{coord_att.1} parent=59 // pred_check_branch
          %5786 = sbr.rel (%p5784) target = $region64
        $region63: #{coord_att.1} parent=59 // pred_region
          %p5787 = scmp.lt.s32.totalorder %s20, 1
          %s5788 = scalar_select %p5787, %s20, 1
          %s5789 = smul.addr %s5788, 8
          %s5790 = smul.addr %s5789, 8
          %s5791 = scalar_lea.vmem %s7, %s5790
        $region64: #{coord_att.1} parent=59 // pred_fallthru
          _
      $region60: #{coord_att.1} parent=5 // pred_fallthru
        _
    $region6: #{coord_att.1} parent=1 // loop_footer
      %s18 = sadd.s32 1, %s14
    $region7: #{coord_att.1} parent=1 // loop_footer_branch
      %13 = sbr.rel target = $region3
    $region8: #{coord_att.1} parent=1 // loop_exit
      _
    %5792 = vsyncpa [#allocation3], 1
    %s5793 = scalar_lea.sflag [#allocation3], 1
    %5794 = vsyncpa %s5793, 1

</llo_original>
